<compile_context>
chip_gen: v7x
topology: tpu7x:2x2x1
jax: 0.10.0
libtpu: 0.0.40
codegen_flags: <defaults>
</compile_context>

<pallas_src>
import numpy as np

import jax
import jax.numpy as jnp
from jax import lax
from jax.experimental import pallas as pl
from jax.experimental.pallas import tpu as pltpu


def _round_up(x, k):
    return (x + k - 1) // k * k


def _bitonic_sort_lanes(x):
    """Ascending bitonic sort along the last axis (size must be a power of 2).

    Compare-exchange masks depend only on the lane index, so they are computed
    at shape (1, N) and broadcast over rows; the heavy per-stage work on the
    full (TM, N) tile is the two XLU rolls plus min/max/select on the VPU.
    """
    n = x.shape[-1]
    axis = x.ndim - 1
    lane = lax.broadcasted_iota(jnp.int32, (1, n), 1)
    k = 2
    while k <= n:
        j = k // 2
        while j >= 1:
            plus_j = pltpu.roll(x, n - j, axis)   # -> x[(i + j) % n]
            minus_j = pltpu.roll(x, j, axis)      # -> x[(i - j) % n]
            is_lower = (lane & j) == 0            # (1, N)
            ascending = (lane & k) == 0           # (1, N)
            take_min = ascending == is_lower      # (1, N)
            partner = jnp.where(is_lower, plus_j, minus_j)
            mn = jnp.minimum(x, partner)
            mx = jnp.maximum(x, partner)
            x = jnp.where(take_min, mn, mx)
            j //= 2
        k *= 2
    return x


def _class_loss_kernel(pred_ref, labels_ref, w_ref, out_ref):
    x = pred_ref[...]          # (TM, N) float32
    y = labels_ref[...]        # (TM, 1) float32 in {0., 1.}
    n = x.shape[-1]

    x_sorted = _bitonic_sort_lanes(x)

    # Foreground branch: weighted mean with pre-normalized weights
    # w_norm[j] = 0.99**(N-1-j) / sum_i 0.99**i, computed as an MXU matvec
    # (the real weights live in column 0 of the (N, 128) constant operand).
    fg = jnp.dot(x_sorted, w_ref[...],
                 precision=lax.Precision.HIGHEST,
                 preferred_element_type=jnp.float32)[:, 0:1]     # (TM, 1)

    # Background branch (label == 0): weights collapse to [0,...,0,1], Z = 1,
    # i.e. pred_mean = row max = last element of the ascending sort.
    bg = x_sorted[:, n - 1:n]                                     # (TM, 1)

    p = jnp.where(y != 0.0, fg, bg)                               # (TM, 1)

    # BCELoss per element: -(y*log(p) + (1-y)*log(1-p)), logs clamped at -100.
    log_p = jnp.maximum(jnp.log(p), -100.0)
    log_1mp = jnp.maximum(jnp.log(1.0 - p), -100.0)
    out_ref[...] = -(y * log_p + (1.0 - y) * log_1mp)             # (TM, 1)


def class_loss_fn(pred, gt, labels):
    """Pallas equivalent of ClassLossFN.forward(pred, gt, labels)."""
    del gt  # unused by the reference forward
    b, c, h, w = pred.shape
    n = h * w
    m = b * c
    # TODO(synk): bitonic sort requires power-of-two H*W; general shapes would
    # need +inf-padded lanes with zero weight.
    assert n & (n - 1) == 0, "H*W must be a power of two for the in-kernel bitonic sort"

    tm = min(128, _round_up(m, 8))        # rows per grid step (sublane multiple)
    m_pad = _round_up(m, tm)
    grid = (m_pad // tm,)

    pred2d = pred.reshape(m, n).astype(jnp.float32)
    labels2d = labels.reshape(m, 1).astype(jnp.float32)
    if m_pad != m:
        pred2d = jnp.pad(pred2d, ((0, m_pad - m), (0, 0)))
        labels2d = jnp.pad(labels2d, ((0, m_pad - m), (0, 0)))

    # Pre-normalized foreground weights with 1/Z_fg folded in, laid out as an
    # (N, 128) MXU operand (column 0 holds the weights, rest is zero padding).
    expo = np.arange(n - 1, -1, -1, dtype=np.float64)
    w_fg = np.power(0.99, expo)
    w_norm = (w_fg / w_fg.sum()).astype(np.float32)
    wmat_np = np.zeros((n, 128), dtype=np.float32)
    wmat_np[:, 0] = w_norm
    wmat = jnp.asarray(wmat_np)

    # VMEM budget: double-buffered inputs + headroom for sort temporaries.
    vmem_limit = min(
        64 * 1024 * 1024,
        max(32 * 1024 * 1024,
            4 * (2 * tm * n + 2 * tm + 2 * n * 128 + 2 * tm) + 8 * tm * n * 4),
    )

    bce = pl.pallas_call(
        _class_loss_kernel,
        out_shape=jax.ShapeDtypeStruct((m_pad, 1), jnp.float32),
        grid=grid,
        in_specs=[
            pl.BlockSpec((tm, n), lambda i: (i, 0)),
            pl.BlockSpec((tm, 1), lambda i: (i, 0)),
            pl.BlockSpec((n, 128), lambda i: (0, 0)),   # constant index -> no re-DMA
        ],
        out_specs=pl.BlockSpec((tm, 1), lambda i: (i, 0)),
        compiler_params=pltpu.CompilerParams(
            dimension_semantics=("parallel",),
            vmem_limit_bytes=vmem_limit,
        ),
    )(pred2d, labels2d, wmat)

    # Final mean over the real (unpadded) rows, done outside the kernel.
    return jnp.sum(bce[:m, 0]) / m


def _reference(pred, labels):
    """Pure-JAX reference mirroring the PyTorch forward."""
    b, c, h, w = pred.shape
    n = h * w
    p = pred.reshape(b, c, n).astype(jnp.float32)
    ps = jnp.sort(p, axis=2)
    expo = jnp.arange(n - 1, -1, -1, dtype=jnp.float32)
    w_fg = jnp.power(jnp.float32(0.99), expo)
    w_bg = (expo == 0).astype(jnp.float32)
    wts = jnp.where((labels != 0)[..., None], w_fg, w_bg)
    z = wts.sum(axis=2, keepdims=True)
    pm = (ps * wts / z).sum(axis=2)
    y = labels.astype(jnp.float32)
    lp = jnp.maximum(jnp.log(pm), -100.0)
    l1p = jnp.maximum(jnp.log(1.0 - pm), -100.0)
    return jnp.mean(-(y * lp + (1.0 - y) * l1p))


if __name__ == "__main__":
    key = jax.random.PRNGKey(0)
    k1, k2, k3 = jax.random.split(key, 3)
    B, C, H, W = 2, 4, 16, 16

    # pred must be in (0, 1) for BCELoss (the PyTorch module expects probabilities).
    pred = jax.nn.sigmoid(jax.random.normal(k1, (B, C, H, W), jnp.float32))
    gt = jax.random.normal(k2, (B, C, H, W), jnp.float32)  # unused by forward
    labels = jax.random.bernoulli(k3, 0.5, (B, C)).astype(jnp.float32)

    loss = class_loss_fn(pred, gt, labels)
    loss = jax.block_until_ready(loss)

    ref = _reference(pred, labels)
    assert jnp.allclose(loss, ref, rtol=1e-3, atol=1e-4), (float(loss), float(ref))

    print("KERNEL_OK")
</pallas_src>

<mosaic_0001>
module attributes {stable_mosaic.version = 11 : i64} {
  func.func @_class_loss_kernel(%arg0: i32, %arg1: memref<8x256xf32, #tpu.memory_space<vmem>>, %arg2: memref<8x1xf32, #tpu.memory_space<vmem>>, %arg3: memref<256x128xf32, #tpu.memory_space<vmem>>, %arg4: memref<8x1xf32, #tpu.memory_space<vmem>>) attributes {dimension_semantics = [#tpu.dimension_semantics<parallel>], iteration_bounds = array<i64: 1>, scalar_prefetch = 0 : i64, scratch_operands = 0 : i64, tpu.core_type = #tpu.core_type<tc>, window_params = [{transform_indices = @transform_0, window_bounds = array<i64: 8, 256>}, {transform_indices = @transform_1, window_bounds = array<i64: 8, 1>}, {pipeline_mode = #tpu.pipeline_mode<synchronous>, transform_indices = @transform_2, window_bounds = array<i64: 256, 128>}, {transform_indices = @transform_3, window_bounds = array<i64: 8, 1>}]} {
    %c0 = arith.constant 0 : index
    %c0_0 = arith.constant 0 : index
    %0 = vector.load %arg1[%c0, %c0_0] : memref<8x256xf32, #tpu.memory_space<vmem>>, vector<8x256xf32>
    %c0_1 = arith.constant 0 : index
    %c0_2 = arith.constant 0 : index
    %1 = vector.load %arg2[%c0_1, %c0_2] : memref<8x1xf32, #tpu.memory_space<vmem>>, vector<8x1xf32>
    %2 = tpu.iota {dimensions = array<i32: 1>} : vector<1x256xi32>
    %c255_i32 = arith.constant 255 : i32
    %3 = tpu.dynamic_rotate %0 by %c255_i32 dim 1 : vector<8x256xf32>, i32 -> vector<8x256xf32>
    %c1_i32 = arith.constant 1 : i32
    %4 = tpu.dynamic_rotate %0 by %c1_i32 dim 1 : vector<8x256xf32>, i32 -> vector<8x256xf32>
    %c1_i32_3 = arith.constant 1 : i32
    %5 = vector.broadcast %c1_i32_3 : i32 to vector<1x256xi32>
    %6 = arith.andi %2, %5 : vector<1x256xi32>
    %c0_i32 = arith.constant 0 : i32
    %7 = vector.broadcast %c0_i32 : i32 to vector<1x256xi32>
    %8 = arith.cmpi eq, %6, %7 : vector<1x256xi32>
    %c2_i32 = arith.constant 2 : i32
    %9 = vector.broadcast %c2_i32 : i32 to vector<1x256xi32>
    %10 = arith.andi %2, %9 : vector<1x256xi32>
    %c0_i32_4 = arith.constant 0 : i32
    %11 = vector.broadcast %c0_i32_4 : i32 to vector<1x256xi32>
    %12 = arith.cmpi eq, %10, %11 : vector<1x256xi32>
    %13 = arith.xori %12, %8 : vector<1x256xi1>
    %cst = arith.constant dense<true> : vector<1x256xi1>
    %14 = arith.xori %13, %cst : vector<1x256xi1>
    %15 = vector.shape_cast %8 : vector<1x256xi1> to vector<1x256xi1>
    %16 = vector.broadcast %15 : vector<1x256xi1> to vector<8x256xi1>
    %17 = arith.select %16, %3, %4 : vector<8x256xi1>, vector<8x256xf32>
    %18 = arith.minimumf %0, %17 : vector<8x256xf32>
    %19 = arith.maximumf %0, %17 : vector<8x256xf32>
    %20 = vector.shape_cast %14 : vector<1x256xi1> to vector<1x256xi1>
    %21 = vector.broadcast %20 : vector<1x256xi1> to vector<8x256xi1>
    %22 = arith.select %21, %18, %19 : vector<8x256xi1>, vector<8x256xf32>
    %c254_i32 = arith.constant 254 : i32
    %23 = tpu.dynamic_rotate %22 by %c254_i32 dim 1 : vector<8x256xf32>, i32 -> vector<8x256xf32>
    %c2_i32_5 = arith.constant 2 : i32
    %24 = tpu.dynamic_rotate %22 by %c2_i32_5 dim 1 : vector<8x256xf32>, i32 -> vector<8x256xf32>
    %c2_i32_6 = arith.constant 2 : i32
    %25 = vector.broadcast %c2_i32_6 : i32 to vector<1x256xi32>
    %26 = arith.andi %2, %25 : vector<1x256xi32>
    %c0_i32_7 = arith.constant 0 : i32
    %27 = vector.broadcast %c0_i32_7 : i32 to vector<1x256xi32>
    %28 = arith.cmpi eq, %26, %27 : vector<1x256xi32>
    %c4_i32 = arith.constant 4 : i32
    %29 = vector.broadcast %c4_i32 : i32 to vector<1x256xi32>
    %30 = arith.andi %2, %29 : vector<1x256xi32>
    %c0_i32_8 = arith.constant 0 : i32
    %31 = vector.broadcast %c0_i32_8 : i32 to vector<1x256xi32>
    %32 = arith.cmpi eq, %30, %31 : vector<1x256xi32>
    %33 = arith.xori %32, %28 : vector<1x256xi1>
    %cst_9 = arith.constant dense<true> : vector<1x256xi1>
    %34 = arith.xori %33, %cst_9 : vector<1x256xi1>
    %35 = vector.shape_cast %28 : vector<1x256xi1> to vector<1x256xi1>
    %36 = vector.broadcast %35 : vector<1x256xi1> to vector<8x256xi1>
    %37 = arith.select %36, %23, %24 : vector<8x256xi1>, vector<8x256xf32>
    %38 = arith.minimumf %22, %37 : vector<8x256xf32>
    %39 = arith.maximumf %22, %37 : vector<8x256xf32>
    %40 = vector.shape_cast %34 : vector<1x256xi1> to vector<1x256xi1>
    %41 = vector.broadcast %40 : vector<1x256xi1> to vector<8x256xi1>
    %42 = arith.select %41, %38, %39 : vector<8x256xi1>, vector<8x256xf32>
    %c255_i32_10 = arith.constant 255 : i32
    %43 = tpu.dynamic_rotate %42 by %c255_i32_10 dim 1 : vector<8x256xf32>, i32 -> vector<8x256xf32>
    %c1_i32_11 = arith.constant 1 : i32
    %44 = tpu.dynamic_rotate %42 by %c1_i32_11 dim 1 : vector<8x256xf32>, i32 -> vector<8x256xf32>
    %c1_i32_12 = arith.constant 1 : i32
    %45 = vector.broadcast %c1_i32_12 : i32 to vector<1x256xi32>
    %46 = arith.andi %2, %45 : vector<1x256xi32>
    %c0_i32_13 = arith.constant 0 : i32
    %47 = vector.broadcast %c0_i32_13 : i32 to vector<1x256xi32>
    %48 = arith.cmpi eq, %46, %47 : vector<1x256xi32>
    %c4_i32_14 = arith.constant 4 : i32
    %49 = vector.broadcast %c4_i32_14 : i32 to vector<1x256xi32>
    %50 = arith.andi %2, %49 : vector<1x256xi32>
    %c0_i32_15 = arith.constant 0 : i32
    %51 = vector.broadcast %c0_i32_15 : i32 to vector<1x256xi32>
    %52 = arith.cmpi eq, %50, %51 : vector<1x256xi32>
    %53 = arith.xori %52, %48 : vector<1x256xi1>
    %cst_16 = arith.constant dense<true> : vector<1x256xi1>
    %54 = arith.xori %53, %cst_16 : vector<1x256xi1>
    %55 = vector.shape_cast %48 : vector<1x256xi1> to vector<1x256xi1>
    %56 = vector.broadcast %55 : vector<1x256xi1> to vector<8x256xi1>
    %57 = arith.select %56, %43, %44 : vector<8x256xi1>, vector<8x256xf32>
    %58 = arith.minimumf %42, %57 : vector<8x256xf32>
    %59 = arith.maximumf %42, %57 : vector<8x256xf32>
    %60 = vector.shape_cast %54 : vector<1x256xi1> to vector<1x256xi1>
    %61 = vector.broadcast %60 : vector<1x256xi1> to vector<8x256xi1>
    %62 = arith.select %61, %58, %59 : vector<8x256xi1>, vector<8x256xf32>
    %c252_i32 = arith.constant 252 : i32
    %63 = tpu.dynamic_rotate %62 by %c252_i32 dim 1 : vector<8x256xf32>, i32 -> vector<8x256xf32>
    %c4_i32_17 = arith.constant 4 : i32
    %64 = tpu.dynamic_rotate %62 by %c4_i32_17 dim 1 : vector<8x256xf32>, i32 -> vector<8x256xf32>
    %c4_i32_18 = arith.constant 4 : i32
    %65 = vector.broadcast %c4_i32_18 : i32 to vector<1x256xi32>
    %66 = arith.andi %2, %65 : vector<1x256xi32>
    %c0_i32_19 = arith.constant 0 : i32
    %67 = vector.broadcast %c0_i32_19 : i32 to vector<1x256xi32>
    %68 = arith.cmpi eq, %66, %67 : vector<1x256xi32>
    %c8_i32 = arith.constant 8 : i32
    %69 = vector.broadcast %c8_i32 : i32 to vector<1x256xi32>
    %70 = arith.andi %2, %69 : vector<1x256xi32>
    %c0_i32_20 = arith.constant 0 : i32
    %71 = vector.broadcast %c0_i32_20 : i32 to vector<1x256xi32>
    %72 = arith.cmpi eq, %70, %71 : vector<1x256xi32>
    %73 = arith.xori %72, %68 : vector<1x256xi1>
    %cst_21 = arith.constant dense<true> : vector<1x256xi1>
    %74 = arith.xori %73, %cst_21 : vector<1x256xi1>
    %75 = vector.shape_cast %68 : vector<1x256xi1> to vector<1x256xi1>
    %76 = vector.broadcast %75 : vector<1x256xi1> to vector<8x256xi1>
    %77 = arith.select %76, %63, %64 : vector<8x256xi1>, vector<8x256xf32>
    %78 = arith.minimumf %62, %77 : vector<8x256xf32>
    %79 = arith.maximumf %62, %77 : vector<8x256xf32>
    %80 = vector.shape_cast %74 : vector<1x256xi1> to vector<1x256xi1>
    %81 = vector.broadcast %80 : vector<1x256xi1> to vector<8x256xi1>
    %82 = arith.select %81, %78, %79 : vector<8x256xi1>, vector<8x256xf32>
    %c254_i32_22 = arith.constant 254 : i32
    %83 = tpu.dynamic_rotate %82 by %c254_i32_22 dim 1 : vector<8x256xf32>, i32 -> vector<8x256xf32>
    %c2_i32_23 = arith.constant 2 : i32
    %84 = tpu.dynamic_rotate %82 by %c2_i32_23 dim 1 : vector<8x256xf32>, i32 -> vector<8x256xf32>
    %c2_i32_24 = arith.constant 2 : i32
    %85 = vector.broadcast %c2_i32_24 : i32 to vector<1x256xi32>
    %86 = arith.andi %2, %85 : vector<1x256xi32>
    %c0_i32_25 = arith.constant 0 : i32
    %87 = vector.broadcast %c0_i32_25 : i32 to vector<1x256xi32>
    %88 = arith.cmpi eq, %86, %87 : vector<1x256xi32>
    %c8_i32_26 = arith.constant 8 : i32
    %89 = vector.broadcast %c8_i32_26 : i32 to vector<1x256xi32>
    %90 = arith.andi %2, %89 : vector<1x256xi32>
    %c0_i32_27 = arith.constant 0 : i32
    %91 = vector.broadcast %c0_i32_27 : i32 to vector<1x256xi32>
    %92 = arith.cmpi eq, %90, %91 : vector<1x256xi32>
    %93 = arith.xori %92, %88 : vector<1x256xi1>
    %cst_28 = arith.constant dense<true> : vector<1x256xi1>
    %94 = arith.xori %93, %cst_28 : vector<1x256xi1>
    %95 = vector.shape_cast %88 : vector<1x256xi1> to vector<1x256xi1>
    %96 = vector.broadcast %95 : vector<1x256xi1> to vector<8x256xi1>
    %97 = arith.select %96, %83, %84 : vector<8x256xi1>, vector<8x256xf32>
    %98 = arith.minimumf %82, %97 : vector<8x256xf32>
    %99 = arith.maximumf %82, %97 : vector<8x256xf32>
    %100 = vector.shape_cast %94 : vector<1x256xi1> to vector<1x256xi1>
    %101 = vector.broadcast %100 : vector<1x256xi1> to vector<8x256xi1>
    %102 = arith.select %101, %98, %99 : vector<8x256xi1>, vector<8x256xf32>
    %c255_i32_29 = arith.constant 255 : i32
    %103 = tpu.dynamic_rotate %102 by %c255_i32_29 dim 1 : vector<8x256xf32>, i32 -> vector<8x256xf32>
    %c1_i32_30 = arith.constant 1 : i32
    %104 = tpu.dynamic_rotate %102 by %c1_i32_30 dim 1 : vector<8x256xf32>, i32 -> vector<8x256xf32>
    %c1_i32_31 = arith.constant 1 : i32
    %105 = vector.broadcast %c1_i32_31 : i32 to vector<1x256xi32>
    %106 = arith.andi %2, %105 : vector<1x256xi32>
    %c0_i32_32 = arith.constant 0 : i32
    %107 = vector.broadcast %c0_i32_32 : i32 to vector<1x256xi32>
    %108 = arith.cmpi eq, %106, %107 : vector<1x256xi32>
    %c8_i32_33 = arith.constant 8 : i32
    %109 = vector.broadcast %c8_i32_33 : i32 to vector<1x256xi32>
    %110 = arith.andi %2, %109 : vector<1x256xi32>
    %c0_i32_34 = arith.constant 0 : i32
    %111 = vector.broadcast %c0_i32_34 : i32 to vector<1x256xi32>
    %112 = arith.cmpi eq, %110, %111 : vector<1x256xi32>
    %113 = arith.xori %112, %108 : vector<1x256xi1>
    %cst_35 = arith.constant dense<true> : vector<1x256xi1>
    %114 = arith.xori %113, %cst_35 : vector<1x256xi1>
    %115 = vector.shape_cast %108 : vector<1x256xi1> to vector<1x256xi1>
    %116 = vector.broadcast %115 : vector<1x256xi1> to vector<8x256xi1>
    %117 = arith.select %116, %103, %104 : vector<8x256xi1>, vector<8x256xf32>
    %118 = arith.minimumf %102, %117 : vector<8x256xf32>
    %119 = arith.maximumf %102, %117 : vector<8x256xf32>
    %120 = vector.shape_cast %114 : vector<1x256xi1> to vector<1x256xi1>
    %121 = vector.broadcast %120 : vector<1x256xi1> to vector<8x256xi1>
    %122 = arith.select %121, %118, %119 : vector<8x256xi1>, vector<8x256xf32>
    %c248_i32 = arith.constant 248 : i32
    %123 = tpu.dynamic_rotate %122 by %c248_i32 dim 1 : vector<8x256xf32>, i32 -> vector<8x256xf32>
    %c8_i32_36 = arith.constant 8 : i32
    %124 = tpu.dynamic_rotate %122 by %c8_i32_36 dim 1 : vector<8x256xf32>, i32 -> vector<8x256xf32>
    %c8_i32_37 = arith.constant 8 : i32
    %125 = vector.broadcast %c8_i32_37 : i32 to vector<1x256xi32>
    %126 = arith.andi %2, %125 : vector<1x256xi32>
    %c0_i32_38 = arith.constant 0 : i32
    %127 = vector.broadcast %c0_i32_38 : i32 to vector<1x256xi32>
    %128 = arith.cmpi eq, %126, %127 : vector<1x256xi32>
    %c16_i32 = arith.constant 16 : i32
    %129 = vector.broadcast %c16_i32 : i32 to vector<1x256xi32>
    %130 = arith.andi %2, %129 : vector<1x256xi32>
    %c0_i32_39 = arith.constant 0 : i32
    %131 = vector.broadcast %c0_i32_39 : i32 to vector<1x256xi32>
    %132 = arith.cmpi eq, %130, %131 : vector<1x256xi32>
    %133 = arith.xori %132, %128 : vector<1x256xi1>
    %cst_40 = arith.constant dense<true> : vector<1x256xi1>
    %134 = arith.xori %133, %cst_40 : vector<1x256xi1>
    %135 = vector.shape_cast %128 : vector<1x256xi1> to vector<1x256xi1>
    %136 = vector.broadcast %135 : vector<1x256xi1> to vector<8x256xi1>
    %137 = arith.select %136, %123, %124 : vector<8x256xi1>, vector<8x256xf32>
    %138 = arith.minimumf %122, %137 : vector<8x256xf32>
    %139 = arith.maximumf %122, %137 : vector<8x256xf32>
    %140 = vector.shape_cast %134 : vector<1x256xi1> to vector<1x256xi1>
    %141 = vector.broadcast %140 : vector<1x256xi1> to vector<8x256xi1>
    %142 = arith.select %141, %138, %139 : vector<8x256xi1>, vector<8x256xf32>
    %c252_i32_41 = arith.constant 252 : i32
    %143 = tpu.dynamic_rotate %142 by %c252_i32_41 dim 1 : vector<8x256xf32>, i32 -> vector<8x256xf32>
    %c4_i32_42 = arith.constant 4 : i32
    %144 = tpu.dynamic_rotate %142 by %c4_i32_42 dim 1 : vector<8x256xf32>, i32 -> vector<8x256xf32>
    %c4_i32_43 = arith.constant 4 : i32
    %145 = vector.broadcast %c4_i32_43 : i32 to vector<1x256xi32>
    %146 = arith.andi %2, %145 : vector<1x256xi32>
    %c0_i32_44 = arith.constant 0 : i32
    %147 = vector.broadcast %c0_i32_44 : i32 to vector<1x256xi32>
    %148 = arith.cmpi eq, %146, %147 : vector<1x256xi32>
    %c16_i32_45 = arith.constant 16 : i32
    %149 = vector.broadcast %c16_i32_45 : i32 to vector<1x256xi32>
    %150 = arith.andi %2, %149 : vector<1x256xi32>
    %c0_i32_46 = arith.constant 0 : i32
    %151 = vector.broadcast %c0_i32_46 : i32 to vector<1x256xi32>
    %152 = arith.cmpi eq, %150, %151 : vector<1x256xi32>
    %153 = arith.xori %152, %148 : vector<1x256xi1>
    %cst_47 = arith.constant dense<true> : vector<1x256xi1>
    %154 = arith.xori %153, %cst_47 : vector<1x256xi1>
    %155 = vector.shape_cast %148 : vector<1x256xi1> to vector<1x256xi1>
    %156 = vector.broadcast %155 : vector<1x256xi1> to vector<8x256xi1>
    %157 = arith.select %156, %143, %144 : vector<8x256xi1>, vector<8x256xf32>
    %158 = arith.minimumf %142, %157 : vector<8x256xf32>
    %159 = arith.maximumf %142, %157 : vector<8x256xf32>
    %160 = vector.shape_cast %154 : vector<1x256xi1> to vector<1x256xi1>
    %161 = vector.broadcast %160 : vector<1x256xi1> to vector<8x256xi1>
    %162 = arith.select %161, %158, %159 : vector<8x256xi1>, vector<8x256xf32>
    %c254_i32_48 = arith.constant 254 : i32
    %163 = tpu.dynamic_rotate %162 by %c254_i32_48 dim 1 : vector<8x256xf32>, i32 -> vector<8x256xf32>
    %c2_i32_49 = arith.constant 2 : i32
    %164 = tpu.dynamic_rotate %162 by %c2_i32_49 dim 1 : vector<8x256xf32>, i32 -> vector<8x256xf32>
    %c2_i32_50 = arith.constant 2 : i32
    %165 = vector.broadcast %c2_i32_50 : i32 to vector<1x256xi32>
    %166 = arith.andi %2, %165 : vector<1x256xi32>
    %c0_i32_51 = arith.constant 0 : i32
    %167 = vector.broadcast %c0_i32_51 : i32 to vector<1x256xi32>
    %168 = arith.cmpi eq, %166, %167 : vector<1x256xi32>
    %c16_i32_52 = arith.constant 16 : i32
    %169 = vector.broadcast %c16_i32_52 : i32 to vector<1x256xi32>
    %170 = arith.andi %2, %169 : vector<1x256xi32>
    %c0_i32_53 = arith.constant 0 : i32
    %171 = vector.broadcast %c0_i32_53 : i32 to vector<1x256xi32>
    %172 = arith.cmpi eq, %170, %171 : vector<1x256xi32>
    %173 = arith.xori %172, %168 : vector<1x256xi1>
    %cst_54 = arith.constant dense<true> : vector<1x256xi1>
    %174 = arith.xori %173, %cst_54 : vector<1x256xi1>
    %175 = vector.shape_cast %168 : vector<1x256xi1> to vector<1x256xi1>
    %176 = vector.broadcast %175 : vector<1x256xi1> to vector<8x256xi1>
    %177 = arith.select %176, %163, %164 : vector<8x256xi1>, vector<8x256xf32>
    %178 = arith.minimumf %162, %177 : vector<8x256xf32>
    %179 = arith.maximumf %162, %177 : vector<8x256xf32>
    %180 = vector.shape_cast %174 : vector<1x256xi1> to vector<1x256xi1>
    %181 = vector.broadcast %180 : vector<1x256xi1> to vector<8x256xi1>
    %182 = arith.select %181, %178, %179 : vector<8x256xi1>, vector<8x256xf32>
    %c255_i32_55 = arith.constant 255 : i32
    %183 = tpu.dynamic_rotate %182 by %c255_i32_55 dim 1 : vector<8x256xf32>, i32 -> vector<8x256xf32>
    %c1_i32_56 = arith.constant 1 : i32
    %184 = tpu.dynamic_rotate %182 by %c1_i32_56 dim 1 : vector<8x256xf32>, i32 -> vector<8x256xf32>
    %c1_i32_57 = arith.constant 1 : i32
    %185 = vector.broadcast %c1_i32_57 : i32 to vector<1x256xi32>
    %186 = arith.andi %2, %185 : vector<1x256xi32>
    %c0_i32_58 = arith.constant 0 : i32
    %187 = vector.broadcast %c0_i32_58 : i32 to vector<1x256xi32>
    %188 = arith.cmpi eq, %186, %187 : vector<1x256xi32>
    %c16_i32_59 = arith.constant 16 : i32
    %189 = vector.broadcast %c16_i32_59 : i32 to vector<1x256xi32>
    %190 = arith.andi %2, %189 : vector<1x256xi32>
    %c0_i32_60 = arith.constant 0 : i32
    %191 = vector.broadcast %c0_i32_60 : i32 to vector<1x256xi32>
    %192 = arith.cmpi eq, %190, %191 : vector<1x256xi32>
    %193 = arith.xori %192, %188 : vector<1x256xi1>
    %cst_61 = arith.constant dense<true> : vector<1x256xi1>
    %194 = arith.xori %193, %cst_61 : vector<1x256xi1>
    %195 = vector.shape_cast %188 : vector<1x256xi1> to vector<1x256xi1>
    %196 = vector.broadcast %195 : vector<1x256xi1> to vector<8x256xi1>
    %197 = arith.select %196, %183, %184 : vector<8x256xi1>, vector<8x256xf32>
    %198 = arith.minimumf %182, %197 : vector<8x256xf32>
    %199 = arith.maximumf %182, %197 : vector<8x256xf32>
    %200 = vector.shape_cast %194 : vector<1x256xi1> to vector<1x256xi1>
    %201 = vector.broadcast %200 : vector<1x256xi1> to vector<8x256xi1>
    %202 = arith.select %201, %198, %199 : vector<8x256xi1>, vector<8x256xf32>
    %c240_i32 = arith.constant 240 : i32
    %203 = tpu.dynamic_rotate %202 by %c240_i32 dim 1 : vector<8x256xf32>, i32 -> vector<8x256xf32>
    %c16_i32_62 = arith.constant 16 : i32
    %204 = tpu.dynamic_rotate %202 by %c16_i32_62 dim 1 : vector<8x256xf32>, i32 -> vector<8x256xf32>
    %c16_i32_63 = arith.constant 16 : i32
    %205 = vector.broadcast %c16_i32_63 : i32 to vector<1x256xi32>
    %206 = arith.andi %2, %205 : vector<1x256xi32>
    %c0_i32_64 = arith.constant 0 : i32
    %207 = vector.broadcast %c0_i32_64 : i32 to vector<1x256xi32>
    %208 = arith.cmpi eq, %206, %207 : vector<1x256xi32>
    %c32_i32 = arith.constant 32 : i32
    %209 = vector.broadcast %c32_i32 : i32 to vector<1x256xi32>
    %210 = arith.andi %2, %209 : vector<1x256xi32>
    %c0_i32_65 = arith.constant 0 : i32
    %211 = vector.broadcast %c0_i32_65 : i32 to vector<1x256xi32>
    %212 = arith.cmpi eq, %210, %211 : vector<1x256xi32>
    %213 = arith.xori %212, %208 : vector<1x256xi1>
    %cst_66 = arith.constant dense<true> : vector<1x256xi1>
    %214 = arith.xori %213, %cst_66 : vector<1x256xi1>
    %215 = vector.shape_cast %208 : vector<1x256xi1> to vector<1x256xi1>
    %216 = vector.broadcast %215 : vector<1x256xi1> to vector<8x256xi1>
    %217 = arith.select %216, %203, %204 : vector<8x256xi1>, vector<8x256xf32>
    %218 = arith.minimumf %202, %217 : vector<8x256xf32>
    %219 = arith.maximumf %202, %217 : vector<8x256xf32>
    %220 = vector.shape_cast %214 : vector<1x256xi1> to vector<1x256xi1>
    %221 = vector.broadcast %220 : vector<1x256xi1> to vector<8x256xi1>
    %222 = arith.select %221, %218, %219 : vector<8x256xi1>, vector<8x256xf32>
    %c248_i32_67 = arith.constant 248 : i32
    %223 = tpu.dynamic_rotate %222 by %c248_i32_67 dim 1 : vector<8x256xf32>, i32 -> vector<8x256xf32>
    %c8_i32_68 = arith.constant 8 : i32
    %224 = tpu.dynamic_rotate %222 by %c8_i32_68 dim 1 : vector<8x256xf32>, i32 -> vector<8x256xf32>
    %c8_i32_69 = arith.constant 8 : i32
    %225 = vector.broadcast %c8_i32_69 : i32 to vector<1x256xi32>
    %226 = arith.andi %2, %225 : vector<1x256xi32>
    %c0_i32_70 = arith.constant 0 : i32
    %227 = vector.broadcast %c0_i32_70 : i32 to vector<1x256xi32>
    %228 = arith.cmpi eq, %226, %227 : vector<1x256xi32>
    %c32_i32_71 = arith.constant 32 : i32
    %229 = vector.broadcast %c32_i32_71 : i32 to vector<1x256xi32>
    %230 = arith.andi %2, %229 : vector<1x256xi32>
    %c0_i32_72 = arith.constant 0 : i32
    %231 = vector.broadcast %c0_i32_72 : i32 to vector<1x256xi32>
    %232 = arith.cmpi eq, %230, %231 : vector<1x256xi32>
    %233 = arith.xori %232, %228 : vector<1x256xi1>
    %cst_73 = arith.constant dense<true> : vector<1x256xi1>
    %234 = arith.xori %233, %cst_73 : vector<1x256xi1>
    %235 = vector.shape_cast %228 : vector<1x256xi1> to vector<1x256xi1>
    %236 = vector.broadcast %235 : vector<1x256xi1> to vector<8x256xi1>
    %237 = arith.select %236, %223, %224 : vector<8x256xi1>, vector<8x256xf32>
    %238 = arith.minimumf %222, %237 : vector<8x256xf32>
    %239 = arith.maximumf %222, %237 : vector<8x256xf32>
    %240 = vector.shape_cast %234 : vector<1x256xi1> to vector<1x256xi1>
    %241 = vector.broadcast %240 : vector<1x256xi1> to vector<8x256xi1>
    %242 = arith.select %241, %238, %239 : vector<8x256xi1>, vector<8x256xf32>
    %c252_i32_74 = arith.constant 252 : i32
    %243 = tpu.dynamic_rotate %242 by %c252_i32_74 dim 1 : vector<8x256xf32>, i32 -> vector<8x256xf32>
    %c4_i32_75 = arith.constant 4 : i32
    %244 = tpu.dynamic_rotate %242 by %c4_i32_75 dim 1 : vector<8x256xf32>, i32 -> vector<8x256xf32>
    %c4_i32_76 = arith.constant 4 : i32
    %245 = vector.broadcast %c4_i32_76 : i32 to vector<1x256xi32>
    %246 = arith.andi %2, %245 : vector<1x256xi32>
    %c0_i32_77 = arith.constant 0 : i32
    %247 = vector.broadcast %c0_i32_77 : i32 to vector<1x256xi32>
    %248 = arith.cmpi eq, %246, %247 : vector<1x256xi32>
    %c32_i32_78 = arith.constant 32 : i32
    %249 = vector.broadcast %c32_i32_78 : i32 to vector<1x256xi32>
    %250 = arith.andi %2, %249 : vector<1x256xi32>
    %c0_i32_79 = arith.constant 0 : i32
    %251 = vector.broadcast %c0_i32_79 : i32 to vector<1x256xi32>
    %252 = arith.cmpi eq, %250, %251 : vector<1x256xi32>
    %253 = arith.xori %252, %248 : vector<1x256xi1>
    %cst_80 = arith.constant dense<true> : vector<1x256xi1>
    %254 = arith.xori %253, %cst_80 : vector<1x256xi1>
    %255 = vector.shape_cast %248 : vector<1x256xi1> to vector<1x256xi1>
    %256 = vector.broadcast %255 : vector<1x256xi1> to vector<8x256xi1>
    %257 = arith.select %256, %243, %244 : vector<8x256xi1>, vector<8x256xf32>
    %258 = arith.minimumf %242, %257 : vector<8x256xf32>
    %259 = arith.maximumf %242, %257 : vector<8x256xf32>
    %260 = vector.shape_cast %254 : vector<1x256xi1> to vector<1x256xi1>
    %261 = vector.broadcast %260 : vector<1x256xi1> to vector<8x256xi1>
    %262 = arith.select %261, %258, %259 : vector<8x256xi1>, vector<8x256xf32>
    %c254_i32_81 = arith.constant 254 : i32
    %263 = tpu.dynamic_rotate %262 by %c254_i32_81 dim 1 : vector<8x256xf32>, i32 -> vector<8x256xf32>
    %c2_i32_82 = arith.constant 2 : i32
    %264 = tpu.dynamic_rotate %262 by %c2_i32_82 dim 1 : vector<8x256xf32>, i32 -> vector<8x256xf32>
    %c2_i32_83 = arith.constant 2 : i32
    %265 = vector.broadcast %c2_i32_83 : i32 to vector<1x256xi32>
    %266 = arith.andi %2, %265 : vector<1x256xi32>
    %c0_i32_84 = arith.constant 0 : i32
    %267 = vector.broadcast %c0_i32_84 : i32 to vector<1x256xi32>
    %268 = arith.cmpi eq, %266, %267 : vector<1x256xi32>
    %c32_i32_85 = arith.constant 32 : i32
    %269 = vector.broadcast %c32_i32_85 : i32 to vector<1x256xi32>
    %270 = arith.andi %2, %269 : vector<1x256xi32>
    %c0_i32_86 = arith.constant 0 : i32
    %271 = vector.broadcast %c0_i32_86 : i32 to vector<1x256xi32>
    %272 = arith.cmpi eq, %270, %271 : vector<1x256xi32>
    %273 = arith.xori %272, %268 : vector<1x256xi1>
    %cst_87 = arith.constant dense<true> : vector<1x256xi1>
    %274 = arith.xori %273, %cst_87 : vector<1x256xi1>
    %275 = vector.shape_cast %268 : vector<1x256xi1> to vector<1x256xi1>
    %276 = vector.broadcast %275 : vector<1x256xi1> to vector<8x256xi1>
    %277 = arith.select %276, %263, %264 : vector<8x256xi1>, vector<8x256xf32>
    %278 = arith.minimumf %262, %277 : vector<8x256xf32>
    %279 = arith.maximumf %262, %277 : vector<8x256xf32>
    %280 = vector.shape_cast %274 : vector<1x256xi1> to vector<1x256xi1>
    %281 = vector.broadcast %280 : vector<1x256xi1> to vector<8x256xi1>
    %282 = arith.select %281, %278, %279 : vector<8x256xi1>, vector<8x256xf32>
    %c255_i32_88 = arith.constant 255 : i32
    %283 = tpu.dynamic_rotate %282 by %c255_i32_88 dim 1 : vector<8x256xf32>, i32 -> vector<8x256xf32>
    %c1_i32_89 = arith.constant 1 : i32
    %284 = tpu.dynamic_rotate %282 by %c1_i32_89 dim 1 : vector<8x256xf32>, i32 -> vector<8x256xf32>
    %c1_i32_90 = arith.constant 1 : i32
    %285 = vector.broadcast %c1_i32_90 : i32 to vector<1x256xi32>
    %286 = arith.andi %2, %285 : vector<1x256xi32>
    %c0_i32_91 = arith.constant 0 : i32
    %287 = vector.broadcast %c0_i32_91 : i32 to vector<1x256xi32>
    %288 = arith.cmpi eq, %286, %287 : vector<1x256xi32>
    %c32_i32_92 = arith.constant 32 : i32
    %289 = vector.broadcast %c32_i32_92 : i32 to vector<1x256xi32>
    %290 = arith.andi %2, %289 : vector<1x256xi32>
    %c0_i32_93 = arith.constant 0 : i32
    %291 = vector.broadcast %c0_i32_93 : i32 to vector<1x256xi32>
    %292 = arith.cmpi eq, %290, %291 : vector<1x256xi32>
    %293 = arith.xori %292, %288 : vector<1x256xi1>
    %cst_94 = arith.constant dense<true> : vector<1x256xi1>
    %294 = arith.xori %293, %cst_94 : vector<1x256xi1>
    %295 = vector.shape_cast %288 : vector<1x256xi1> to vector<1x256xi1>
    %296 = vector.broadcast %295 : vector<1x256xi1> to vector<8x256xi1>
    %297 = arith.select %296, %283, %284 : vector<8x256xi1>, vector<8x256xf32>
    %298 = arith.minimumf %282, %297 : vector<8x256xf32>
    %299 = arith.maximumf %282, %297 : vector<8x256xf32>
    %300 = vector.shape_cast %294 : vector<1x256xi1> to vector<1x256xi1>
    %301 = vector.broadcast %300 : vector<1x256xi1> to vector<8x256xi1>
    %302 = arith.select %301, %298, %299 : vector<8x256xi1>, vector<8x256xf32>
    %c224_i32 = arith.constant 224 : i32
    %303 = tpu.dynamic_rotate %302 by %c224_i32 dim 1 : vector<8x256xf32>, i32 -> vector<8x256xf32>
    %c32_i32_95 = arith.constant 32 : i32
    %304 = tpu.dynamic_rotate %302 by %c32_i32_95 dim 1 : vector<8x256xf32>, i32 -> vector<8x256xf32>
    %c32_i32_96 = arith.constant 32 : i32
    %305 = vector.broadcast %c32_i32_96 : i32 to vector<1x256xi32>
    %306 = arith.andi %2, %305 : vector<1x256xi32>
    %c0_i32_97 = arith.constant 0 : i32
    %307 = vector.broadcast %c0_i32_97 : i32 to vector<1x256xi32>
    %308 = arith.cmpi eq, %306, %307 : vector<1x256xi32>
    %c64_i32 = arith.constant 64 : i32
    %309 = vector.broadcast %c64_i32 : i32 to vector<1x256xi32>
    %310 = arith.andi %2, %309 : vector<1x256xi32>
    %c0_i32_98 = arith.constant 0 : i32
    %311 = vector.broadcast %c0_i32_98 : i32 to vector<1x256xi32>
    %312 = arith.cmpi eq, %310, %311 : vector<1x256xi32>
    %313 = arith.xori %312, %308 : vector<1x256xi1>
    %cst_99 = arith.constant dense<true> : vector<1x256xi1>
    %314 = arith.xori %313, %cst_99 : vector<1x256xi1>
    %315 = vector.shape_cast %308 : vector<1x256xi1> to vector<1x256xi1>
    %316 = vector.broadcast %315 : vector<1x256xi1> to vector<8x256xi1>
    %317 = arith.select %316, %303, %304 : vector<8x256xi1>, vector<8x256xf32>
    %318 = arith.minimumf %302, %317 : vector<8x256xf32>
    %319 = arith.maximumf %302, %317 : vector<8x256xf32>
    %320 = vector.shape_cast %314 : vector<1x256xi1> to vector<1x256xi1>
    %321 = vector.broadcast %320 : vector<1x256xi1> to vector<8x256xi1>
    %322 = arith.select %321, %318, %319 : vector<8x256xi1>, vector<8x256xf32>
    %c240_i32_100 = arith.constant 240 : i32
    %323 = tpu.dynamic_rotate %322 by %c240_i32_100 dim 1 : vector<8x256xf32>, i32 -> vector<8x256xf32>
    %c16_i32_101 = arith.constant 16 : i32
    %324 = tpu.dynamic_rotate %322 by %c16_i32_101 dim 1 : vector<8x256xf32>, i32 -> vector<8x256xf32>
    %c16_i32_102 = arith.constant 16 : i32
    %325 = vector.broadcast %c16_i32_102 : i32 to vector<1x256xi32>
    %326 = arith.andi %2, %325 : vector<1x256xi32>
    %c0_i32_103 = arith.constant 0 : i32
    %327 = vector.broadcast %c0_i32_103 : i32 to vector<1x256xi32>
    %328 = arith.cmpi eq, %326, %327 : vector<1x256xi32>
    %c64_i32_104 = arith.constant 64 : i32
    %329 = vector.broadcast %c64_i32_104 : i32 to vector<1x256xi32>
    %330 = arith.andi %2, %329 : vector<1x256xi32>
    %c0_i32_105 = arith.constant 0 : i32
    %331 = vector.broadcast %c0_i32_105 : i32 to vector<1x256xi32>
    %332 = arith.cmpi eq, %330, %331 : vector<1x256xi32>
    %333 = arith.xori %332, %328 : vector<1x256xi1>
    %cst_106 = arith.constant dense<true> : vector<1x256xi1>
    %334 = arith.xori %333, %cst_106 : vector<1x256xi1>
    %335 = vector.shape_cast %328 : vector<1x256xi1> to vector<1x256xi1>
    %336 = vector.broadcast %335 : vector<1x256xi1> to vector<8x256xi1>
    %337 = arith.select %336, %323, %324 : vector<8x256xi1>, vector<8x256xf32>
    %338 = arith.minimumf %322, %337 : vector<8x256xf32>
    %339 = arith.maximumf %322, %337 : vector<8x256xf32>
    %340 = vector.shape_cast %334 : vector<1x256xi1> to vector<1x256xi1>
    %341 = vector.broadcast %340 : vector<1x256xi1> to vector<8x256xi1>
    %342 = arith.select %341, %338, %339 : vector<8x256xi1>, vector<8x256xf32>
    %c248_i32_107 = arith.constant 248 : i32
    %343 = tpu.dynamic_rotate %342 by %c248_i32_107 dim 1 : vector<8x256xf32>, i32 -> vector<8x256xf32>
    %c8_i32_108 = arith.constant 8 : i32
    %344 = tpu.dynamic_rotate %342 by %c8_i32_108 dim 1 : vector<8x256xf32>, i32 -> vector<8x256xf32>
    %c8_i32_109 = arith.constant 8 : i32
    %345 = vector.broadcast %c8_i32_109 : i32 to vector<1x256xi32>
    %346 = arith.andi %2, %345 : vector<1x256xi32>
    %c0_i32_110 = arith.constant 0 : i32
    %347 = vector.broadcast %c0_i32_110 : i32 to vector<1x256xi32>
    %348 = arith.cmpi eq, %346, %347 : vector<1x256xi32>
    %c64_i32_111 = arith.constant 64 : i32
    %349 = vector.broadcast %c64_i32_111 : i32 to vector<1x256xi32>
    %350 = arith.andi %2, %349 : vector<1x256xi32>
    %c0_i32_112 = arith.constant 0 : i32
    %351 = vector.broadcast %c0_i32_112 : i32 to vector<1x256xi32>
    %352 = arith.cmpi eq, %350, %351 : vector<1x256xi32>
    %353 = arith.xori %352, %348 : vector<1x256xi1>
    %cst_113 = arith.constant dense<true> : vector<1x256xi1>
    %354 = arith.xori %353, %cst_113 : vector<1x256xi1>
    %355 = vector.shape_cast %348 : vector<1x256xi1> to vector<1x256xi1>
    %356 = vector.broadcast %355 : vector<1x256xi1> to vector<8x256xi1>
    %357 = arith.select %356, %343, %344 : vector<8x256xi1>, vector<8x256xf32>
    %358 = arith.minimumf %342, %357 : vector<8x256xf32>
    %359 = arith.maximumf %342, %357 : vector<8x256xf32>
    %360 = vector.shape_cast %354 : vector<1x256xi1> to vector<1x256xi1>
    %361 = vector.broadcast %360 : vector<1x256xi1> to vector<8x256xi1>
    %362 = arith.select %361, %358, %359 : vector<8x256xi1>, vector<8x256xf32>
    %c252_i32_114 = arith.constant 252 : i32
    %363 = tpu.dynamic_rotate %362 by %c252_i32_114 dim 1 : vector<8x256xf32>, i32 -> vector<8x256xf32>
    %c4_i32_115 = arith.constant 4 : i32
    %364 = tpu.dynamic_rotate %362 by %c4_i32_115 dim 1 : vector<8x256xf32>, i32 -> vector<8x256xf32>
    %c4_i32_116 = arith.constant 4 : i32
    %365 = vector.broadcast %c4_i32_116 : i32 to vector<1x256xi32>
    %366 = arith.andi %2, %365 : vector<1x256xi32>
    %c0_i32_117 = arith.constant 0 : i32
    %367 = vector.broadcast %c0_i32_117 : i32 to vector<1x256xi32>
    %368 = arith.cmpi eq, %366, %367 : vector<1x256xi32>
    %c64_i32_118 = arith.constant 64 : i32
    %369 = vector.broadcast %c64_i32_118 : i32 to vector<1x256xi32>
    %370 = arith.andi %2, %369 : vector<1x256xi32>
    %c0_i32_119 = arith.constant 0 : i32
    %371 = vector.broadcast %c0_i32_119 : i32 to vector<1x256xi32>
    %372 = arith.cmpi eq, %370, %371 : vector<1x256xi32>
    %373 = arith.xori %372, %368 : vector<1x256xi1>
    %cst_120 = arith.constant dense<true> : vector<1x256xi1>
    %374 = arith.xori %373, %cst_120 : vector<1x256xi1>
    %375 = vector.shape_cast %368 : vector<1x256xi1> to vector<1x256xi1>
    %376 = vector.broadcast %375 : vector<1x256xi1> to vector<8x256xi1>
    %377 = arith.select %376, %363, %364 : vector<8x256xi1>, vector<8x256xf32>
    %378 = arith.minimumf %362, %377 : vector<8x256xf32>
    %379 = arith.maximumf %362, %377 : vector<8x256xf32>
    %380 = vector.shape_cast %374 : vector<1x256xi1> to vector<1x256xi1>
    %381 = vector.broadcast %380 : vector<1x256xi1> to vector<8x256xi1>
    %382 = arith.select %381, %378, %379 : vector<8x256xi1>, vector<8x256xf32>
    %c254_i32_121 = arith.constant 254 : i32
    %383 = tpu.dynamic_rotate %382 by %c254_i32_121 dim 1 : vector<8x256xf32>, i32 -> vector<8x256xf32>
    %c2_i32_122 = arith.constant 2 : i32
    %384 = tpu.dynamic_rotate %382 by %c2_i32_122 dim 1 : vector<8x256xf32>, i32 -> vector<8x256xf32>
    %c2_i32_123 = arith.constant 2 : i32
    %385 = vector.broadcast %c2_i32_123 : i32 to vector<1x256xi32>
    %386 = arith.andi %2, %385 : vector<1x256xi32>
    %c0_i32_124 = arith.constant 0 : i32
    %387 = vector.broadcast %c0_i32_124 : i32 to vector<1x256xi32>
    %388 = arith.cmpi eq, %386, %387 : vector<1x256xi32>
    %c64_i32_125 = arith.constant 64 : i32
    %389 = vector.broadcast %c64_i32_125 : i32 to vector<1x256xi32>
    %390 = arith.andi %2, %389 : vector<1x256xi32>
    %c0_i32_126 = arith.constant 0 : i32
    %391 = vector.broadcast %c0_i32_126 : i32 to vector<1x256xi32>
    %392 = arith.cmpi eq, %390, %391 : vector<1x256xi32>
    %393 = arith.xori %392, %388 : vector<1x256xi1>
    %cst_127 = arith.constant dense<true> : vector<1x256xi1>
    %394 = arith.xori %393, %cst_127 : vector<1x256xi1>
    %395 = vector.shape_cast %388 : vector<1x256xi1> to vector<1x256xi1>
    %396 = vector.broadcast %395 : vector<1x256xi1> to vector<8x256xi1>
    %397 = arith.select %396, %383, %384 : vector<8x256xi1>, vector<8x256xf32>
    %398 = arith.minimumf %382, %397 : vector<8x256xf32>
    %399 = arith.maximumf %382, %397 : vector<8x256xf32>
    %400 = vector.shape_cast %394 : vector<1x256xi1> to vector<1x256xi1>
    %401 = vector.broadcast %400 : vector<1x256xi1> to vector<8x256xi1>
    %402 = arith.select %401, %398, %399 : vector<8x256xi1>, vector<8x256xf32>
    %c255_i32_128 = arith.constant 255 : i32
    %403 = tpu.dynamic_rotate %402 by %c255_i32_128 dim 1 : vector<8x256xf32>, i32 -> vector<8x256xf32>
    %c1_i32_129 = arith.constant 1 : i32
    %404 = tpu.dynamic_rotate %402 by %c1_i32_129 dim 1 : vector<8x256xf32>, i32 -> vector<8x256xf32>
    %c1_i32_130 = arith.constant 1 : i32
    %405 = vector.broadcast %c1_i32_130 : i32 to vector<1x256xi32>
    %406 = arith.andi %2, %405 : vector<1x256xi32>
    %c0_i32_131 = arith.constant 0 : i32
    %407 = vector.broadcast %c0_i32_131 : i32 to vector<1x256xi32>
    %408 = arith.cmpi eq, %406, %407 : vector<1x256xi32>
    %c64_i32_132 = arith.constant 64 : i32
    %409 = vector.broadcast %c64_i32_132 : i32 to vector<1x256xi32>
    %410 = arith.andi %2, %409 : vector<1x256xi32>
    %c0_i32_133 = arith.constant 0 : i32
    %411 = vector.broadcast %c0_i32_133 : i32 to vector<1x256xi32>
    %412 = arith.cmpi eq, %410, %411 : vector<1x256xi32>
    %413 = arith.xori %412, %408 : vector<1x256xi1>
    %cst_134 = arith.constant dense<true> : vector<1x256xi1>
    %414 = arith.xori %413, %cst_134 : vector<1x256xi1>
    %415 = vector.shape_cast %408 : vector<1x256xi1> to vector<1x256xi1>
    %416 = vector.broadcast %415 : vector<1x256xi1> to vector<8x256xi1>
    %417 = arith.select %416, %403, %404 : vector<8x256xi1>, vector<8x256xf32>
    %418 = arith.minimumf %402, %417 : vector<8x256xf32>
    %419 = arith.maximumf %402, %417 : vector<8x256xf32>
    %420 = vector.shape_cast %414 : vector<1x256xi1> to vector<1x256xi1>
    %421 = vector.broadcast %420 : vector<1x256xi1> to vector<8x256xi1>
    %422 = arith.select %421, %418, %419 : vector<8x256xi1>, vector<8x256xf32>
    %c192_i32 = arith.constant 192 : i32
    %423 = tpu.dynamic_rotate %422 by %c192_i32 dim 1 : vector<8x256xf32>, i32 -> vector<8x256xf32>
    %c64_i32_135 = arith.constant 64 : i32
    %424 = tpu.dynamic_rotate %422 by %c64_i32_135 dim 1 : vector<8x256xf32>, i32 -> vector<8x256xf32>
    %c64_i32_136 = arith.constant 64 : i32
    %425 = vector.broadcast %c64_i32_136 : i32 to vector<1x256xi32>
    %426 = arith.andi %2, %425 : vector<1x256xi32>
    %c0_i32_137 = arith.constant 0 : i32
    %427 = vector.broadcast %c0_i32_137 : i32 to vector<1x256xi32>
    %428 = arith.cmpi eq, %426, %427 : vector<1x256xi32>
    %c128_i32 = arith.constant 128 : i32
    %429 = vector.broadcast %c128_i32 : i32 to vector<1x256xi32>
    %430 = arith.andi %2, %429 : vector<1x256xi32>
    %c0_i32_138 = arith.constant 0 : i32
    %431 = vector.broadcast %c0_i32_138 : i32 to vector<1x256xi32>
    %432 = arith.cmpi eq, %430, %431 : vector<1x256xi32>
    %433 = arith.xori %432, %428 : vector<1x256xi1>
    %cst_139 = arith.constant dense<true> : vector<1x256xi1>
    %434 = arith.xori %433, %cst_139 : vector<1x256xi1>
    %435 = vector.shape_cast %428 : vector<1x256xi1> to vector<1x256xi1>
    %436 = vector.broadcast %435 : vector<1x256xi1> to vector<8x256xi1>
    %437 = arith.select %436, %423, %424 : vector<8x256xi1>, vector<8x256xf32>
    %438 = arith.minimumf %422, %437 : vector<8x256xf32>
    %439 = arith.maximumf %422, %437 : vector<8x256xf32>
    %440 = vector.shape_cast %434 : vector<1x256xi1> to vector<1x256xi1>
    %441 = vector.broadcast %440 : vector<1x256xi1> to vector<8x256xi1>
    %442 = arith.select %441, %438, %439 : vector<8x256xi1>, vector<8x256xf32>
    %c224_i32_140 = arith.constant 224 : i32
    %443 = tpu.dynamic_rotate %442 by %c224_i32_140 dim 1 : vector<8x256xf32>, i32 -> vector<8x256xf32>
    %c32_i32_141 = arith.constant 32 : i32
    %444 = tpu.dynamic_rotate %442 by %c32_i32_141 dim 1 : vector<8x256xf32>, i32 -> vector<8x256xf32>
    %c32_i32_142 = arith.constant 32 : i32
    %445 = vector.broadcast %c32_i32_142 : i32 to vector<1x256xi32>
    %446 = arith.andi %2, %445 : vector<1x256xi32>
    %c0_i32_143 = arith.constant 0 : i32
    %447 = vector.broadcast %c0_i32_143 : i32 to vector<1x256xi32>
    %448 = arith.cmpi eq, %446, %447 : vector<1x256xi32>
    %c128_i32_144 = arith.constant 128 : i32
    %449 = vector.broadcast %c128_i32_144 : i32 to vector<1x256xi32>
    %450 = arith.andi %2, %449 : vector<1x256xi32>
    %c0_i32_145 = arith.constant 0 : i32
    %451 = vector.broadcast %c0_i32_145 : i32 to vector<1x256xi32>
    %452 = arith.cmpi eq, %450, %451 : vector<1x256xi32>
    %453 = arith.xori %452, %448 : vector<1x256xi1>
    %cst_146 = arith.constant dense<true> : vector<1x256xi1>
    %454 = arith.xori %453, %cst_146 : vector<1x256xi1>
    %455 = vector.shape_cast %448 : vector<1x256xi1> to vector<1x256xi1>
    %456 = vector.broadcast %455 : vector<1x256xi1> to vector<8x256xi1>
    %457 = arith.select %456, %443, %444 : vector<8x256xi1>, vector<8x256xf32>
    %458 = arith.minimumf %442, %457 : vector<8x256xf32>
    %459 = arith.maximumf %442, %457 : vector<8x256xf32>
    %460 = vector.shape_cast %454 : vector<1x256xi1> to vector<1x256xi1>
    %461 = vector.broadcast %460 : vector<1x256xi1> to vector<8x256xi1>
    %462 = arith.select %461, %458, %459 : vector<8x256xi1>, vector<8x256xf32>
    %c240_i32_147 = arith.constant 240 : i32
    %463 = tpu.dynamic_rotate %462 by %c240_i32_147 dim 1 : vector<8x256xf32>, i32 -> vector<8x256xf32>
    %c16_i32_148 = arith.constant 16 : i32
    %464 = tpu.dynamic_rotate %462 by %c16_i32_148 dim 1 : vector<8x256xf32>, i32 -> vector<8x256xf32>
    %c16_i32_149 = arith.constant 16 : i32
    %465 = vector.broadcast %c16_i32_149 : i32 to vector<1x256xi32>
    %466 = arith.andi %2, %465 : vector<1x256xi32>
    %c0_i32_150 = arith.constant 0 : i32
    %467 = vector.broadcast %c0_i32_150 : i32 to vector<1x256xi32>
    %468 = arith.cmpi eq, %466, %467 : vector<1x256xi32>
    %c128_i32_151 = arith.constant 128 : i32
    %469 = vector.broadcast %c128_i32_151 : i32 to vector<1x256xi32>
    %470 = arith.andi %2, %469 : vector<1x256xi32>
    %c0_i32_152 = arith.constant 0 : i32
    %471 = vector.broadcast %c0_i32_152 : i32 to vector<1x256xi32>
    %472 = arith.cmpi eq, %470, %471 : vector<1x256xi32>
    %473 = arith.xori %472, %468 : vector<1x256xi1>
    %cst_153 = arith.constant dense<true> : vector<1x256xi1>
    %474 = arith.xori %473, %cst_153 : vector<1x256xi1>
    %475 = vector.shape_cast %468 : vector<1x256xi1> to vector<1x256xi1>
    %476 = vector.broadcast %475 : vector<1x256xi1> to vector<8x256xi1>
    %477 = arith.select %476, %463, %464 : vector<8x256xi1>, vector<8x256xf32>
    %478 = arith.minimumf %462, %477 : vector<8x256xf32>
    %479 = arith.maximumf %462, %477 : vector<8x256xf32>
    %480 = vector.shape_cast %474 : vector<1x256xi1> to vector<1x256xi1>
    %481 = vector.broadcast %480 : vector<1x256xi1> to vector<8x256xi1>
    %482 = arith.select %481, %478, %479 : vector<8x256xi1>, vector<8x256xf32>
    %c248_i32_154 = arith.constant 248 : i32
    %483 = tpu.dynamic_rotate %482 by %c248_i32_154 dim 1 : vector<8x256xf32>, i32 -> vector<8x256xf32>
    %c8_i32_155 = arith.constant 8 : i32
    %484 = tpu.dynamic_rotate %482 by %c8_i32_155 dim 1 : vector<8x256xf32>, i32 -> vector<8x256xf32>
    %c8_i32_156 = arith.constant 8 : i32
    %485 = vector.broadcast %c8_i32_156 : i32 to vector<1x256xi32>
    %486 = arith.andi %2, %485 : vector<1x256xi32>
    %c0_i32_157 = arith.constant 0 : i32
    %487 = vector.broadcast %c0_i32_157 : i32 to vector<1x256xi32>
    %488 = arith.cmpi eq, %486, %487 : vector<1x256xi32>
    %c128_i32_158 = arith.constant 128 : i32
    %489 = vector.broadcast %c128_i32_158 : i32 to vector<1x256xi32>
    %490 = arith.andi %2, %489 : vector<1x256xi32>
    %c0_i32_159 = arith.constant 0 : i32
    %491 = vector.broadcast %c0_i32_159 : i32 to vector<1x256xi32>
    %492 = arith.cmpi eq, %490, %491 : vector<1x256xi32>
    %493 = arith.xori %492, %488 : vector<1x256xi1>
    %cst_160 = arith.constant dense<true> : vector<1x256xi1>
    %494 = arith.xori %493, %cst_160 : vector<1x256xi1>
    %495 = vector.shape_cast %488 : vector<1x256xi1> to vector<1x256xi1>
    %496 = vector.broadcast %495 : vector<1x256xi1> to vector<8x256xi1>
    %497 = arith.select %496, %483, %484 : vector<8x256xi1>, vector<8x256xf32>
    %498 = arith.minimumf %482, %497 : vector<8x256xf32>
    %499 = arith.maximumf %482, %497 : vector<8x256xf32>
    %500 = vector.shape_cast %494 : vector<1x256xi1> to vector<1x256xi1>
    %501 = vector.broadcast %500 : vector<1x256xi1> to vector<8x256xi1>
    %502 = arith.select %501, %498, %499 : vector<8x256xi1>, vector<8x256xf32>
    %c252_i32_161 = arith.constant 252 : i32
    %503 = tpu.dynamic_rotate %502 by %c252_i32_161 dim 1 : vector<8x256xf32>, i32 -> vector<8x256xf32>
    %c4_i32_162 = arith.constant 4 : i32
    %504 = tpu.dynamic_rotate %502 by %c4_i32_162 dim 1 : vector<8x256xf32>, i32 -> vector<8x256xf32>
    %c4_i32_163 = arith.constant 4 : i32
    %505 = vector.broadcast %c4_i32_163 : i32 to vector<1x256xi32>
    %506 = arith.andi %2, %505 : vector<1x256xi32>
    %c0_i32_164 = arith.constant 0 : i32
    %507 = vector.broadcast %c0_i32_164 : i32 to vector<1x256xi32>
    %508 = arith.cmpi eq, %506, %507 : vector<1x256xi32>
    %c128_i32_165 = arith.constant 128 : i32
    %509 = vector.broadcast %c128_i32_165 : i32 to vector<1x256xi32>
    %510 = arith.andi %2, %509 : vector<1x256xi32>
    %c0_i32_166 = arith.constant 0 : i32
    %511 = vector.broadcast %c0_i32_166 : i32 to vector<1x256xi32>
    %512 = arith.cmpi eq, %510, %511 : vector<1x256xi32>
    %513 = arith.xori %512, %508 : vector<1x256xi1>
    %cst_167 = arith.constant dense<true> : vector<1x256xi1>
    %514 = arith.xori %513, %cst_167 : vector<1x256xi1>
    %515 = vector.shape_cast %508 : vector<1x256xi1> to vector<1x256xi1>
    %516 = vector.broadcast %515 : vector<1x256xi1> to vector<8x256xi1>
    %517 = arith.select %516, %503, %504 : vector<8x256xi1>, vector<8x256xf32>
    %518 = arith.minimumf %502, %517 : vector<8x256xf32>
    %519 = arith.maximumf %502, %517 : vector<8x256xf32>
    %520 = vector.shape_cast %514 : vector<1x256xi1> to vector<1x256xi1>
    %521 = vector.broadcast %520 : vector<1x256xi1> to vector<8x256xi1>
    %522 = arith.select %521, %518, %519 : vector<8x256xi1>, vector<8x256xf32>
    %c254_i32_168 = arith.constant 254 : i32
    %523 = tpu.dynamic_rotate %522 by %c254_i32_168 dim 1 : vector<8x256xf32>, i32 -> vector<8x256xf32>
    %c2_i32_169 = arith.constant 2 : i32
    %524 = tpu.dynamic_rotate %522 by %c2_i32_169 dim 1 : vector<8x256xf32>, i32 -> vector<8x256xf32>
    %c2_i32_170 = arith.constant 2 : i32
    %525 = vector.broadcast %c2_i32_170 : i32 to vector<1x256xi32>
    %526 = arith.andi %2, %525 : vector<1x256xi32>
    %c0_i32_171 = arith.constant 0 : i32
    %527 = vector.broadcast %c0_i32_171 : i32 to vector<1x256xi32>
    %528 = arith.cmpi eq, %526, %527 : vector<1x256xi32>
    %c128_i32_172 = arith.constant 128 : i32
    %529 = vector.broadcast %c128_i32_172 : i32 to vector<1x256xi32>
    %530 = arith.andi %2, %529 : vector<1x256xi32>
    %c0_i32_173 = arith.constant 0 : i32
    %531 = vector.broadcast %c0_i32_173 : i32 to vector<1x256xi32>
    %532 = arith.cmpi eq, %530, %531 : vector<1x256xi32>
    %533 = arith.xori %532, %528 : vector<1x256xi1>
    %cst_174 = arith.constant dense<true> : vector<1x256xi1>
    %534 = arith.xori %533, %cst_174 : vector<1x256xi1>
    %535 = vector.shape_cast %528 : vector<1x256xi1> to vector<1x256xi1>
    %536 = vector.broadcast %535 : vector<1x256xi1> to vector<8x256xi1>
    %537 = arith.select %536, %523, %524 : vector<8x256xi1>, vector<8x256xf32>
    %538 = arith.minimumf %522, %537 : vector<8x256xf32>
    %539 = arith.maximumf %522, %537 : vector<8x256xf32>
    %540 = vector.shape_cast %534 : vector<1x256xi1> to vector<1x256xi1>
    %541 = vector.broadcast %540 : vector<1x256xi1> to vector<8x256xi1>
    %542 = arith.select %541, %538, %539 : vector<8x256xi1>, vector<8x256xf32>
    %c255_i32_175 = arith.constant 255 : i32
    %543 = tpu.dynamic_rotate %542 by %c255_i32_175 dim 1 : vector<8x256xf32>, i32 -> vector<8x256xf32>
    %c1_i32_176 = arith.constant 1 : i32
    %544 = tpu.dynamic_rotate %542 by %c1_i32_176 dim 1 : vector<8x256xf32>, i32 -> vector<8x256xf32>
    %c1_i32_177 = arith.constant 1 : i32
    %545 = vector.broadcast %c1_i32_177 : i32 to vector<1x256xi32>
    %546 = arith.andi %2, %545 : vector<1x256xi32>
    %c0_i32_178 = arith.constant 0 : i32
    %547 = vector.broadcast %c0_i32_178 : i32 to vector<1x256xi32>
    %548 = arith.cmpi eq, %546, %547 : vector<1x256xi32>
    %c128_i32_179 = arith.constant 128 : i32
    %549 = vector.broadcast %c128_i32_179 : i32 to vector<1x256xi32>
    %550 = arith.andi %2, %549 : vector<1x256xi32>
    %c0_i32_180 = arith.constant 0 : i32
    %551 = vector.broadcast %c0_i32_180 : i32 to vector<1x256xi32>
    %552 = arith.cmpi eq, %550, %551 : vector<1x256xi32>
    %553 = arith.xori %552, %548 : vector<1x256xi1>
    %cst_181 = arith.constant dense<true> : vector<1x256xi1>
    %554 = arith.xori %553, %cst_181 : vector<1x256xi1>
    %555 = vector.shape_cast %548 : vector<1x256xi1> to vector<1x256xi1>
    %556 = vector.broadcast %555 : vector<1x256xi1> to vector<8x256xi1>
    %557 = arith.select %556, %543, %544 : vector<8x256xi1>, vector<8x256xf32>
    %558 = arith.minimumf %542, %557 : vector<8x256xf32>
    %559 = arith.maximumf %542, %557 : vector<8x256xf32>
    %560 = vector.shape_cast %554 : vector<1x256xi1> to vector<1x256xi1>
    %561 = vector.broadcast %560 : vector<1x256xi1> to vector<8x256xi1>
    %562 = arith.select %561, %558, %559 : vector<8x256xi1>, vector<8x256xf32>
    %c128_i32_182 = arith.constant 128 : i32
    %563 = tpu.dynamic_rotate %562 by %c128_i32_182 dim 1 : vector<8x256xf32>, i32 -> vector<8x256xf32>
    %c128_i32_183 = arith.constant 128 : i32
    %564 = tpu.dynamic_rotate %562 by %c128_i32_183 dim 1 : vector<8x256xf32>, i32 -> vector<8x256xf32>
    %c128_i32_184 = arith.constant 128 : i32
    %565 = vector.broadcast %c128_i32_184 : i32 to vector<1x256xi32>
    %566 = arith.andi %2, %565 : vector<1x256xi32>
    %c0_i32_185 = arith.constant 0 : i32
    %567 = vector.broadcast %c0_i32_185 : i32 to vector<1x256xi32>
    %568 = arith.cmpi eq, %566, %567 : vector<1x256xi32>
    %c256_i32 = arith.constant 256 : i32
    %569 = vector.broadcast %c256_i32 : i32 to vector<1x256xi32>
    %570 = arith.andi %2, %569 : vector<1x256xi32>
    %c0_i32_186 = arith.constant 0 : i32
    %571 = vector.broadcast %c0_i32_186 : i32 to vector<1x256xi32>
    %572 = arith.cmpi eq, %570, %571 : vector<1x256xi32>
    %573 = arith.xori %572, %568 : vector<1x256xi1>
    %cst_187 = arith.constant dense<true> : vector<1x256xi1>
    %574 = arith.xori %573, %cst_187 : vector<1x256xi1>
    %575 = vector.shape_cast %568 : vector<1x256xi1> to vector<1x256xi1>
    %576 = vector.broadcast %575 : vector<1x256xi1> to vector<8x256xi1>
    %577 = arith.select %576, %563, %564 : vector<8x256xi1>, vector<8x256xf32>
    %578 = arith.minimumf %562, %577 : vector<8x256xf32>
    %579 = arith.maximumf %562, %577 : vector<8x256xf32>
    %580 = vector.shape_cast %574 : vector<1x256xi1> to vector<1x256xi1>
    %581 = vector.broadcast %580 : vector<1x256xi1> to vector<8x256xi1>
    %582 = arith.select %581, %578, %579 : vector<8x256xi1>, vector<8x256xf32>
    %c192_i32_188 = arith.constant 192 : i32
    %583 = tpu.dynamic_rotate %582 by %c192_i32_188 dim 1 : vector<8x256xf32>, i32 -> vector<8x256xf32>
    %c64_i32_189 = arith.constant 64 : i32
    %584 = tpu.dynamic_rotate %582 by %c64_i32_189 dim 1 : vector<8x256xf32>, i32 -> vector<8x256xf32>
    %c64_i32_190 = arith.constant 64 : i32
    %585 = vector.broadcast %c64_i32_190 : i32 to vector<1x256xi32>
    %586 = arith.andi %2, %585 : vector<1x256xi32>
    %c0_i32_191 = arith.constant 0 : i32
    %587 = vector.broadcast %c0_i32_191 : i32 to vector<1x256xi32>
    %588 = arith.cmpi eq, %586, %587 : vector<1x256xi32>
    %c256_i32_192 = arith.constant 256 : i32
    %589 = vector.broadcast %c256_i32_192 : i32 to vector<1x256xi32>
    %590 = arith.andi %2, %589 : vector<1x256xi32>
    %c0_i32_193 = arith.constant 0 : i32
    %591 = vector.broadcast %c0_i32_193 : i32 to vector<1x256xi32>
    %592 = arith.cmpi eq, %590, %591 : vector<1x256xi32>
    %593 = arith.xori %592, %588 : vector<1x256xi1>
    %cst_194 = arith.constant dense<true> : vector<1x256xi1>
    %594 = arith.xori %593, %cst_194 : vector<1x256xi1>
    %595 = vector.shape_cast %588 : vector<1x256xi1> to vector<1x256xi1>
    %596 = vector.broadcast %595 : vector<1x256xi1> to vector<8x256xi1>
    %597 = arith.select %596, %583, %584 : vector<8x256xi1>, vector<8x256xf32>
    %598 = arith.minimumf %582, %597 : vector<8x256xf32>
    %599 = arith.maximumf %582, %597 : vector<8x256xf32>
    %600 = vector.shape_cast %594 : vector<1x256xi1> to vector<1x256xi1>
    %601 = vector.broadcast %600 : vector<1x256xi1> to vector<8x256xi1>
    %602 = arith.select %601, %598, %599 : vector<8x256xi1>, vector<8x256xf32>
    %c224_i32_195 = arith.constant 224 : i32
    %603 = tpu.dynamic_rotate %602 by %c224_i32_195 dim 1 : vector<8x256xf32>, i32 -> vector<8x256xf32>
    %c32_i32_196 = arith.constant 32 : i32
    %604 = tpu.dynamic_rotate %602 by %c32_i32_196 dim 1 : vector<8x256xf32>, i32 -> vector<8x256xf32>
    %c32_i32_197 = arith.constant 32 : i32
    %605 = vector.broadcast %c32_i32_197 : i32 to vector<1x256xi32>
    %606 = arith.andi %2, %605 : vector<1x256xi32>
    %c0_i32_198 = arith.constant 0 : i32
    %607 = vector.broadcast %c0_i32_198 : i32 to vector<1x256xi32>
    %608 = arith.cmpi eq, %606, %607 : vector<1x256xi32>
    %c256_i32_199 = arith.constant 256 : i32
    %609 = vector.broadcast %c256_i32_199 : i32 to vector<1x256xi32>
    %610 = arith.andi %2, %609 : vector<1x256xi32>
    %c0_i32_200 = arith.constant 0 : i32
    %611 = vector.broadcast %c0_i32_200 : i32 to vector<1x256xi32>
    %612 = arith.cmpi eq, %610, %611 : vector<1x256xi32>
    %613 = arith.xori %612, %608 : vector<1x256xi1>
    %cst_201 = arith.constant dense<true> : vector<1x256xi1>
    %614 = arith.xori %613, %cst_201 : vector<1x256xi1>
    %615 = vector.shape_cast %608 : vector<1x256xi1> to vector<1x256xi1>
    %616 = vector.broadcast %615 : vector<1x256xi1> to vector<8x256xi1>
    %617 = arith.select %616, %603, %604 : vector<8x256xi1>, vector<8x256xf32>
    %618 = arith.minimumf %602, %617 : vector<8x256xf32>
    %619 = arith.maximumf %602, %617 : vector<8x256xf32>
    %620 = vector.shape_cast %614 : vector<1x256xi1> to vector<1x256xi1>
    %621 = vector.broadcast %620 : vector<1x256xi1> to vector<8x256xi1>
    %622 = arith.select %621, %618, %619 : vector<8x256xi1>, vector<8x256xf32>
    %c240_i32_202 = arith.constant 240 : i32
    %623 = tpu.dynamic_rotate %622 by %c240_i32_202 dim 1 : vector<8x256xf32>, i32 -> vector<8x256xf32>
    %c16_i32_203 = arith.constant 16 : i32
    %624 = tpu.dynamic_rotate %622 by %c16_i32_203 dim 1 : vector<8x256xf32>, i32 -> vector<8x256xf32>
    %c16_i32_204 = arith.constant 16 : i32
    %625 = vector.broadcast %c16_i32_204 : i32 to vector<1x256xi32>
    %626 = arith.andi %2, %625 : vector<1x256xi32>
    %c0_i32_205 = arith.constant 0 : i32
    %627 = vector.broadcast %c0_i32_205 : i32 to vector<1x256xi32>
    %628 = arith.cmpi eq, %626, %627 : vector<1x256xi32>
    %c256_i32_206 = arith.constant 256 : i32
    %629 = vector.broadcast %c256_i32_206 : i32 to vector<1x256xi32>
    %630 = arith.andi %2, %629 : vector<1x256xi32>
    %c0_i32_207 = arith.constant 0 : i32
    %631 = vector.broadcast %c0_i32_207 : i32 to vector<1x256xi32>
    %632 = arith.cmpi eq, %630, %631 : vector<1x256xi32>
    %633 = arith.xori %632, %628 : vector<1x256xi1>
    %cst_208 = arith.constant dense<true> : vector<1x256xi1>
    %634 = arith.xori %633, %cst_208 : vector<1x256xi1>
    %635 = vector.shape_cast %628 : vector<1x256xi1> to vector<1x256xi1>
    %636 = vector.broadcast %635 : vector<1x256xi1> to vector<8x256xi1>
    %637 = arith.select %636, %623, %624 : vector<8x256xi1>, vector<8x256xf32>
    %638 = arith.minimumf %622, %637 : vector<8x256xf32>
    %639 = arith.maximumf %622, %637 : vector<8x256xf32>
    %640 = vector.shape_cast %634 : vector<1x256xi1> to vector<1x256xi1>
    %641 = vector.broadcast %640 : vector<1x256xi1> to vector<8x256xi1>
    %642 = arith.select %641, %638, %639 : vector<8x256xi1>, vector<8x256xf32>
    %c248_i32_209 = arith.constant 248 : i32
    %643 = tpu.dynamic_rotate %642 by %c248_i32_209 dim 1 : vector<8x256xf32>, i32 -> vector<8x256xf32>
    %c8_i32_210 = arith.constant 8 : i32
    %644 = tpu.dynamic_rotate %642 by %c8_i32_210 dim 1 : vector<8x256xf32>, i32 -> vector<8x256xf32>
    %c8_i32_211 = arith.constant 8 : i32
    %645 = vector.broadcast %c8_i32_211 : i32 to vector<1x256xi32>
    %646 = arith.andi %2, %645 : vector<1x256xi32>
    %c0_i32_212 = arith.constant 0 : i32
    %647 = vector.broadcast %c0_i32_212 : i32 to vector<1x256xi32>
    %648 = arith.cmpi eq, %646, %647 : vector<1x256xi32>
    %c256_i32_213 = arith.constant 256 : i32
    %649 = vector.broadcast %c256_i32_213 : i32 to vector<1x256xi32>
    %650 = arith.andi %2, %649 : vector<1x256xi32>
    %c0_i32_214 = arith.constant 0 : i32
    %651 = vector.broadcast %c0_i32_214 : i32 to vector<1x256xi32>
    %652 = arith.cmpi eq, %650, %651 : vector<1x256xi32>
    %653 = arith.xori %652, %648 : vector<1x256xi1>
    %cst_215 = arith.constant dense<true> : vector<1x256xi1>
    %654 = arith.xori %653, %cst_215 : vector<1x256xi1>
    %655 = vector.shape_cast %648 : vector<1x256xi1> to vector<1x256xi1>
    %656 = vector.broadcast %655 : vector<1x256xi1> to vector<8x256xi1>
    %657 = arith.select %656, %643, %644 : vector<8x256xi1>, vector<8x256xf32>
    %658 = arith.minimumf %642, %657 : vector<8x256xf32>
    %659 = arith.maximumf %642, %657 : vector<8x256xf32>
    %660 = vector.shape_cast %654 : vector<1x256xi1> to vector<1x256xi1>
    %661 = vector.broadcast %660 : vector<1x256xi1> to vector<8x256xi1>
    %662 = arith.select %661, %658, %659 : vector<8x256xi1>, vector<8x256xf32>
    %c252_i32_216 = arith.constant 252 : i32
    %663 = tpu.dynamic_rotate %662 by %c252_i32_216 dim 1 : vector<8x256xf32>, i32 -> vector<8x256xf32>
    %c4_i32_217 = arith.constant 4 : i32
    %664 = tpu.dynamic_rotate %662 by %c4_i32_217 dim 1 : vector<8x256xf32>, i32 -> vector<8x256xf32>
    %c4_i32_218 = arith.constant 4 : i32
    %665 = vector.broadcast %c4_i32_218 : i32 to vector<1x256xi32>
    %666 = arith.andi %2, %665 : vector<1x256xi32>
    %c0_i32_219 = arith.constant 0 : i32
    %667 = vector.broadcast %c0_i32_219 : i32 to vector<1x256xi32>
    %668 = arith.cmpi eq, %666, %667 : vector<1x256xi32>
    %c256_i32_220 = arith.constant 256 : i32
    %669 = vector.broadcast %c256_i32_220 : i32 to vector<1x256xi32>
    %670 = arith.andi %2, %669 : vector<1x256xi32>
    %c0_i32_221 = arith.constant 0 : i32
    %671 = vector.broadcast %c0_i32_221 : i32 to vector<1x256xi32>
    %672 = arith.cmpi eq, %670, %671 : vector<1x256xi32>
    %673 = arith.xori %672, %668 : vector<1x256xi1>
    %cst_222 = arith.constant dense<true> : vector<1x256xi1>
    %674 = arith.xori %673, %cst_222 : vector<1x256xi1>
    %675 = vector.shape_cast %668 : vector<1x256xi1> to vector<1x256xi1>
    %676 = vector.broadcast %675 : vector<1x256xi1> to vector<8x256xi1>
    %677 = arith.select %676, %663, %664 : vector<8x256xi1>, vector<8x256xf32>
    %678 = arith.minimumf %662, %677 : vector<8x256xf32>
    %679 = arith.maximumf %662, %677 : vector<8x256xf32>
    %680 = vector.shape_cast %674 : vector<1x256xi1> to vector<1x256xi1>
    %681 = vector.broadcast %680 : vector<1x256xi1> to vector<8x256xi1>
    %682 = arith.select %681, %678, %679 : vector<8x256xi1>, vector<8x256xf32>
    %c254_i32_223 = arith.constant 254 : i32
    %683 = tpu.dynamic_rotate %682 by %c254_i32_223 dim 1 : vector<8x256xf32>, i32 -> vector<8x256xf32>
    %c2_i32_224 = arith.constant 2 : i32
    %684 = tpu.dynamic_rotate %682 by %c2_i32_224 dim 1 : vector<8x256xf32>, i32 -> vector<8x256xf32>
    %c2_i32_225 = arith.constant 2 : i32
    %685 = vector.broadcast %c2_i32_225 : i32 to vector<1x256xi32>
    %686 = arith.andi %2, %685 : vector<1x256xi32>
    %c0_i32_226 = arith.constant 0 : i32
    %687 = vector.broadcast %c0_i32_226 : i32 to vector<1x256xi32>
    %688 = arith.cmpi eq, %686, %687 : vector<1x256xi32>
    %c256_i32_227 = arith.constant 256 : i32
    %689 = vector.broadcast %c256_i32_227 : i32 to vector<1x256xi32>
    %690 = arith.andi %2, %689 : vector<1x256xi32>
    %c0_i32_228 = arith.constant 0 : i32
    %691 = vector.broadcast %c0_i32_228 : i32 to vector<1x256xi32>
    %692 = arith.cmpi eq, %690, %691 : vector<1x256xi32>
    %693 = arith.xori %692, %688 : vector<1x256xi1>
    %cst_229 = arith.constant dense<true> : vector<1x256xi1>
    %694 = arith.xori %693, %cst_229 : vector<1x256xi1>
    %695 = vector.shape_cast %688 : vector<1x256xi1> to vector<1x256xi1>
    %696 = vector.broadcast %695 : vector<1x256xi1> to vector<8x256xi1>
    %697 = arith.select %696, %683, %684 : vector<8x256xi1>, vector<8x256xf32>
    %698 = arith.minimumf %682, %697 : vector<8x256xf32>
    %699 = arith.maximumf %682, %697 : vector<8x256xf32>
    %700 = vector.shape_cast %694 : vector<1x256xi1> to vector<1x256xi1>
    %701 = vector.broadcast %700 : vector<1x256xi1> to vector<8x256xi1>
    %702 = arith.select %701, %698, %699 : vector<8x256xi1>, vector<8x256xf32>
    %c255_i32_230 = arith.constant 255 : i32
    %703 = tpu.dynamic_rotate %702 by %c255_i32_230 dim 1 : vector<8x256xf32>, i32 -> vector<8x256xf32>
    %c1_i32_231 = arith.constant 1 : i32
    %704 = tpu.dynamic_rotate %702 by %c1_i32_231 dim 1 : vector<8x256xf32>, i32 -> vector<8x256xf32>
    %c1_i32_232 = arith.constant 1 : i32
    %705 = vector.broadcast %c1_i32_232 : i32 to vector<1x256xi32>
    %706 = arith.andi %2, %705 : vector<1x256xi32>
    %c0_i32_233 = arith.constant 0 : i32
    %707 = vector.broadcast %c0_i32_233 : i32 to vector<1x256xi32>
    %708 = arith.cmpi eq, %706, %707 : vector<1x256xi32>
    %c256_i32_234 = arith.constant 256 : i32
    %709 = vector.broadcast %c256_i32_234 : i32 to vector<1x256xi32>
    %710 = arith.andi %2, %709 : vector<1x256xi32>
    %c0_i32_235 = arith.constant 0 : i32
    %711 = vector.broadcast %c0_i32_235 : i32 to vector<1x256xi32>
    %712 = arith.cmpi eq, %710, %711 : vector<1x256xi32>
    %713 = arith.xori %712, %708 : vector<1x256xi1>
    %cst_236 = arith.constant dense<true> : vector<1x256xi1>
    %714 = arith.xori %713, %cst_236 : vector<1x256xi1>
    %715 = vector.shape_cast %708 : vector<1x256xi1> to vector<1x256xi1>
    %716 = vector.broadcast %715 : vector<1x256xi1> to vector<8x256xi1>
    %717 = arith.select %716, %703, %704 : vector<8x256xi1>, vector<8x256xf32>
    %718 = arith.minimumf %702, %717 : vector<8x256xf32>
    %719 = arith.maximumf %702, %717 : vector<8x256xf32>
    %720 = vector.shape_cast %714 : vector<1x256xi1> to vector<1x256xi1>
    %721 = vector.broadcast %720 : vector<1x256xi1> to vector<8x256xi1>
    %722 = arith.select %721, %718, %719 : vector<8x256xi1>, vector<8x256xf32>
    %c0_237 = arith.constant 0 : index
    %c0_238 = arith.constant 0 : index
    %723 = vector.load %arg3[%c0_237, %c0_238] : memref<256x128xf32, #tpu.memory_space<vmem>>, vector<256x128xf32>
    %cst_239 = arith.constant dense<0.000000e+00> : vector<8x128xf32>
    %724 = tpu.matmul %722, %723, %cst_239 {dimension_numbers = #tpu.dot_dimension_numbers<[1], [0], [0], [1], [0, 0, 1, 1], [], []>, precision = #tpu.contract_precision<fp32>} : vector<8x256xf32>, vector<256x128xf32>, vector<8x128xf32> -> vector<8x128xf32>
    %725 = vector.extract_strided_slice %724 {offsets = [0, 0], sizes = [8, 1], strides = [1, 1]} : vector<8x128xf32> to vector<8x1xf32>
    %726 = vector.extract_strided_slice %722 {offsets = [0, 255], sizes = [8, 1], strides = [1, 1]} : vector<8x256xf32> to vector<8x1xf32>
    %cst_240 = arith.constant 0.000000e+00 : f32
    %727 = vector.broadcast %cst_240 : f32 to vector<8x1xf32>
    %728 = arith.cmpf one, %1, %727 : vector<8x1xf32>
    %729 = arith.select %728, %725, %726 : vector<8x1xi1>, vector<8x1xf32>
    %730 = math.log %729 : vector<8x1xf32>
    %cst_241 = arith.constant -1.000000e+02 : f32
    %731 = vector.broadcast %cst_241 : f32 to vector<8x1xf32>
    %732 = arith.maximumf %730, %731 : vector<8x1xf32>
    %cst_242 = arith.constant 1.000000e+00 : f32
    %733 = vector.broadcast %cst_242 : f32 to vector<8x1xf32>
    %734 = arith.subf %733, %729 : vector<8x1xf32>
    %735 = math.log %734 : vector<8x1xf32>
    %cst_243 = arith.constant -1.000000e+02 : f32
    %736 = vector.broadcast %cst_243 : f32 to vector<8x1xf32>
    %737 = arith.maximumf %735, %736 : vector<8x1xf32>
    %738 = arith.mulf %1, %732 : vector<8x1xf32>
    %cst_244 = arith.constant 1.000000e+00 : f32
    %739 = vector.broadcast %cst_244 : f32 to vector<8x1xf32>
    %740 = arith.subf %739, %1 : vector<8x1xf32>
    %741 = arith.mulf %740, %737 : vector<8x1xf32>
    %742 = arith.addf %738, %741 : vector<8x1xf32>
    %cst_245 = arith.constant 0.000000e+00 : f32
    %743 = vector.broadcast %cst_245 : f32 to vector<8x1xf32>
    %744 = arith.subf %743, %742 : vector<8x1xf32>
    %c0_246 = arith.constant 0 : index
    %c0_247 = arith.constant 0 : index
    %745 = vector.load %arg4[%c0_246, %c0_247] : memref<8x1xf32, #tpu.memory_space<vmem>>, vector<8x1xf32>
    tpu.vector_store %arg4[%c0_246, %c0_247], %744 {strides = array<i32>} : memref<8x1xf32, #tpu.memory_space<vmem>>, vector<8x1xf32>,
    return
  }
  func.func @transform_0(%arg0: i32) -> (i32, i32) {
    %c0_i32 = arith.constant 0 : i32
    %c0_i32_0 = arith.constant 0 : i32
    return %arg0, %c0_i32 : i32, i32
  }
  func.func @transform_1(%arg0: i32) -> (i32, i32) {
    %c0_i32 = arith.constant 0 : i32
    %c0_i32_0 = arith.constant 0 : i32
    return %arg0, %c0_i32 : i32, i32
  }
  func.func @transform_2(%arg0: i32) -> (i32, i32) {
    %c0_i32 = arith.constant 0 : i32
    %c0_i32_0 = arith.constant 0 : i32
    %c0_i32_1 = arith.constant 0 : i32
    return %c0_i32, %c0_i32_0 : i32, i32
  }
  func.func @transform_3(%arg0: i32) -> (i32, i32) {
    %c0_i32 = arith.constant 0 : i32
    %c0_i32_0 = arith.constant 0 : i32
    return %arg0, %c0_i32 : i32, i32
  }
}

</mosaic_0001>

<llo_original>
// kernel: tpu_custom_call.1
$region0: #{tpu_custom_call.1}
  #allocation0 [shape = 'u32[]', space=smem, size = 0x4, offset = 0x4, fixed_abs, tag = 'smem constant byte address 0x4 - core index']
  #allocation1 [shape = 'u32[144,128]{1,0:T(1,128)}', space=vmem, size = 0x12000, scoped, tag = 'internal scratch']
  %s0 = inlined_call_operand.hbm [shape: f32[8,256], index: 0, kind: input, shape index: {}]
  %s1 = inlined_call_operand.vmem [shape: f32[8,1], index: 1, kind: input, shape index: {}]
  %s2 = inlined_call_operand.hbm [shape: f32[256,128], index: 2, kind: input, shape index: {}]
  %s3 = inlined_call_operand.vmem [shape: f32[8,1], index: 3, kind: output, shape index: {}]
  %s4 = sld [smem:[#allocation0]]
  $region30: #{tpu_custom_call.1} parent=0
    _
  %s6 = ssub.s32 1, %s4
  %s7 = scalar_select 0, %s6, %s4
  $region1: #{tpu_custom_call.1} parent=0
    #allocation2 [shape = 'u8[8192]{0}', space=vmem, size = 0x2000, scoped, tag = 'input window, operand 0, single buffered']
    #allocation3 [shape = 's32[1]{0}', space=sflag, size = 0x4, scoped, tag = 'scoped memory for tpu_custom_call.1']
    #allocation4 [shape = 'u8[131072]{0}', space=vmem, size = 0x20000, scoped, tag = 'input window, operand 2, single buffered']
    #allocation5 [shape = 's32[1]{0}', space=sflag, size = 0x4, scoped, tag = 'scoped memory for tpu_custom_call.1']
    %8 = vsyncpa [#allocation3], 0
    %9 = vsyncpa [#allocation5], 0
    // Predicated region
    $region2: #{tpu_custom_call.1} parent=1 // pred_check
      _
    $region3: #{tpu_custom_call.1} parent=1 // pred_check_branch
      %11 = sbr.rel (0) target = $region5
    $region4: #{tpu_custom_call.1} parent=1 // pred_region
      %s13 = ssub.s32 256, 256
      %14 = vsyncadd [#allocation3], %s13
      %s16 = sshll.u32 [#allocation2], 4
      %s17 = int_to_ptr.vmem [resolvable:$true] %s16
      %19 = dma.hbm_to_vmem [thread:$0]  %s0, 256, %s17, [#allocation3]
    $region5: #{tpu_custom_call.1} parent=1 // pred_fallthru
      _
    // Predicated region
    $region6: #{tpu_custom_call.1} parent=1 // pred_check
      _
    $region7: #{tpu_custom_call.1} parent=1 // pred_check_branch
      %21 = sbr.rel (0) target = $region9
    $region8: #{tpu_custom_call.1} parent=1 // pred_region
      _
    $region9: #{tpu_custom_call.1} parent=1 // pred_fallthru
      _
    // Predicated region
    $region10: #{tpu_custom_call.1} parent=1 // pred_check
      _
    $region11: #{tpu_custom_call.1} parent=1 // pred_check_branch
      %23 = sbr.rel (0) target = $region13
    $region12: #{tpu_custom_call.1} parent=1 // pred_region
      %s25 = ssub.s32 4096, 4096
      %26 = vsyncadd [#allocation5], %s25
      %s27 = sshll.u32 [#allocation4], 4
      %s28 = int_to_ptr.vmem [resolvable:$true] %s27
      %33 = dma.hbm_to_vmem [thread:$0]  %s2, 4096, %s28, [#allocation5], 128, 128, 8
    $region13: #{tpu_custom_call.1} parent=1 // pred_fallthru
      _
    // Predicated region
    $region14: #{tpu_custom_call.1} parent=1 // pred_check
      _
    $region15: #{tpu_custom_call.1} parent=1 // pred_check_branch
      %35 = sbr.rel (0) target = $region17
    $region16: #{tpu_custom_call.1} parent=1 // pred_region
      %36 = dma.done [#allocation3], 256
    $region17: #{tpu_custom_call.1} parent=1 // pred_fallthru
      _
    // Predicated region
    $region18: #{tpu_custom_call.1} parent=1 // pred_check
      _
    $region19: #{tpu_custom_call.1} parent=1 // pred_check_branch
      %38 = sbr.rel (0) target = $region21
    $region20: #{tpu_custom_call.1} parent=1 // pred_region
      %39 = dma.done [#allocation5], 4096
    $region21: #{tpu_custom_call.1} parent=1 // pred_fallthru
      _
    %v40 = vld [vmem:[#allocation2] sm:$0xff]
    %v41 = vld [vmem:[#allocation2 + $0x8] sm:$0xff]
    %v42 = vld [vmem:[%s1] sm:$0xff]
    %v43 = vlaneseq
    %v44 = vand.u32 %v43, 127
    %v45 = vadd.s32 %v44, 128
    %46 = vrot.lane.b32.xlu0 %v40, 127
    %v47 = vpop.permute.xlu0 %46
    %48 = vrot.lane.b32.xlu0 %v41, 127
    %v49 = vpop.permute.xlu0 %48
    %vm50 = vcmp.lt.s32.totalorder %v44, 127
    %v51 = vsel %vm50, %v47, %v49
    %v52 = vsel %vm50, %v49, %v47
    %53 = vrot.lane.b32.xlu0 %v40, 1
    %v54 = vpop.permute.xlu0 %53
    %55 = vrot.lane.b32.xlu0 %v41, 1
    %v56 = vpop.permute.xlu0 %55
    %vm57 = vcmp.lt.s32.totalorder %v44, 1
    %v58 = vsel %vm57, %v54, %v56
    %v59 = vsel %vm57, %v56, %v54
    %v60 = vand.u32 %v44, 1
    %v61 = vand.u32 %v45, 1
    %vm62 = vcmp.eq.s32.totalorder %v60, 0
    %vm63 = vcmp.eq.s32.totalorder %v61, 0
    %v64 = vand.u32 %v44, 2
    %v65 = vand.u32 %v45, 2
    %vm66 = vcmp.eq.s32.totalorder %v64, 0
    %vm67 = vcmp.eq.s32.totalorder %v65, 0
    %vm68 = vmxor %vm66, %vm62
    %vm69 = vmxor %vm67, %vm63
    %vm70 = vmxor %vm68, 1
    %vm71 = vmxor %vm69, 1
    %v72 = vsel %vm62, 1, 0
    %v73 = vsel %vm63, 1, 0
    %vm74 = vcmp.eq.s32.totalorder %v72, 1
    %vm75 = vcmp.eq.s32.totalorder %v73, 1
    %v76 = vsel %vm74, %v51, %v59
    %v77 = vsel %vm75, %v52, %v58
    %v78 = vmin.f32 %v40, %v76
    %v79 = vmin.f32 %v41, %v77
    %v80 = vmax.f32 %v40, %v76
    %v81 = vmax.f32 %v41, %v77
    %v82 = vsel %vm70, 1, 0
    %v83 = vsel %vm71, 1, 0
    %vm84 = vcmp.eq.s32.totalorder %v82, 1
    %vm85 = vcmp.eq.s32.totalorder %v83, 1
    %v86 = vsel %vm84, %v78, %v80
    %v87 = vsel %vm85, %v79, %v81
    %88 = vrot.lane.b32.xlu0 %v86, 126
    %v89 = vpop.permute.xlu0 %88
    %90 = vrot.lane.b32.xlu0 %v87, 126
    %v91 = vpop.permute.xlu0 %90
    %vm92 = vcmp.lt.s32.totalorder %v44, 126
    %v93 = vsel %vm92, %v89, %v91
    %v94 = vsel %vm92, %v91, %v89
    %95 = vrot.lane.b32.xlu0 %v86, 2
    %v96 = vpop.permute.xlu0 %95
    %97 = vrot.lane.b32.xlu0 %v87, 2
    %v98 = vpop.permute.xlu0 %97
    %vm99 = vcmp.lt.s32.totalorder %v44, 2
    %v100 = vsel %vm99, %v96, %v98
    %v101 = vsel %vm99, %v98, %v96
    %v102 = vand.u32 %v44, 4
    %v103 = vand.u32 %v45, 4
    %vm104 = vcmp.eq.s32.totalorder %v102, 0
    %vm105 = vcmp.eq.s32.totalorder %v103, 0
    %vm106 = vmxor %vm104, %vm66
    %vm107 = vmxor %vm105, %vm67
    %vm108 = vmxor %vm106, 1
    %vm109 = vmxor %vm107, 1
    %v110 = vsel %vm66, 1, 0
    %v111 = vsel %vm67, 1, 0
    %vm112 = vcmp.eq.s32.totalorder %v110, 1
    %vm113 = vcmp.eq.s32.totalorder %v111, 1
    %v114 = vsel %vm112, %v93, %v101
    %v115 = vsel %vm113, %v94, %v100
    %v116 = vmin.f32 %v86, %v114
    %v117 = vmin.f32 %v87, %v115
    %v118 = vmax.f32 %v86, %v114
    %v119 = vmax.f32 %v87, %v115
    %v120 = vsel %vm108, 1, 0
    %v121 = vsel %vm109, 1, 0
    %vm122 = vcmp.eq.s32.totalorder %v120, 1
    %vm123 = vcmp.eq.s32.totalorder %v121, 1
    %v124 = vsel %vm122, %v116, %v118
    %v125 = vsel %vm123, %v117, %v119
    %126 = vrot.lane.b32.xlu0 %v124, 127
    %v127 = vpop.permute.xlu0 %126
    %128 = vrot.lane.b32.xlu0 %v125, 127
    %v129 = vpop.permute.xlu0 %128
    %v130 = vsel %vm50, %v127, %v129
    %v131 = vsel %vm50, %v129, %v127
    %132 = vrot.lane.b32.xlu0 %v124, 1
    %v133 = vpop.permute.xlu0 %132
    %134 = vrot.lane.b32.xlu0 %v125, 1
    %v135 = vpop.permute.xlu0 %134
    %v136 = vsel %vm57, %v133, %v135
    %v137 = vsel %vm57, %v135, %v133
    %vm138 = vmxor %vm104, %vm62
    %vm139 = vmxor %vm105, %vm63
    %vm140 = vmxor %vm138, 1
    %vm141 = vmxor %vm139, 1
    %v142 = vsel %vm74, %v130, %v137
    %v143 = vsel %vm75, %v131, %v136
    %v144 = vmin.f32 %v124, %v142
    %v145 = vmin.f32 %v125, %v143
    %v146 = vmax.f32 %v124, %v142
    %v147 = vmax.f32 %v125, %v143
    %v148 = vsel %vm140, 1, 0
    %v149 = vsel %vm141, 1, 0
    %vm150 = vcmp.eq.s32.totalorder %v148, 1
    %vm151 = vcmp.eq.s32.totalorder %v149, 1
    %v152 = vsel %vm150, %v144, %v146
    %v153 = vsel %vm151, %v145, %v147
    %154 = vrot.lane.b32.xlu0 %v152, 124
    %v155 = vpop.permute.xlu0 %154
    %156 = vrot.lane.b32.xlu0 %v153, 124
    %v157 = vpop.permute.xlu0 %156
    %vm158 = vcmp.lt.s32.totalorder %v44, 124
    %v159 = vsel %vm158, %v155, %v157
    %v160 = vsel %vm158, %v157, %v155
    %161 = vrot.lane.b32.xlu0 %v152, 4
    %v162 = vpop.permute.xlu0 %161
    %163 = vrot.lane.b32.xlu0 %v153, 4
    %v164 = vpop.permute.xlu0 %163
    %vm165 = vcmp.lt.s32.totalorder %v44, 4
    %v166 = vsel %vm165, %v162, %v164
    %v167 = vsel %vm165, %v164, %v162
    %v168 = vand.u32 %v44, 8
    %v169 = vand.u32 %v45, 8
    %vm170 = vcmp.eq.s32.totalorder %v168, 0
    %vm171 = vcmp.eq.s32.totalorder %v169, 0
    %vm172 = vmxor %vm170, %vm104
    %vm173 = vmxor %vm171, %vm105
    %vm174 = vmxor %vm172, 1
    %vm175 = vmxor %vm173, 1
    %v176 = vsel %vm104, 1, 0
    %v177 = vsel %vm105, 1, 0
    %vm178 = vcmp.eq.s32.totalorder %v176, 1
    %vm179 = vcmp.eq.s32.totalorder %v177, 1
    %v180 = vsel %vm178, %v159, %v167
    %v181 = vsel %vm179, %v160, %v166
    %v182 = vmin.f32 %v152, %v180
    %v183 = vmin.f32 %v153, %v181
    %v184 = vmax.f32 %v152, %v180
    %v185 = vmax.f32 %v153, %v181
    %v186 = vsel %vm174, 1, 0
    %v187 = vsel %vm175, 1, 0
    %vm188 = vcmp.eq.s32.totalorder %v186, 1
    %vm189 = vcmp.eq.s32.totalorder %v187, 1
    %v190 = vsel %vm188, %v182, %v184
    %v191 = vsel %vm189, %v183, %v185
    %192 = vrot.lane.b32.xlu0 %v190, 126
    %v193 = vpop.permute.xlu0 %192
    %194 = vrot.lane.b32.xlu0 %v191, 126
    %v195 = vpop.permute.xlu0 %194
    %v196 = vsel %vm92, %v193, %v195
    %v197 = vsel %vm92, %v195, %v193
    %198 = vrot.lane.b32.xlu0 %v190, 2
    %v199 = vpop.permute.xlu0 %198
    %200 = vrot.lane.b32.xlu0 %v191, 2
    %v201 = vpop.permute.xlu0 %200
    %v202 = vsel %vm99, %v199, %v201
    %v203 = vsel %vm99, %v201, %v199
    %vm204 = vmxor %vm170, %vm66
    %vm205 = vmxor %vm171, %vm67
    %vm206 = vmxor %vm204, 1
    %vm207 = vmxor %vm205, 1
    %v208 = vsel %vm112, %v196, %v203
    %v209 = vsel %vm113, %v197, %v202
    %v210 = vmin.f32 %v190, %v208
    %v211 = vmin.f32 %v191, %v209
    %v212 = vmax.f32 %v190, %v208
    %v213 = vmax.f32 %v191, %v209
    %v214 = vsel %vm206, 1, 0
    %v215 = vsel %vm207, 1, 0
    %vm216 = vcmp.eq.s32.totalorder %v214, 1
    %vm217 = vcmp.eq.s32.totalorder %v215, 1
    %v218 = vsel %vm216, %v210, %v212
    %v219 = vsel %vm217, %v211, %v213
    %220 = vrot.lane.b32.xlu0 %v218, 127
    %v221 = vpop.permute.xlu0 %220
    %222 = vrot.lane.b32.xlu0 %v219, 127
    %v223 = vpop.permute.xlu0 %222
    %v224 = vsel %vm50, %v221, %v223
    %v225 = vsel %vm50, %v223, %v221
    %226 = vrot.lane.b32.xlu0 %v218, 1
    %v227 = vpop.permute.xlu0 %226
    %228 = vrot.lane.b32.xlu0 %v219, 1
    %v229 = vpop.permute.xlu0 %228
    %v230 = vsel %vm57, %v227, %v229
    %v231 = vsel %vm57, %v229, %v227
    %vm232 = vmxor %vm170, %vm62
    %vm233 = vmxor %vm171, %vm63
    %vm234 = vmxor %vm232, 1
    %vm235 = vmxor %vm233, 1
    %v236 = vsel %vm74, %v224, %v231
    %v237 = vsel %vm75, %v225, %v230
    %v238 = vmin.f32 %v218, %v236
    %v239 = vmin.f32 %v219, %v237
    %v240 = vmax.f32 %v218, %v236
    %v241 = vmax.f32 %v219, %v237
    %v242 = vsel %vm234, 1, 0
    %v243 = vsel %vm235, 1, 0
    %vm244 = vcmp.eq.s32.totalorder %v242, 1
    %vm245 = vcmp.eq.s32.totalorder %v243, 1
    %v246 = vsel %vm244, %v238, %v240
    %v247 = vsel %vm245, %v239, %v241
    %248 = vrot.lane.b32.xlu0 %v246, 120
    %v249 = vpop.permute.xlu0 %248
    %250 = vrot.lane.b32.xlu0 %v247, 120
    %v251 = vpop.permute.xlu0 %250
    %vm252 = vcmp.lt.s32.totalorder %v44, 120
    %v253 = vsel %vm252, %v249, %v251
    %v254 = vsel %vm252, %v251, %v249
    %255 = vrot.lane.b32.xlu0 %v246, 8
    %v256 = vpop.permute.xlu0 %255
    %257 = vrot.lane.b32.xlu0 %v247, 8
    %v258 = vpop.permute.xlu0 %257
    %vm259 = vcmp.lt.s32.totalorder %v44, 8
    %v260 = vsel %vm259, %v256, %v258
    %v261 = vsel %vm259, %v258, %v256
    %v262 = vand.u32 %v44, 16
    %v263 = vand.u32 %v45, 16
    %vm264 = vcmp.eq.s32.totalorder %v262, 0
    %vm265 = vcmp.eq.s32.totalorder %v263, 0
    %vm266 = vmxor %vm264, %vm170
    %vm267 = vmxor %vm265, %vm171
    %vm268 = vmxor %vm266, 1
    %vm269 = vmxor %vm267, 1
    %v270 = vsel %vm170, 1, 0
    %v271 = vsel %vm171, 1, 0
    %vm272 = vcmp.eq.s32.totalorder %v270, 1
    %vm273 = vcmp.eq.s32.totalorder %v271, 1
    %v274 = vsel %vm272, %v253, %v261
    %v275 = vsel %vm273, %v254, %v260
    %v276 = vmin.f32 %v246, %v274
    %v277 = vmin.f32 %v247, %v275
    %v278 = vmax.f32 %v246, %v274
    %v279 = vmax.f32 %v247, %v275
    %v280 = vsel %vm268, 1, 0
    %v281 = vsel %vm269, 1, 0
    %vm282 = vcmp.eq.s32.totalorder %v280, 1
    %vm283 = vcmp.eq.s32.totalorder %v281, 1
    %v284 = vsel %vm282, %v276, %v278
    %v285 = vsel %vm283, %v277, %v279
    %286 = vrot.lane.b32.xlu0 %v284, 124
    %v287 = vpop.permute.xlu0 %286
    %288 = vrot.lane.b32.xlu0 %v285, 124
    %v289 = vpop.permute.xlu0 %288
    %v290 = vsel %vm158, %v287, %v289
    %v291 = vsel %vm158, %v289, %v287
    %292 = vrot.lane.b32.xlu0 %v284, 4
    %v293 = vpop.permute.xlu0 %292
    %294 = vrot.lane.b32.xlu0 %v285, 4
    %v295 = vpop.permute.xlu0 %294
    %v296 = vsel %vm165, %v293, %v295
    %v297 = vsel %vm165, %v295, %v293
    %vm298 = vmxor %vm264, %vm104
    %vm299 = vmxor %vm265, %vm105
    %vm300 = vmxor %vm298, 1
    %vm301 = vmxor %vm299, 1
    %v302 = vsel %vm178, %v290, %v297
    %v303 = vsel %vm179, %v291, %v296
    %v304 = vmin.f32 %v284, %v302
    %v305 = vmin.f32 %v285, %v303
    %v306 = vmax.f32 %v284, %v302
    %v307 = vmax.f32 %v285, %v303
    %v308 = vsel %vm300, 1, 0
    %v309 = vsel %vm301, 1, 0
    %vm310 = vcmp.eq.s32.totalorder %v308, 1
    %vm311 = vcmp.eq.s32.totalorder %v309, 1
    %v312 = vsel %vm310, %v304, %v306
    %v313 = vsel %vm311, %v305, %v307
    %314 = vrot.lane.b32.xlu0 %v312, 126
    %v315 = vpop.permute.xlu0 %314
    %316 = vrot.lane.b32.xlu0 %v313, 126
    %v317 = vpop.permute.xlu0 %316
    %v318 = vsel %vm92, %v315, %v317
    %v319 = vsel %vm92, %v317, %v315
    %320 = vrot.lane.b32.xlu0 %v312, 2
    %v321 = vpop.permute.xlu0 %320
    %322 = vrot.lane.b32.xlu0 %v313, 2
    %v323 = vpop.permute.xlu0 %322
    %v324 = vsel %vm99, %v321, %v323
    %v325 = vsel %vm99, %v323, %v321
    %vm326 = vmxor %vm264, %vm66
    %vm327 = vmxor %vm265, %vm67
    %vm328 = vmxor %vm326, 1
    %vm329 = vmxor %vm327, 1
    %v330 = vsel %vm112, %v318, %v325
    %v331 = vsel %vm113, %v319, %v324
    %v332 = vmin.f32 %v312, %v330
    %v333 = vmin.f32 %v313, %v331
    %v334 = vmax.f32 %v312, %v330
    %v335 = vmax.f32 %v313, %v331
    %v336 = vsel %vm328, 1, 0
    %v337 = vsel %vm329, 1, 0
    %vm338 = vcmp.eq.s32.totalorder %v336, 1
    %vm339 = vcmp.eq.s32.totalorder %v337, 1
    %v340 = vsel %vm338, %v332, %v334
    %v341 = vsel %vm339, %v333, %v335
    %342 = vrot.lane.b32.xlu0 %v340, 127
    %v343 = vpop.permute.xlu0 %342
    %344 = vrot.lane.b32.xlu0 %v341, 127
    %v345 = vpop.permute.xlu0 %344
    %v346 = vsel %vm50, %v343, %v345
    %v347 = vsel %vm50, %v345, %v343
    %348 = vrot.lane.b32.xlu0 %v340, 1
    %v349 = vpop.permute.xlu0 %348
    %350 = vrot.lane.b32.xlu0 %v341, 1
    %v351 = vpop.permute.xlu0 %350
    %v352 = vsel %vm57, %v349, %v351
    %v353 = vsel %vm57, %v351, %v349
    %vm354 = vmxor %vm264, %vm62
    %vm355 = vmxor %vm265, %vm63
    %vm356 = vmxor %vm354, 1
    %vm357 = vmxor %vm355, 1
    %v358 = vsel %vm74, %v346, %v353
    %v359 = vsel %vm75, %v347, %v352
    %v360 = vmin.f32 %v340, %v358
    %v361 = vmin.f32 %v341, %v359
    %v362 = vmax.f32 %v340, %v358
    %v363 = vmax.f32 %v341, %v359
    %v364 = vsel %vm356, 1, 0
    %v365 = vsel %vm357, 1, 0
    %vm366 = vcmp.eq.s32.totalorder %v364, 1
    %vm367 = vcmp.eq.s32.totalorder %v365, 1
    %v368 = vsel %vm366, %v360, %v362
    %v369 = vsel %vm367, %v361, %v363
    %370 = vrot.lane.b32.xlu0 %v368, 112
    %v371 = vpop.permute.xlu0 %370
    %372 = vrot.lane.b32.xlu0 %v369, 112
    %v373 = vpop.permute.xlu0 %372
    %vm374 = vcmp.lt.s32.totalorder %v44, 112
    %v375 = vsel %vm374, %v371, %v373
    %v376 = vsel %vm374, %v373, %v371
    %377 = vrot.lane.b32.xlu0 %v368, 16
    %v378 = vpop.permute.xlu0 %377
    %379 = vrot.lane.b32.xlu0 %v369, 16
    %v380 = vpop.permute.xlu0 %379
    %vm381 = vcmp.lt.s32.totalorder %v44, 16
    %v382 = vsel %vm381, %v378, %v380
    %v383 = vsel %vm381, %v380, %v378
    %v384 = vand.u32 %v44, 32
    %v385 = vand.u32 %v45, 32
    %vm386 = vcmp.eq.s32.totalorder %v384, 0
    %vm387 = vcmp.eq.s32.totalorder %v385, 0
    %vm388 = vmxor %vm386, %vm264
    %vm389 = vmxor %vm387, %vm265
    %vm390 = vmxor %vm388, 1
    %vm391 = vmxor %vm389, 1
    %v392 = vsel %vm264, 1, 0
    %v393 = vsel %vm265, 1, 0
    %vm394 = vcmp.eq.s32.totalorder %v392, 1
    %vm395 = vcmp.eq.s32.totalorder %v393, 1
    %v396 = vsel %vm394, %v375, %v383
    %v397 = vsel %vm395, %v376, %v382
    %v398 = vmin.f32 %v368, %v396
    %v399 = vmin.f32 %v369, %v397
    %v400 = vmax.f32 %v368, %v396
    %v401 = vmax.f32 %v369, %v397
    %v402 = vsel %vm390, 1, 0
    %v403 = vsel %vm391, 1, 0
    %vm404 = vcmp.eq.s32.totalorder %v402, 1
    %vm405 = vcmp.eq.s32.totalorder %v403, 1
    %v406 = vsel %vm404, %v398, %v400
    %v407 = vsel %vm405, %v399, %v401
    %408 = vrot.lane.b32.xlu0 %v406, 120
    %v409 = vpop.permute.xlu0 %408
    %410 = vrot.lane.b32.xlu0 %v407, 120
    %v411 = vpop.permute.xlu0 %410
    %v412 = vsel %vm252, %v409, %v411
    %v413 = vsel %vm252, %v411, %v409
    %414 = vrot.lane.b32.xlu0 %v406, 8
    %v415 = vpop.permute.xlu0 %414
    %416 = vrot.lane.b32.xlu0 %v407, 8
    %v417 = vpop.permute.xlu0 %416
    %v418 = vsel %vm259, %v415, %v417
    %v419 = vsel %vm259, %v417, %v415
    %vm420 = vmxor %vm386, %vm170
    %vm421 = vmxor %vm387, %vm171
    %vm422 = vmxor %vm420, 1
    %vm423 = vmxor %vm421, 1
    %v424 = vsel %vm272, %v412, %v419
    %v425 = vsel %vm273, %v413, %v418
    %v426 = vmin.f32 %v406, %v424
    %v427 = vmin.f32 %v407, %v425
    %v428 = vmax.f32 %v406, %v424
    %v429 = vmax.f32 %v407, %v425
    %v430 = vsel %vm422, 1, 0
    %v431 = vsel %vm423, 1, 0
    %vm432 = vcmp.eq.s32.totalorder %v430, 1
    %vm433 = vcmp.eq.s32.totalorder %v431, 1
    %v434 = vsel %vm432, %v426, %v428
    %v435 = vsel %vm433, %v427, %v429
    %436 = vrot.lane.b32.xlu0 %v434, 124
    %v437 = vpop.permute.xlu0 %436
    %438 = vrot.lane.b32.xlu0 %v435, 124
    %v439 = vpop.permute.xlu0 %438
    %v440 = vsel %vm158, %v437, %v439
    %v441 = vsel %vm158, %v439, %v437
    %442 = vrot.lane.b32.xlu0 %v434, 4
    %v443 = vpop.permute.xlu0 %442
    %444 = vrot.lane.b32.xlu0 %v435, 4
    %v445 = vpop.permute.xlu0 %444
    %v446 = vsel %vm165, %v443, %v445
    %v447 = vsel %vm165, %v445, %v443
    %vm448 = vmxor %vm386, %vm104
    %vm449 = vmxor %vm387, %vm105
    %vm450 = vmxor %vm448, 1
    %vm451 = vmxor %vm449, 1
    %v452 = vsel %vm178, %v440, %v447
    %v453 = vsel %vm179, %v441, %v446
    %v454 = vmin.f32 %v434, %v452
    %v455 = vmin.f32 %v435, %v453
    %v456 = vmax.f32 %v434, %v452
    %v457 = vmax.f32 %v435, %v453
    %v458 = vsel %vm450, 1, 0
    %v459 = vsel %vm451, 1, 0
    %vm460 = vcmp.eq.s32.totalorder %v458, 1
    %vm461 = vcmp.eq.s32.totalorder %v459, 1
    %v462 = vsel %vm460, %v454, %v456
    %v463 = vsel %vm461, %v455, %v457
    %464 = vrot.lane.b32.xlu0 %v462, 126
    %v465 = vpop.permute.xlu0 %464
    %466 = vrot.lane.b32.xlu0 %v463, 126
    %v467 = vpop.permute.xlu0 %466
    %v468 = vsel %vm92, %v465, %v467
    %v469 = vsel %vm92, %v467, %v465
    %470 = vrot.lane.b32.xlu0 %v462, 2
    %v471 = vpop.permute.xlu0 %470
    %472 = vrot.lane.b32.xlu0 %v463, 2
    %v473 = vpop.permute.xlu0 %472
    %v474 = vsel %vm99, %v471, %v473
    %v475 = vsel %vm99, %v473, %v471
    %vm476 = vmxor %vm386, %vm66
    %vm477 = vmxor %vm387, %vm67
    %vm478 = vmxor %vm476, 1
    %vm479 = vmxor %vm477, 1
    %v480 = vsel %vm112, %v468, %v475
    %v481 = vsel %vm113, %v469, %v474
    %v482 = vmin.f32 %v462, %v480
    %v483 = vmin.f32 %v463, %v481
    %v484 = vmax.f32 %v462, %v480
    %v485 = vmax.f32 %v463, %v481
    %v486 = vsel %vm478, 1, 0
    %v487 = vsel %vm479, 1, 0
    %vm488 = vcmp.eq.s32.totalorder %v486, 1
    %vm489 = vcmp.eq.s32.totalorder %v487, 1
    %v490 = vsel %vm488, %v482, %v484
    %v491 = vsel %vm489, %v483, %v485
    %492 = vrot.lane.b32.xlu0 %v490, 127
    %v493 = vpop.permute.xlu0 %492
    %494 = vrot.lane.b32.xlu0 %v491, 127
    %v495 = vpop.permute.xlu0 %494
    %v496 = vsel %vm50, %v493, %v495
    %v497 = vsel %vm50, %v495, %v493
    %498 = vrot.lane.b32.xlu0 %v490, 1
    %v499 = vpop.permute.xlu0 %498
    %500 = vrot.lane.b32.xlu0 %v491, 1
    %v501 = vpop.permute.xlu0 %500
    %v502 = vsel %vm57, %v499, %v501
    %v503 = vsel %vm57, %v501, %v499
    %vm504 = vmxor %vm386, %vm62
    %vm505 = vmxor %vm387, %vm63
    %vm506 = vmxor %vm504, 1
    %vm507 = vmxor %vm505, 1
    %v508 = vsel %vm74, %v496, %v503
    %v509 = vsel %vm75, %v497, %v502
    %v510 = vmin.f32 %v490, %v508
    %v511 = vmin.f32 %v491, %v509
    %v512 = vmax.f32 %v490, %v508
    %v513 = vmax.f32 %v491, %v509
    %v514 = vsel %vm506, 1, 0
    %v515 = vsel %vm507, 1, 0
    %vm516 = vcmp.eq.s32.totalorder %v514, 1
    %vm517 = vcmp.eq.s32.totalorder %v515, 1
    %v518 = vsel %vm516, %v510, %v512
    %v519 = vsel %vm517, %v511, %v513
    %520 = vrot.lane.b32.xlu0 %v518, 96
    %v521 = vpop.permute.xlu0 %520
    %522 = vrot.lane.b32.xlu0 %v519, 96
    %v523 = vpop.permute.xlu0 %522
    %vm524 = vcmp.lt.s32.totalorder %v44, 96
    %v525 = vsel %vm524, %v521, %v523
    %v526 = vsel %vm524, %v523, %v521
    %527 = vrot.lane.b32.xlu0 %v518, 32
    %v528 = vpop.permute.xlu0 %527
    %529 = vrot.lane.b32.xlu0 %v519, 32
    %v530 = vpop.permute.xlu0 %529
    %vm531 = vcmp.lt.s32.totalorder %v44, 32
    %v532 = vsel %vm531, %v528, %v530
    %v533 = vsel %vm531, %v530, %v528
    %v534 = vand.u32 %v44, 64
    %v535 = vand.u32 %v45, 64
    %vm536 = vcmp.eq.s32.totalorder %v534, 0
    %vm537 = vcmp.eq.s32.totalorder %v535, 0
    %vm538 = vmxor %vm536, %vm386
    %vm539 = vmxor %vm537, %vm387
    %vm540 = vmxor %vm538, 1
    %vm541 = vmxor %vm539, 1
    %v542 = vsel %vm386, 1, 0
    %v543 = vsel %vm387, 1, 0
    %vm544 = vcmp.eq.s32.totalorder %v542, 1
    %vm545 = vcmp.eq.s32.totalorder %v543, 1
    %v546 = vsel %vm544, %v525, %v533
    %v547 = vsel %vm545, %v526, %v532
    %v548 = vmin.f32 %v518, %v546
    %v549 = vmin.f32 %v519, %v547
    %v550 = vmax.f32 %v518, %v546
    %v551 = vmax.f32 %v519, %v547
    %v552 = vsel %vm540, 1, 0
    %v553 = vsel %vm541, 1, 0
    %vm554 = vcmp.eq.s32.totalorder %v552, 1
    %vm555 = vcmp.eq.s32.totalorder %v553, 1
    %v556 = vsel %vm554, %v548, %v550
    %v557 = vsel %vm555, %v549, %v551
    %558 = vrot.lane.b32.xlu0 %v556, 112
    %v559 = vpop.permute.xlu0 %558
    %560 = vrot.lane.b32.xlu0 %v557, 112
    %v561 = vpop.permute.xlu0 %560
    %v562 = vsel %vm374, %v559, %v561
    %v563 = vsel %vm374, %v561, %v559
    %564 = vrot.lane.b32.xlu0 %v556, 16
    %v565 = vpop.permute.xlu0 %564
    %566 = vrot.lane.b32.xlu0 %v557, 16
    %v567 = vpop.permute.xlu0 %566
    %v568 = vsel %vm381, %v565, %v567
    %v569 = vsel %vm381, %v567, %v565
    %vm570 = vmxor %vm536, %vm264
    %vm571 = vmxor %vm537, %vm265
    %vm572 = vmxor %vm570, 1
    %vm573 = vmxor %vm571, 1
    %v574 = vsel %vm394, %v562, %v569
    %v575 = vsel %vm395, %v563, %v568
    %v576 = vmin.f32 %v556, %v574
    %v577 = vmin.f32 %v557, %v575
    %v578 = vmax.f32 %v556, %v574
    %v579 = vmax.f32 %v557, %v575
    %v580 = vsel %vm572, 1, 0
    %v581 = vsel %vm573, 1, 0
    %vm582 = vcmp.eq.s32.totalorder %v580, 1
    %vm583 = vcmp.eq.s32.totalorder %v581, 1
    %v584 = vsel %vm582, %v576, %v578
    %v585 = vsel %vm583, %v577, %v579
    %586 = vrot.lane.b32.xlu0 %v584, 120
    %v587 = vpop.permute.xlu0 %586
    %588 = vrot.lane.b32.xlu0 %v585, 120
    %v589 = vpop.permute.xlu0 %588
    %v590 = vsel %vm252, %v587, %v589
    %v591 = vsel %vm252, %v589, %v587
    %592 = vrot.lane.b32.xlu0 %v584, 8
    %v593 = vpop.permute.xlu0 %592
    %594 = vrot.lane.b32.xlu0 %v585, 8
    %v595 = vpop.permute.xlu0 %594
    %v596 = vsel %vm259, %v593, %v595
    %v597 = vsel %vm259, %v595, %v593
    %vm598 = vmxor %vm536, %vm170
    %vm599 = vmxor %vm537, %vm171
    %vm600 = vmxor %vm598, 1
    %vm601 = vmxor %vm599, 1
    %v602 = vsel %vm272, %v590, %v597
    %v603 = vsel %vm273, %v591, %v596
    %v604 = vmin.f32 %v584, %v602
    %v605 = vmin.f32 %v585, %v603
    %v606 = vmax.f32 %v584, %v602
    %v607 = vmax.f32 %v585, %v603
    %v608 = vsel %vm600, 1, 0
    %v609 = vsel %vm601, 1, 0
    %vm610 = vcmp.eq.s32.totalorder %v608, 1
    %vm611 = vcmp.eq.s32.totalorder %v609, 1
    %v612 = vsel %vm610, %v604, %v606
    %v613 = vsel %vm611, %v605, %v607
    %614 = vrot.lane.b32.xlu0 %v612, 124
    %v615 = vpop.permute.xlu0 %614
    %616 = vrot.lane.b32.xlu0 %v613, 124
    %v617 = vpop.permute.xlu0 %616
    %v618 = vsel %vm158, %v615, %v617
    %v619 = vsel %vm158, %v617, %v615
    %620 = vrot.lane.b32.xlu0 %v612, 4
    %v621 = vpop.permute.xlu0 %620
    %622 = vrot.lane.b32.xlu0 %v613, 4
    %v623 = vpop.permute.xlu0 %622
    %v624 = vsel %vm165, %v621, %v623
    %v625 = vsel %vm165, %v623, %v621
    %vm626 = vmxor %vm536, %vm104
    %vm627 = vmxor %vm537, %vm105
    %vm628 = vmxor %vm626, 1
    %vm629 = vmxor %vm627, 1
    %v630 = vsel %vm178, %v618, %v625
    %v631 = vsel %vm179, %v619, %v624
    %v632 = vmin.f32 %v612, %v630
    %v633 = vmin.f32 %v613, %v631
    %v634 = vmax.f32 %v612, %v630
    %v635 = vmax.f32 %v613, %v631
    %v636 = vsel %vm628, 1, 0
    %v637 = vsel %vm629, 1, 0
    %vm638 = vcmp.eq.s32.totalorder %v636, 1
    %vm639 = vcmp.eq.s32.totalorder %v637, 1
    %v640 = vsel %vm638, %v632, %v634
    %v641 = vsel %vm639, %v633, %v635
    %642 = vrot.lane.b32.xlu0 %v640, 126
    %v643 = vpop.permute.xlu0 %642
    %644 = vrot.lane.b32.xlu0 %v641, 126
    %v645 = vpop.permute.xlu0 %644
    %v646 = vsel %vm92, %v643, %v645
    %v647 = vsel %vm92, %v645, %v643
    %648 = vrot.lane.b32.xlu0 %v640, 2
    %v649 = vpop.permute.xlu0 %648
    %650 = vrot.lane.b32.xlu0 %v641, 2
    %v651 = vpop.permute.xlu0 %650
    %v652 = vsel %vm99, %v649, %v651
    %v653 = vsel %vm99, %v651, %v649
    %vm654 = vmxor %vm536, %vm66
    %vm655 = vmxor %vm537, %vm67
    %vm656 = vmxor %vm654, 1
    %vm657 = vmxor %vm655, 1
    %v658 = vsel %vm112, %v646, %v653
    %v659 = vsel %vm113, %v647, %v652
    %v660 = vmin.f32 %v640, %v658
    %v661 = vmin.f32 %v641, %v659
    %v662 = vmax.f32 %v640, %v658
    %v663 = vmax.f32 %v641, %v659
    %v664 = vsel %vm656, 1, 0
    %v665 = vsel %vm657, 1, 0
    %vm666 = vcmp.eq.s32.totalorder %v664, 1
    %vm667 = vcmp.eq.s32.totalorder %v665, 1
    %v668 = vsel %vm666, %v660, %v662
    %v669 = vsel %vm667, %v661, %v663
    %670 = vrot.lane.b32.xlu0 %v668, 127
    %v671 = vpop.permute.xlu0 %670
    %672 = vrot.lane.b32.xlu0 %v669, 127
    %v673 = vpop.permute.xlu0 %672
    %v674 = vsel %vm50, %v671, %v673
    %v675 = vsel %vm50, %v673, %v671
    %676 = vrot.lane.b32.xlu0 %v668, 1
    %v677 = vpop.permute.xlu0 %676
    %678 = vrot.lane.b32.xlu0 %v669, 1
    %v679 = vpop.permute.xlu0 %678
    %v680 = vsel %vm57, %v677, %v679
    %v681 = vsel %vm57, %v679, %v677
    %vm682 = vmxor %vm536, %vm62
    %vm683 = vmxor %vm537, %vm63
    %vm684 = vmxor %vm682, 1
    %vm685 = vmxor %vm683, 1
    %v686 = vsel %vm74, %v674, %v681
    %v687 = vsel %vm75, %v675, %v680
    %v688 = vmin.f32 %v668, %v686
    %v689 = vmin.f32 %v669, %v687
    %v690 = vmax.f32 %v668, %v686
    %v691 = vmax.f32 %v669, %v687
    %v692 = vsel %vm684, 1, 0
    %v693 = vsel %vm685, 1, 0
    %vm694 = vcmp.eq.s32.totalorder %v692, 1
    %vm695 = vcmp.eq.s32.totalorder %v693, 1
    %v696 = vsel %vm694, %v688, %v690
    %v697 = vsel %vm695, %v689, %v691
    %698 = vrot.lane.b32.xlu0 %v696, 64
    %v699 = vpop.permute.xlu0 %698
    %700 = vrot.lane.b32.xlu0 %v697, 64
    %v701 = vpop.permute.xlu0 %700
    %vm702 = vcmp.lt.s32.totalorder %v44, 64
    %v703 = vsel %vm702, %v699, %v701
    %v704 = vsel %vm702, %v701, %v699
    %v705 = vand.u32 %v44, 128
    %v706 = vand.u32 %v45, 128
    %vm707 = vcmp.eq.s32.totalorder %v705, 0
    %vm708 = vcmp.eq.s32.totalorder %v706, 0
    %vm709 = vmxor %vm707, %vm536
    %vm710 = vmxor %vm708, %vm537
    %vm711 = vmxor %vm709, 1
    %vm712 = vmxor %vm710, 1
    %v713 = vsel %vm536, 1, 0
    %v714 = vsel %vm537, 1, 0
    %vm715 = vcmp.eq.s32.totalorder %v713, 1
    %vm716 = vcmp.eq.s32.totalorder %v714, 1
    %v717 = vsel %vm715, %v703, %v704
    %v718 = vsel %vm716, %v704, %v703
    %v719 = vmin.f32 %v696, %v717
    %v720 = vmin.f32 %v697, %v718
    %v721 = vmax.f32 %v696, %v717
    %v722 = vmax.f32 %v697, %v718
    %v723 = vsel %vm711, 1, 0
    %v724 = vsel %vm712, 1, 0
    %vm725 = vcmp.eq.s32.totalorder %v723, 1
    %vm726 = vcmp.eq.s32.totalorder %v724, 1
    %v727 = vsel %vm725, %v719, %v721
    %v728 = vsel %vm726, %v720, %v722
    %729 = vrot.lane.b32.xlu0 %v727, 96
    %v730 = vpop.permute.xlu0 %729
    %731 = vrot.lane.b32.xlu0 %v728, 96
    %v732 = vpop.permute.xlu0 %731
    %v733 = vsel %vm524, %v730, %v732
    %v734 = vsel %vm524, %v732, %v730
    %735 = vrot.lane.b32.xlu0 %v727, 32
    %v736 = vpop.permute.xlu0 %735
    %737 = vrot.lane.b32.xlu0 %v728, 32
    %v738 = vpop.permute.xlu0 %737
    %v739 = vsel %vm531, %v736, %v738
    %v740 = vsel %vm531, %v738, %v736
    %vm741 = vmxor %vm707, %vm386
    %vm742 = vmxor %vm708, %vm387
    %vm743 = vmxor %vm741, 1
    %vm744 = vmxor %vm742, 1
    %v745 = vsel %vm544, %v733, %v740
    %v746 = vsel %vm545, %v734, %v739
    %v747 = vmin.f32 %v727, %v745
    %v748 = vmin.f32 %v728, %v746
    %v749 = vmax.f32 %v727, %v745
    %v750 = vmax.f32 %v728, %v746
    %v751 = vsel %vm743, 1, 0
    %v752 = vsel %vm744, 1, 0
    %vm753 = vcmp.eq.s32.totalorder %v751, 1
    %vm754 = vcmp.eq.s32.totalorder %v752, 1
    %v755 = vsel %vm753, %v747, %v749
    %v756 = vsel %vm754, %v748, %v750
    %757 = vrot.lane.b32.xlu0 %v755, 112
    %v758 = vpop.permute.xlu0 %757
    %759 = vrot.lane.b32.xlu0 %v756, 112
    %v760 = vpop.permute.xlu0 %759
    %v761 = vsel %vm374, %v758, %v760
    %v762 = vsel %vm374, %v760, %v758
    %763 = vrot.lane.b32.xlu0 %v755, 16
    %v764 = vpop.permute.xlu0 %763
    %765 = vrot.lane.b32.xlu0 %v756, 16
    %v766 = vpop.permute.xlu0 %765
    %v767 = vsel %vm381, %v764, %v766
    %v768 = vsel %vm381, %v766, %v764
    %vm769 = vmxor %vm707, %vm264
    %vm770 = vmxor %vm708, %vm265
    %vm771 = vmxor %vm769, 1
    %vm772 = vmxor %vm770, 1
    %v773 = vsel %vm394, %v761, %v768
    %v774 = vsel %vm395, %v762, %v767
    %v775 = vmin.f32 %v755, %v773
    %v776 = vmin.f32 %v756, %v774
    %v777 = vmax.f32 %v755, %v773
    %v778 = vmax.f32 %v756, %v774
    %v779 = vsel %vm771, 1, 0
    %v780 = vsel %vm772, 1, 0
    %vm781 = vcmp.eq.s32.totalorder %v779, 1
    %vm782 = vcmp.eq.s32.totalorder %v780, 1
    %v783 = vsel %vm781, %v775, %v777
    %v784 = vsel %vm782, %v776, %v778
    %785 = vrot.lane.b32.xlu0 %v783, 120
    %v786 = vpop.permute.xlu0 %785
    %787 = vrot.lane.b32.xlu0 %v784, 120
    %v788 = vpop.permute.xlu0 %787
    %v789 = vsel %vm252, %v786, %v788
    %v790 = vsel %vm252, %v788, %v786
    %791 = vrot.lane.b32.xlu0 %v783, 8
    %v792 = vpop.permute.xlu0 %791
    %793 = vrot.lane.b32.xlu0 %v784, 8
    %v794 = vpop.permute.xlu0 %793
    %v795 = vsel %vm259, %v792, %v794
    %v796 = vsel %vm259, %v794, %v792
    %vm797 = vmxor %vm707, %vm170
    %vm798 = vmxor %vm708, %vm171
    %vm799 = vmxor %vm797, 1
    %vm800 = vmxor %vm798, 1
    %v801 = vsel %vm272, %v789, %v796
    %v802 = vsel %vm273, %v790, %v795
    %v803 = vmin.f32 %v783, %v801
    %v804 = vmin.f32 %v784, %v802
    %v805 = vmax.f32 %v783, %v801
    %v806 = vmax.f32 %v784, %v802
    %v807 = vsel %vm799, 1, 0
    %v808 = vsel %vm800, 1, 0
    %vm809 = vcmp.eq.s32.totalorder %v807, 1
    %vm810 = vcmp.eq.s32.totalorder %v808, 1
    %v811 = vsel %vm809, %v803, %v805
    %v812 = vsel %vm810, %v804, %v806
    %813 = vrot.lane.b32.xlu0 %v811, 124
    %v814 = vpop.permute.xlu0 %813
    %815 = vrot.lane.b32.xlu0 %v812, 124
    %v816 = vpop.permute.xlu0 %815
    %v817 = vsel %vm158, %v814, %v816
    %v818 = vsel %vm158, %v816, %v814
    %819 = vrot.lane.b32.xlu0 %v811, 4
    %v820 = vpop.permute.xlu0 %819
    %821 = vrot.lane.b32.xlu0 %v812, 4
    %v822 = vpop.permute.xlu0 %821
    %v823 = vsel %vm165, %v820, %v822
    %v824 = vsel %vm165, %v822, %v820
    %vm825 = vmxor %vm707, %vm104
    %vm826 = vmxor %vm708, %vm105
    %vm827 = vmxor %vm825, 1
    %vm828 = vmxor %vm826, 1
    %v829 = vsel %vm178, %v817, %v824
    %v830 = vsel %vm179, %v818, %v823
    %v831 = vmin.f32 %v811, %v829
    %v832 = vmin.f32 %v812, %v830
    %v833 = vmax.f32 %v811, %v829
    %v834 = vmax.f32 %v812, %v830
    %v835 = vsel %vm827, 1, 0
    %v836 = vsel %vm828, 1, 0
    %vm837 = vcmp.eq.s32.totalorder %v835, 1
    %vm838 = vcmp.eq.s32.totalorder %v836, 1
    %v839 = vsel %vm837, %v831, %v833
    %v840 = vsel %vm838, %v832, %v834
    %841 = vrot.lane.b32.xlu0 %v839, 126
    %v842 = vpop.permute.xlu0 %841
    %843 = vrot.lane.b32.xlu0 %v840, 126
    %v844 = vpop.permute.xlu0 %843
    %v845 = vsel %vm92, %v842, %v844
    %v846 = vsel %vm92, %v844, %v842
    %847 = vrot.lane.b32.xlu0 %v839, 2
    %v848 = vpop.permute.xlu0 %847
    %849 = vrot.lane.b32.xlu0 %v840, 2
    %v850 = vpop.permute.xlu0 %849
    %v851 = vsel %vm99, %v848, %v850
    %v852 = vsel %vm99, %v850, %v848
    %vm853 = vmxor %vm707, %vm66
    %vm854 = vmxor %vm708, %vm67
    %vm855 = vmxor %vm853, 1
    %vm856 = vmxor %vm854, 1
    %v857 = vsel %vm112, %v845, %v852
    %v858 = vsel %vm113, %v846, %v851
    %v859 = vmin.f32 %v839, %v857
    %v860 = vmin.f32 %v840, %v858
    %v861 = vmax.f32 %v839, %v857
    %v862 = vmax.f32 %v840, %v858
    %v863 = vsel %vm855, 1, 0
    %v864 = vsel %vm856, 1, 0
    %vm865 = vcmp.eq.s32.totalorder %v863, 1
    %vm866 = vcmp.eq.s32.totalorder %v864, 1
    %v867 = vsel %vm865, %v859, %v861
    %v868 = vsel %vm866, %v860, %v862
    %869 = vrot.lane.b32.xlu0 %v867, 127
    %v870 = vpop.permute.xlu0 %869
    %871 = vrot.lane.b32.xlu0 %v868, 127
    %v872 = vpop.permute.xlu0 %871
    %v873 = vsel %vm50, %v870, %v872
    %v874 = vsel %vm50, %v872, %v870
    %875 = vrot.lane.b32.xlu0 %v867, 1
    %v876 = vpop.permute.xlu0 %875
    %877 = vrot.lane.b32.xlu0 %v868, 1
    %v878 = vpop.permute.xlu0 %877
    %v879 = vsel %vm57, %v876, %v878
    %v880 = vsel %vm57, %v878, %v876
    %vm881 = vmxor %vm707, %vm62
    %vm882 = vmxor %vm708, %vm63
    %vm883 = vmxor %vm881, 1
    %vm884 = vmxor %vm882, 1
    %v885 = vsel %vm74, %v873, %v880
    %v886 = vsel %vm75, %v874, %v879
    %v887 = vmin.f32 %v867, %v885
    %v888 = vmin.f32 %v868, %v886
    %v889 = vmax.f32 %v867, %v885
    %v890 = vmax.f32 %v868, %v886
    %v891 = vsel %vm883, 1, 0
    %v892 = vsel %vm884, 1, 0
    %vm893 = vcmp.eq.s32.totalorder %v891, 1
    %vm894 = vcmp.eq.s32.totalorder %v892, 1
    %v895 = vsel %vm893, %v887, %v889
    %v896 = vsel %vm894, %v888, %v890
    %v897 = vand.u32 %v44, 256
    %v898 = vand.u32 %v45, 256
    %vm899 = vcmp.eq.s32.totalorder %v897, 0
    %vm900 = vcmp.eq.s32.totalorder %v898, 0
    %vm901 = vmxor %vm899, %vm707
    %vm902 = vmxor %vm900, %vm708
    %vm903 = vmxor %vm901, 1
    %vm904 = vmxor %vm902, 1
    %v905 = vmin.f32 %v895, %v896
    %v906 = vmax.f32 %v895, %v896
    %v907 = vsel %vm903, 1, 0
    %v908 = vsel %vm904, 1, 0
    %vm909 = vcmp.eq.s32.totalorder %v907, 1
    %vm910 = vcmp.eq.s32.totalorder %v908, 1
    %v911 = vsel %vm909, %v905, %v906
    %v912 = vsel %vm910, %v905, %v906
    %913 = vrot.lane.b32.xlu0 %v911, 64
    %v914 = vpop.permute.xlu0 %913
    %915 = vrot.lane.b32.xlu0 %v912, 64
    %v916 = vpop.permute.xlu0 %915
    %v917 = vsel %vm702, %v914, %v916
    %v918 = vsel %vm702, %v916, %v914
    %vm919 = vmxor %vm899, %vm536
    %vm920 = vmxor %vm900, %vm537
    %vm921 = vmxor %vm919, 1
    %vm922 = vmxor %vm920, 1
    %v923 = vsel %vm715, %v917, %v918
    %v924 = vsel %vm716, %v918, %v917
    %v925 = vmin.f32 %v911, %v923
    %v926 = vmin.f32 %v912, %v924
    %v927 = vmax.f32 %v911, %v923
    %v928 = vmax.f32 %v912, %v924
    %v929 = vsel %vm921, 1, 0
    %v930 = vsel %vm922, 1, 0
    %vm931 = vcmp.eq.s32.totalorder %v929, 1
    %vm932 = vcmp.eq.s32.totalorder %v930, 1
    %v933 = vsel %vm931, %v925, %v927
    %v934 = vsel %vm932, %v926, %v928
    %935 = vrot.lane.b32.xlu0 %v933, 96
    %v936 = vpop.permute.xlu0 %935
    %937 = vrot.lane.b32.xlu0 %v934, 96
    %v938 = vpop.permute.xlu0 %937
    %v939 = vsel %vm524, %v936, %v938
    %v940 = vsel %vm524, %v938, %v936
    %941 = vrot.lane.b32.xlu0 %v933, 32
    %v942 = vpop.permute.xlu0 %941
    %943 = vrot.lane.b32.xlu0 %v934, 32
    %v944 = vpop.permute.xlu0 %943
    %v945 = vsel %vm531, %v942, %v944
    %v946 = vsel %vm531, %v944, %v942
    %vm947 = vmxor %vm899, %vm386
    %vm948 = vmxor %vm900, %vm387
    %vm949 = vmxor %vm947, 1
    %vm950 = vmxor %vm948, 1
    %v951 = vsel %vm544, %v939, %v946
    %v952 = vsel %vm545, %v940, %v945
    %v953 = vmin.f32 %v933, %v951
    %v954 = vmin.f32 %v934, %v952
    %v955 = vmax.f32 %v933, %v951
    %v956 = vmax.f32 %v934, %v952
    %v957 = vsel %vm949, 1, 0
    %v958 = vsel %vm950, 1, 0
    %vm959 = vcmp.eq.s32.totalorder %v957, 1
    %vm960 = vcmp.eq.s32.totalorder %v958, 1
    %v961 = vsel %vm959, %v953, %v955
    %v962 = vsel %vm960, %v954, %v956
    %963 = vrot.lane.b32.xlu0 %v961, 112
    %v964 = vpop.permute.xlu0 %963
    %965 = vrot.lane.b32.xlu0 %v962, 112
    %v966 = vpop.permute.xlu0 %965
    %v967 = vsel %vm374, %v964, %v966
    %v968 = vsel %vm374, %v966, %v964
    %969 = vrot.lane.b32.xlu0 %v961, 16
    %v970 = vpop.permute.xlu0 %969
    %971 = vrot.lane.b32.xlu0 %v962, 16
    %v972 = vpop.permute.xlu0 %971
    %v973 = vsel %vm381, %v970, %v972
    %v974 = vsel %vm381, %v972, %v970
    %vm975 = vmxor %vm899, %vm264
    %vm976 = vmxor %vm900, %vm265
    %vm977 = vmxor %vm975, 1
    %vm978 = vmxor %vm976, 1
    %v979 = vsel %vm394, %v967, %v974
    %v980 = vsel %vm395, %v968, %v973
    %v981 = vmin.f32 %v961, %v979
    %v982 = vmin.f32 %v962, %v980
    %v983 = vmax.f32 %v961, %v979
    %v984 = vmax.f32 %v962, %v980
    %v985 = vsel %vm977, 1, 0
    %v986 = vsel %vm978, 1, 0
    %vm987 = vcmp.eq.s32.totalorder %v985, 1
    %vm988 = vcmp.eq.s32.totalorder %v986, 1
    %v989 = vsel %vm987, %v981, %v983
    %v990 = vsel %vm988, %v982, %v984
    %991 = vrot.lane.b32.xlu0 %v989, 120
    %v992 = vpop.permute.xlu0 %991
    %993 = vrot.lane.b32.xlu0 %v990, 120
    %v994 = vpop.permute.xlu0 %993
    %v995 = vsel %vm252, %v992, %v994
    %v996 = vsel %vm252, %v994, %v992
    %997 = vrot.lane.b32.xlu0 %v989, 8
    %v998 = vpop.permute.xlu0 %997
    %999 = vrot.lane.b32.xlu0 %v990, 8
    %v1000 = vpop.permute.xlu0 %999
    %v1001 = vsel %vm259, %v998, %v1000
    %v1002 = vsel %vm259, %v1000, %v998
    %vm1003 = vmxor %vm899, %vm170
    %vm1004 = vmxor %vm900, %vm171
    %vm1005 = vmxor %vm1003, 1
    %vm1006 = vmxor %vm1004, 1
    %v1007 = vsel %vm272, %v995, %v1002
    %v1008 = vsel %vm273, %v996, %v1001
    %v1009 = vmin.f32 %v989, %v1007
    %v1010 = vmin.f32 %v990, %v1008
    %v1011 = vmax.f32 %v989, %v1007
    %v1012 = vmax.f32 %v990, %v1008
    %v1013 = vsel %vm1005, 1, 0
    %v1014 = vsel %vm1006, 1, 0
    %vm1015 = vcmp.eq.s32.totalorder %v1013, 1
    %vm1016 = vcmp.eq.s32.totalorder %v1014, 1
    %v1017 = vsel %vm1015, %v1009, %v1011
    %v1018 = vsel %vm1016, %v1010, %v1012
    %1019 = vrot.lane.b32.xlu0 %v1017, 124
    %v1020 = vpop.permute.xlu0 %1019
    %1021 = vrot.lane.b32.xlu0 %v1018, 124
    %v1022 = vpop.permute.xlu0 %1021
    %v1023 = vsel %vm158, %v1020, %v1022
    %v1024 = vsel %vm158, %v1022, %v1020
    %1025 = vrot.lane.b32.xlu0 %v1017, 4
    %v1026 = vpop.permute.xlu0 %1025
    %1027 = vrot.lane.b32.xlu0 %v1018, 4
    %v1028 = vpop.permute.xlu0 %1027
    %v1029 = vsel %vm165, %v1026, %v1028
    %v1030 = vsel %vm165, %v1028, %v1026
    %vm1031 = vmxor %vm899, %vm104
    %vm1032 = vmxor %vm900, %vm105
    %vm1033 = vmxor %vm1031, 1
    %vm1034 = vmxor %vm1032, 1
    %v1035 = vsel %vm178, %v1023, %v1030
    %v1036 = vsel %vm179, %v1024, %v1029
    %v1037 = vmin.f32 %v1017, %v1035
    %v1038 = vmin.f32 %v1018, %v1036
    %v1039 = vmax.f32 %v1017, %v1035
    %v1040 = vmax.f32 %v1018, %v1036
    %v1041 = vsel %vm1033, 1, 0
    %v1042 = vsel %vm1034, 1, 0
    %vm1043 = vcmp.eq.s32.totalorder %v1041, 1
    %vm1044 = vcmp.eq.s32.totalorder %v1042, 1
    %v1045 = vsel %vm1043, %v1037, %v1039
    %v1046 = vsel %vm1044, %v1038, %v1040
    %1047 = vrot.lane.b32.xlu0 %v1045, 126
    %v1048 = vpop.permute.xlu0 %1047
    %1049 = vrot.lane.b32.xlu0 %v1046, 126
    %v1050 = vpop.permute.xlu0 %1049
    %v1051 = vsel %vm92, %v1048, %v1050
    %v1052 = vsel %vm92, %v1050, %v1048
    %1053 = vrot.lane.b32.xlu0 %v1045, 2
    %v1054 = vpop.permute.xlu0 %1053
    %1055 = vrot.lane.b32.xlu0 %v1046, 2
    %v1056 = vpop.permute.xlu0 %1055
    %v1057 = vsel %vm99, %v1054, %v1056
    %v1058 = vsel %vm99, %v1056, %v1054
    %vm1059 = vmxor %vm899, %vm66
    %vm1060 = vmxor %vm900, %vm67
    %vm1061 = vmxor %vm1059, 1
    %vm1062 = vmxor %vm1060, 1
    %v1063 = vsel %vm112, %v1051, %v1058
    %v1064 = vsel %vm113, %v1052, %v1057
    %v1065 = vmin.f32 %v1045, %v1063
    %v1066 = vmin.f32 %v1046, %v1064
    %v1067 = vmax.f32 %v1045, %v1063
    %v1068 = vmax.f32 %v1046, %v1064
    %v1069 = vsel %vm1061, 1, 0
    %v1070 = vsel %vm1062, 1, 0
    %vm1071 = vcmp.eq.s32.totalorder %v1069, 1
    %vm1072 = vcmp.eq.s32.totalorder %v1070, 1
    %v1073 = vsel %vm1071, %v1065, %v1067
    %v1074 = vsel %vm1072, %v1066, %v1068
    %1075 = vrot.lane.b32.xlu0 %v1073, 127
    %v1076 = vpop.permute.xlu0 %1075
    %1077 = vrot.lane.b32.xlu0 %v1074, 127
    %v1078 = vpop.permute.xlu0 %1077
    %v1079 = vsel %vm50, %v1076, %v1078
    %v1080 = vsel %vm50, %v1078, %v1076
    %1081 = vrot.lane.b32.xlu0 %v1073, 1
    %v1082 = vpop.permute.xlu0 %1081
    %1083 = vrot.lane.b32.xlu0 %v1074, 1
    %v1084 = vpop.permute.xlu0 %1083
    %v1085 = vsel %vm57, %v1082, %v1084
    %v1086 = vsel %vm57, %v1084, %v1082
    %vm1087 = vmxor %vm899, %vm62
    %vm1088 = vmxor %vm900, %vm63
    %vm1089 = vmxor %vm1087, 1
    %vm1090 = vmxor %vm1088, 1
    %v1091 = vsel %vm74, %v1079, %v1086
    %v1092 = vsel %vm75, %v1080, %v1085
    %v1093 = vmin.f32 %v1073, %v1091
    %v1094 = vmin.f32 %v1074, %v1092
    %v1095 = vmax.f32 %v1073, %v1091
    %v1096 = vmax.f32 %v1074, %v1092
    %v1097 = vsel %vm1089, 1, 0
    %v1098 = vsel %vm1090, 1, 0
    %vm1099 = vcmp.eq.s32.totalorder %v1097, 1
    %vm1100 = vcmp.eq.s32.totalorder %v1098, 1
    %v1101 = vsel %vm1099, %v1093, %v1095
    %v1102 = vsel %vm1100, %v1094, %v1096
    %v1103 = vld [vmem:[#allocation4] sm:$0xff]
    %v1104 = vld [vmem:[#allocation4 + $0x8] sm:$0xff]
    %v1105 = vld [vmem:[#allocation4 + $0x10] sm:$0xff]
    %v1106 = vld [vmem:[#allocation4 + $0x18] sm:$0xff]
    %v1107 = vld [vmem:[#allocation4 + $0x20] sm:$0xff]
    %v1108 = vld [vmem:[#allocation4 + $0x28] sm:$0xff]
    %v1109 = vld [vmem:[#allocation4 + $0x30] sm:$0xff]
    %v1110 = vld [vmem:[#allocation4 + $0x38] sm:$0xff]
    %v1111 = vld [vmem:[#allocation4 + $0x40] sm:$0xff]
    %v1112 = vld [vmem:[#allocation4 + $0x48] sm:$0xff]
    %v1113 = vld [vmem:[#allocation4 + $0x50] sm:$0xff]
    %v1114 = vld [vmem:[#allocation4 + $0x58] sm:$0xff]
    %v1115 = vld [vmem:[#allocation4 + $0x60] sm:$0xff]
    %v1116 = vld [vmem:[#allocation4 + $0x68] sm:$0xff]
    %v1117 = vld [vmem:[#allocation4 + $0x70] sm:$0xff]
    %v1118 = vld [vmem:[#allocation4 + $0x78] sm:$0xff]
    %v1119 = vld [vmem:[#allocation4 + $0x80] sm:$0xff]
    %v1120 = vld [vmem:[#allocation4 + $0x88] sm:$0xff]
    %v1121 = vld [vmem:[#allocation4 + $0x90] sm:$0xff]
    %v1122 = vld [vmem:[#allocation4 + $0x98] sm:$0xff]
    %v1123 = vld [vmem:[#allocation4 + $0xa0] sm:$0xff]
    %v1124 = vld [vmem:[#allocation4 + $0xa8] sm:$0xff]
    %v1125 = vld [vmem:[#allocation4 + $0xb0] sm:$0xff]
    %v1126 = vld [vmem:[#allocation4 + $0xb8] sm:$0xff]
    %v1127 = vld [vmem:[#allocation4 + $0xc0] sm:$0xff]
    %v1128 = vld [vmem:[#allocation4 + $0xc8] sm:$0xff]
    %v1129 = vld [vmem:[#allocation4 + $0xd0] sm:$0xff]
    %v1130 = vld [vmem:[#allocation4 + $0xd8] sm:$0xff]
    %v1131 = vld [vmem:[#allocation4 + $0xe0] sm:$0xff]
    %v1132 = vld [vmem:[#allocation4 + $0xe8] sm:$0xff]
    %v1133 = vld [vmem:[#allocation4 + $0xf0] sm:$0xff]
    %v1134 = vld [vmem:[#allocation4 + $0xf8] sm:$0xff]
    %1135 = vmatprep.subr.mxu0 0.0
    %v1136 = vand.u32 %v1103, 4294901760
    %1137 = vmatpush1.msra.mxu0 %v1136
    %1138 = vmatprep.subr.mxu0 0.0
    %v1139 = vand.u32 %v1104, 4294901760
    %1140 = vmatpush1.msra.mxu0 %v1139
    %1141 = vmatprep.subr.mxu0 0.0
    %v1142 = vand.u32 %v1105, 4294901760
    %1143 = vmatpush1.msra.mxu0 %v1142
    %1144 = vmatprep.subr.mxu0 0.0
    %v1145 = vand.u32 %v1106, 4294901760
    %1146 = vmatpush1.msra.mxu0 %v1145
    %1147 = vmatprep.subr.mxu0 0.0
    %v1148 = vand.u32 %v1107, 4294901760
    %1149 = vmatpush1.msra.mxu0 %v1148
    %1150 = vmatprep.subr.mxu0 0.0
    %v1151 = vand.u32 %v1108, 4294901760
    %1152 = vmatpush1.msra.mxu0 %v1151
    %1153 = vmatprep.subr.mxu0 0.0
    %v1154 = vand.u32 %v1109, 4294901760
    %1155 = vmatpush1.msra.mxu0 %v1154
    %1156 = vmatprep.subr.mxu0 0.0
    %v1157 = vand.u32 %v1110, 4294901760
    %1158 = vmatpush1.msra.mxu0 %v1157
    %1159 = vmatprep.subr.mxu0 0.0
    %v1160 = vand.u32 %v1111, 4294901760
    %1161 = vmatpush1.msra.mxu0 %v1160
    %1162 = vmatprep.subr.mxu0 0.0
    %v1163 = vand.u32 %v1112, 4294901760
    %1164 = vmatpush1.msra.mxu0 %v1163
    %1165 = vmatprep.subr.mxu0 0.0
    %v1166 = vand.u32 %v1113, 4294901760
    %1167 = vmatpush1.msra.mxu0 %v1166
    %1168 = vmatprep.subr.mxu0 0.0
    %v1169 = vand.u32 %v1114, 4294901760
    %1170 = vmatpush1.msra.mxu0 %v1169
    %1171 = vmatprep.subr.mxu0 0.0
    %v1172 = vand.u32 %v1115, 4294901760
    %1173 = vmatpush1.msra.mxu0 %v1172
    %1174 = vmatprep.subr.mxu0 0.0
    %v1175 = vand.u32 %v1116, 4294901760
    %1176 = vmatpush1.msra.mxu0 %v1175
    %1177 = vmatprep.subr.mxu0 0.0
    %v1178 = vand.u32 %v1117, 4294901760
    %1179 = vmatpush1.msra.mxu0 %v1178
    %1180 = vmatprep.subr.mxu0 0.0
    %v1181 = vand.u32 %v1118, 4294901760
    %1182 = vmatpush1.msra.mxu0 %v1181
    %1183 = vmatprep.subr.mxu0 0.0
    %v1184 = vand.u32 %v1119, 4294901760
    %1185 = vmatpush1.msra.mxu0 %v1184
    %1186 = vmatprep.subr.mxu0 0.0
    %v1187 = vand.u32 %v1120, 4294901760
    %1188 = vmatpush1.msra.mxu0 %v1187
    %1189 = vmatprep.subr.mxu0 0.0
    %v1190 = vand.u32 %v1121, 4294901760
    %1191 = vmatpush1.msra.mxu0 %v1190
    %1192 = vmatprep.subr.mxu0 0.0
    %v1193 = vand.u32 %v1122, 4294901760
    %1194 = vmatpush1.msra.mxu0 %v1193
    %1195 = vmatprep.subr.mxu0 0.0
    %v1196 = vand.u32 %v1123, 4294901760
    %1197 = vmatpush1.msra.mxu0 %v1196
    %1198 = vmatprep.subr.mxu0 0.0
    %v1199 = vand.u32 %v1124, 4294901760
    %1200 = vmatpush1.msra.mxu0 %v1199
    %1201 = vmatprep.subr.mxu0 0.0
    %v1202 = vand.u32 %v1125, 4294901760
    %1203 = vmatpush1.msra.mxu0 %v1202
    %1204 = vmatprep.subr.mxu0 0.0
    %v1205 = vand.u32 %v1126, 4294901760
    %1206 = vmatpush1.msra.mxu0 %v1205
    %1207 = vmatprep.subr.mxu0 0.0
    %v1208 = vand.u32 %v1127, 4294901760
    %1209 = vmatpush1.msra.mxu0 %v1208
    %1210 = vmatprep.subr.mxu0 0.0
    %v1211 = vand.u32 %v1128, 4294901760
    %1212 = vmatpush1.msra.mxu0 %v1211
    %1213 = vmatprep.subr.mxu0 0.0
    %v1214 = vand.u32 %v1129, 4294901760
    %1215 = vmatpush1.msra.mxu0 %v1214
    %1216 = vmatprep.subr.mxu0 0.0
    %v1217 = vand.u32 %v1130, 4294901760
    %1218 = vmatpush1.msra.mxu0 %v1217
    %1219 = vmatprep.subr.mxu0 0.0
    %v1220 = vand.u32 %v1131, 4294901760
    %1221 = vmatpush1.msra.mxu0 %v1220
    %1222 = vmatprep.subr.mxu0 0.0
    %v1223 = vand.u32 %v1132, 4294901760
    %1224 = vmatpush1.msra.mxu0 %v1223
    %1225 = vmatprep.subr.mxu0 0.0
    %v1226 = vand.u32 %v1133, 4294901760
    %1227 = vmatpush1.msra.mxu0 %v1226
    %1228 = vmatprep.subr.mxu0 0.0
    %v1229 = vand.u32 %v1134, 4294901760
    %1230 = vmatpush1.msra.mxu0 %v1229
    %v1231 = vand.u32 %v1102, 4294901760
    %v1232 = vsub.f32 %v1102, %v1231
    %v1233 = vand.u32 %v1232, 4294901760
    %v1234 = vsub.f32 %v1232, %v1233
    %v1235 = vand.u32 %v1234, 4294901760
    %1236 = vmatprep.mubr.f32.mxu0 %v1235
    %v1237 = vand.u32 %v1101, 4294901760
    %v1238 = vsub.f32 %v1101, %v1237
    %v1239 = vand.u32 %v1238, 4294901760
    %v1240 = vsub.f32 %v1238, %v1239
    %v1241 = vand.u32 %v1240, 4294901760
    %1242 = vmatmul.mubr.f32.gmra.mrb[0].mxu0 %v1241
    %v1243 = vpop.f32.mrb[0].mxu0
    %v1244 = vadd.f32 0.0, %v1243
    %v1245 = vpop.f32.mrb[0].mxu0
    %1246 = vdwg.mxu0
    %1247 = vmatprep.subr.mxu0 0.0
    %v1248 = vand.u32 %v1103, 4294901760
    %v1249 = vsub.f32 %v1103, %v1248
    %v1250 = vand.u32 %v1249, 4294901760
    %v1251 = vsub.f32 %v1249, %v1250
    %v1252 = vand.u32 %v1251, 4294901760
    %1253 = vmatpush1.msra.mxu0 %v1252
    %1254 = vmatprep.subr.mxu0 0.0
    %v1255 = vand.u32 %v1104, 4294901760
    %v1256 = vsub.f32 %v1104, %v1255
    %v1257 = vand.u32 %v1256, 4294901760
    %v1258 = vsub.f32 %v1256, %v1257
    %v1259 = vand.u32 %v1258, 4294901760
    %1260 = vmatpush1.msra.mxu0 %v1259
    %1261 = vmatprep.subr.mxu0 0.0
    %v1262 = vand.u32 %v1105, 4294901760
    %v1263 = vsub.f32 %v1105, %v1262
    %v1264 = vand.u32 %v1263, 4294901760
    %v1265 = vsub.f32 %v1263, %v1264
    %v1266 = vand.u32 %v1265, 4294901760
    %1267 = vmatpush1.msra.mxu0 %v1266
    %1268 = vmatprep.subr.mxu0 0.0
    %v1269 = vand.u32 %v1106, 4294901760
    %v1270 = vsub.f32 %v1106, %v1269
    %v1271 = vand.u32 %v1270, 4294901760
    %v1272 = vsub.f32 %v1270, %v1271
    %v1273 = vand.u32 %v1272, 4294901760
    %1274 = vmatpush1.msra.mxu0 %v1273
    %1275 = vmatprep.subr.mxu0 0.0
    %v1276 = vand.u32 %v1107, 4294901760
    %v1277 = vsub.f32 %v1107, %v1276
    %v1278 = vand.u32 %v1277, 4294901760
    %v1279 = vsub.f32 %v1277, %v1278
    %v1280 = vand.u32 %v1279, 4294901760
    %1281 = vmatpush1.msra.mxu0 %v1280
    %1282 = vmatprep.subr.mxu0 0.0
    %v1283 = vand.u32 %v1108, 4294901760
    %v1284 = vsub.f32 %v1108, %v1283
    %v1285 = vand.u32 %v1284, 4294901760
    %v1286 = vsub.f32 %v1284, %v1285
    %v1287 = vand.u32 %v1286, 4294901760
    %1288 = vmatpush1.msra.mxu0 %v1287
    %1289 = vmatprep.subr.mxu0 0.0
    %v1290 = vand.u32 %v1109, 4294901760
    %v1291 = vsub.f32 %v1109, %v1290
    %v1292 = vand.u32 %v1291, 4294901760
    %v1293 = vsub.f32 %v1291, %v1292
    %v1294 = vand.u32 %v1293, 4294901760
    %1295 = vmatpush1.msra.mxu0 %v1294
    %1296 = vmatprep.subr.mxu0 0.0
    %v1297 = vand.u32 %v1110, 4294901760
    %v1298 = vsub.f32 %v1110, %v1297
    %v1299 = vand.u32 %v1298, 4294901760
    %v1300 = vsub.f32 %v1298, %v1299
    %v1301 = vand.u32 %v1300, 4294901760
    %1302 = vmatpush1.msra.mxu0 %v1301
    %1303 = vmatprep.subr.mxu0 0.0
    %v1304 = vand.u32 %v1111, 4294901760
    %v1305 = vsub.f32 %v1111, %v1304
    %v1306 = vand.u32 %v1305, 4294901760
    %v1307 = vsub.f32 %v1305, %v1306
    %v1308 = vand.u32 %v1307, 4294901760
    %1309 = vmatpush1.msra.mxu0 %v1308
    %1310 = vmatprep.subr.mxu0 0.0
    %v1311 = vand.u32 %v1112, 4294901760
    %v1312 = vsub.f32 %v1112, %v1311
    %v1313 = vand.u32 %v1312, 4294901760
    %v1314 = vsub.f32 %v1312, %v1313
    %v1315 = vand.u32 %v1314, 4294901760
    %1316 = vmatpush1.msra.mxu0 %v1315
    %1317 = vmatprep.subr.mxu0 0.0
    %v1318 = vand.u32 %v1113, 4294901760
    %v1319 = vsub.f32 %v1113, %v1318
    %v1320 = vand.u32 %v1319, 4294901760
    %v1321 = vsub.f32 %v1319, %v1320
    %v1322 = vand.u32 %v1321, 4294901760
    %1323 = vmatpush1.msra.mxu0 %v1322
    %1324 = vmatprep.subr.mxu0 0.0
    %v1325 = vand.u32 %v1114, 4294901760
    %v1326 = vsub.f32 %v1114, %v1325
    %v1327 = vand.u32 %v1326, 4294901760
    %v1328 = vsub.f32 %v1326, %v1327
    %v1329 = vand.u32 %v1328, 4294901760
    %1330 = vmatpush1.msra.mxu0 %v1329
    %1331 = vmatprep.subr.mxu0 0.0
    %v1332 = vand.u32 %v1115, 4294901760
    %v1333 = vsub.f32 %v1115, %v1332
    %v1334 = vand.u32 %v1333, 4294901760
    %v1335 = vsub.f32 %v1333, %v1334
    %v1336 = vand.u32 %v1335, 4294901760
    %1337 = vmatpush1.msra.mxu0 %v1336
    %1338 = vmatprep.subr.mxu0 0.0
    %v1339 = vand.u32 %v1116, 4294901760
    %v1340 = vsub.f32 %v1116, %v1339
    %v1341 = vand.u32 %v1340, 4294901760
    %v1342 = vsub.f32 %v1340, %v1341
    %v1343 = vand.u32 %v1342, 4294901760
    %1344 = vmatpush1.msra.mxu0 %v1343
    %1345 = vmatprep.subr.mxu0 0.0
    %v1346 = vand.u32 %v1117, 4294901760
    %v1347 = vsub.f32 %v1117, %v1346
    %v1348 = vand.u32 %v1347, 4294901760
    %v1349 = vsub.f32 %v1347, %v1348
    %v1350 = vand.u32 %v1349, 4294901760
    %1351 = vmatpush1.msra.mxu0 %v1350
    %1352 = vmatprep.subr.mxu0 0.0
    %v1353 = vand.u32 %v1118, 4294901760
    %v1354 = vsub.f32 %v1118, %v1353
    %v1355 = vand.u32 %v1354, 4294901760
    %v1356 = vsub.f32 %v1354, %v1355
    %v1357 = vand.u32 %v1356, 4294901760
    %1358 = vmatpush1.msra.mxu0 %v1357
    %1359 = vmatprep.subr.mxu0 0.0
    %v1360 = vand.u32 %v1119, 4294901760
    %v1361 = vsub.f32 %v1119, %v1360
    %v1362 = vand.u32 %v1361, 4294901760
    %v1363 = vsub.f32 %v1361, %v1362
    %v1364 = vand.u32 %v1363, 4294901760
    %1365 = vmatpush1.msra.mxu0 %v1364
    %1366 = vmatprep.subr.mxu0 0.0
    %v1367 = vand.u32 %v1120, 4294901760
    %v1368 = vsub.f32 %v1120, %v1367
    %v1369 = vand.u32 %v1368, 4294901760
    %v1370 = vsub.f32 %v1368, %v1369
    %v1371 = vand.u32 %v1370, 4294901760
    %1372 = vmatpush1.msra.mxu0 %v1371
    %1373 = vmatprep.subr.mxu0 0.0
    %v1374 = vand.u32 %v1121, 4294901760
    %v1375 = vsub.f32 %v1121, %v1374
    %v1376 = vand.u32 %v1375, 4294901760
    %v1377 = vsub.f32 %v1375, %v1376
    %v1378 = vand.u32 %v1377, 4294901760
    %1379 = vmatpush1.msra.mxu0 %v1378
    %1380 = vmatprep.subr.mxu0 0.0
    %v1381 = vand.u32 %v1122, 4294901760
    %v1382 = vsub.f32 %v1122, %v1381
    %v1383 = vand.u32 %v1382, 4294901760
    %v1384 = vsub.f32 %v1382, %v1383
    %v1385 = vand.u32 %v1384, 4294901760
    %1386 = vmatpush1.msra.mxu0 %v1385
    %1387 = vmatprep.subr.mxu0 0.0
    %v1388 = vand.u32 %v1123, 4294901760
    %v1389 = vsub.f32 %v1123, %v1388
    %v1390 = vand.u32 %v1389, 4294901760
    %v1391 = vsub.f32 %v1389, %v1390
    %v1392 = vand.u32 %v1391, 4294901760
    %1393 = vmatpush1.msra.mxu0 %v1392
    %1394 = vmatprep.subr.mxu0 0.0
    %v1395 = vand.u32 %v1124, 4294901760
    %v1396 = vsub.f32 %v1124, %v1395
    %v1397 = vand.u32 %v1396, 4294901760
    %v1398 = vsub.f32 %v1396, %v1397
    %v1399 = vand.u32 %v1398, 4294901760
    %1400 = vmatpush1.msra.mxu0 %v1399
    %1401 = vmatprep.subr.mxu0 0.0
    %v1402 = vand.u32 %v1125, 4294901760
    %v1403 = vsub.f32 %v1125, %v1402
    %v1404 = vand.u32 %v1403, 4294901760
    %v1405 = vsub.f32 %v1403, %v1404
    %v1406 = vand.u32 %v1405, 4294901760
    %1407 = vmatpush1.msra.mxu0 %v1406
    %1408 = vmatprep.subr.mxu0 0.0
    %v1409 = vand.u32 %v1126, 4294901760
    %v1410 = vsub.f32 %v1126, %v1409
    %v1411 = vand.u32 %v1410, 4294901760
    %v1412 = vsub.f32 %v1410, %v1411
    %v1413 = vand.u32 %v1412, 4294901760
    %1414 = vmatpush1.msra.mxu0 %v1413
    %1415 = vmatprep.subr.mxu0 0.0
    %v1416 = vand.u32 %v1127, 4294901760
    %v1417 = vsub.f32 %v1127, %v1416
    %v1418 = vand.u32 %v1417, 4294901760
    %v1419 = vsub.f32 %v1417, %v1418
    %v1420 = vand.u32 %v1419, 4294901760
    %1421 = vmatpush1.msra.mxu0 %v1420
    %1422 = vmatprep.subr.mxu0 0.0
    %v1423 = vand.u32 %v1128, 4294901760
    %v1424 = vsub.f32 %v1128, %v1423
    %v1425 = vand.u32 %v1424, 4294901760
    %v1426 = vsub.f32 %v1424, %v1425
    %v1427 = vand.u32 %v1426, 4294901760
    %1428 = vmatpush1.msra.mxu0 %v1427
    %1429 = vmatprep.subr.mxu0 0.0
    %v1430 = vand.u32 %v1129, 4294901760
    %v1431 = vsub.f32 %v1129, %v1430
    %v1432 = vand.u32 %v1431, 4294901760
    %v1433 = vsub.f32 %v1431, %v1432
    %v1434 = vand.u32 %v1433, 4294901760
    %1435 = vmatpush1.msra.mxu0 %v1434
    %1436 = vmatprep.subr.mxu0 0.0
    %v1437 = vand.u32 %v1130, 4294901760
    %v1438 = vsub.f32 %v1130, %v1437
    %v1439 = vand.u32 %v1438, 4294901760
    %v1440 = vsub.f32 %v1438, %v1439
    %v1441 = vand.u32 %v1440, 4294901760
    %1442 = vmatpush1.msra.mxu0 %v1441
    %1443 = vmatprep.subr.mxu0 0.0
    %v1444 = vand.u32 %v1131, 4294901760
    %v1445 = vsub.f32 %v1131, %v1444
    %v1446 = vand.u32 %v1445, 4294901760
    %v1447 = vsub.f32 %v1445, %v1446
    %v1448 = vand.u32 %v1447, 4294901760
    %1449 = vmatpush1.msra.mxu0 %v1448
    %1450 = vmatprep.subr.mxu0 0.0
    %v1451 = vand.u32 %v1132, 4294901760
    %v1452 = vsub.f32 %v1132, %v1451
    %v1453 = vand.u32 %v1452, 4294901760
    %v1454 = vsub.f32 %v1452, %v1453
    %v1455 = vand.u32 %v1454, 4294901760
    %1456 = vmatpush1.msra.mxu0 %v1455
    %1457 = vmatprep.subr.mxu0 0.0
    %v1458 = vand.u32 %v1133, 4294901760
    %v1459 = vsub.f32 %v1133, %v1458
    %v1460 = vand.u32 %v1459, 4294901760
    %v1461 = vsub.f32 %v1459, %v1460
    %v1462 = vand.u32 %v1461, 4294901760
    %1463 = vmatpush1.msra.mxu0 %v1462
    %1464 = vmatprep.subr.mxu0 0.0
    %v1465 = vand.u32 %v1134, 4294901760
    %v1466 = vsub.f32 %v1134, %v1465
    %v1467 = vand.u32 %v1466, 4294901760
    %v1468 = vsub.f32 %v1466, %v1467
    %v1469 = vand.u32 %v1468, 4294901760
    %1470 = vmatpush1.msra.mxu0 %v1469
    %v1471 = vand.u32 %v1102, 4294901760
    %1472 = vmatprep.mubr.f32.mxu0 %v1471
    %v1473 = vand.u32 %v1101, 4294901760
    %1474 = vmatmul.mubr.f32.gmra.mrb[0].mxu0 %v1473
    %v1475 = vpop.f32.mrb[0].mxu0
    %v1476 = vadd.f32 %v1244, %v1475
    %v1477 = vpop.f32.mrb[0].mxu0
    %1478 = vdwg.mxu0
    %1479 = vmatprep.subr.mxu0 0.0
    %v1480 = vand.u32 %v1103, 4294901760
    %v1481 = vsub.f32 %v1103, %v1480
    %1482 = vmatpush1.msra.mxu0 %v1481
    %1483 = vmatprep.subr.mxu0 0.0
    %v1484 = vand.u32 %v1104, 4294901760
    %v1485 = vsub.f32 %v1104, %v1484
    %1486 = vmatpush1.msra.mxu0 %v1485
    %1487 = vmatprep.subr.mxu0 0.0
    %v1488 = vand.u32 %v1105, 4294901760
    %v1489 = vsub.f32 %v1105, %v1488
    %1490 = vmatpush1.msra.mxu0 %v1489
    %1491 = vmatprep.subr.mxu0 0.0
    %v1492 = vand.u32 %v1106, 4294901760
    %v1493 = vsub.f32 %v1106, %v1492
    %1494 = vmatpush1.msra.mxu0 %v1493
    %1495 = vmatprep.subr.mxu0 0.0
    %v1496 = vand.u32 %v1107, 4294901760
    %v1497 = vsub.f32 %v1107, %v1496
    %1498 = vmatpush1.msra.mxu0 %v1497
    %1499 = vmatprep.subr.mxu0 0.0
    %v1500 = vand.u32 %v1108, 4294901760
    %v1501 = vsub.f32 %v1108, %v1500
    %1502 = vmatpush1.msra.mxu0 %v1501
    %1503 = vmatprep.subr.mxu0 0.0
    %v1504 = vand.u32 %v1109, 4294901760
    %v1505 = vsub.f32 %v1109, %v1504
    %1506 = vmatpush1.msra.mxu0 %v1505
    %1507 = vmatprep.subr.mxu0 0.0
    %v1508 = vand.u32 %v1110, 4294901760
    %v1509 = vsub.f32 %v1110, %v1508
    %1510 = vmatpush1.msra.mxu0 %v1509
    %1511 = vmatprep.subr.mxu0 0.0
    %v1512 = vand.u32 %v1111, 4294901760
    %v1513 = vsub.f32 %v1111, %v1512
    %1514 = vmatpush1.msra.mxu0 %v1513
    %1515 = vmatprep.subr.mxu0 0.0
    %v1516 = vand.u32 %v1112, 4294901760
    %v1517 = vsub.f32 %v1112, %v1516
    %1518 = vmatpush1.msra.mxu0 %v1517
    %1519 = vmatprep.subr.mxu0 0.0
    %v1520 = vand.u32 %v1113, 4294901760
    %v1521 = vsub.f32 %v1113, %v1520
    %1522 = vmatpush1.msra.mxu0 %v1521
    %1523 = vmatprep.subr.mxu0 0.0
    %v1524 = vand.u32 %v1114, 4294901760
    %v1525 = vsub.f32 %v1114, %v1524
    %1526 = vmatpush1.msra.mxu0 %v1525
    %1527 = vmatprep.subr.mxu0 0.0
    %v1528 = vand.u32 %v1115, 4294901760
    %v1529 = vsub.f32 %v1115, %v1528
    %1530 = vmatpush1.msra.mxu0 %v1529
    %1531 = vmatprep.subr.mxu0 0.0
    %v1532 = vand.u32 %v1116, 4294901760
    %v1533 = vsub.f32 %v1116, %v1532
    %1534 = vmatpush1.msra.mxu0 %v1533
    %1535 = vmatprep.subr.mxu0 0.0
    %v1536 = vand.u32 %v1117, 4294901760
    %v1537 = vsub.f32 %v1117, %v1536
    %1538 = vmatpush1.msra.mxu0 %v1537
    %1539 = vmatprep.subr.mxu0 0.0
    %v1540 = vand.u32 %v1118, 4294901760
    %v1541 = vsub.f32 %v1118, %v1540
    %1542 = vmatpush1.msra.mxu0 %v1541
    %1543 = vmatprep.subr.mxu0 0.0
    %v1544 = vand.u32 %v1119, 4294901760
    %v1545 = vsub.f32 %v1119, %v1544
    %1546 = vmatpush1.msra.mxu0 %v1545
    %1547 = vmatprep.subr.mxu0 0.0
    %v1548 = vand.u32 %v1120, 4294901760
    %v1549 = vsub.f32 %v1120, %v1548
    %1550 = vmatpush1.msra.mxu0 %v1549
    %1551 = vmatprep.subr.mxu0 0.0
    %v1552 = vand.u32 %v1121, 4294901760
    %v1553 = vsub.f32 %v1121, %v1552
    %1554 = vmatpush1.msra.mxu0 %v1553
    %1555 = vmatprep.subr.mxu0 0.0
    %v1556 = vand.u32 %v1122, 4294901760
    %v1557 = vsub.f32 %v1122, %v1556
    %1558 = vmatpush1.msra.mxu0 %v1557
    %1559 = vmatprep.subr.mxu0 0.0
    %v1560 = vand.u32 %v1123, 4294901760
    %v1561 = vsub.f32 %v1123, %v1560
    %1562 = vmatpush1.msra.mxu0 %v1561
    %1563 = vmatprep.subr.mxu0 0.0
    %v1564 = vand.u32 %v1124, 4294901760
    %v1565 = vsub.f32 %v1124, %v1564
    %1566 = vmatpush1.msra.mxu0 %v1565
    %1567 = vmatprep.subr.mxu0 0.0
    %v1568 = vand.u32 %v1125, 4294901760
    %v1569 = vsub.f32 %v1125, %v1568
    %1570 = vmatpush1.msra.mxu0 %v1569
    %1571 = vmatprep.subr.mxu0 0.0
    %v1572 = vand.u32 %v1126, 4294901760
    %v1573 = vsub.f32 %v1126, %v1572
    %1574 = vmatpush1.msra.mxu0 %v1573
    %1575 = vmatprep.subr.mxu0 0.0
    %v1576 = vand.u32 %v1127, 4294901760
    %v1577 = vsub.f32 %v1127, %v1576
    %1578 = vmatpush1.msra.mxu0 %v1577
    %1579 = vmatprep.subr.mxu0 0.0
    %v1580 = vand.u32 %v1128, 4294901760
    %v1581 = vsub.f32 %v1128, %v1580
    %1582 = vmatpush1.msra.mxu0 %v1581
    %1583 = vmatprep.subr.mxu0 0.0
    %v1584 = vand.u32 %v1129, 4294901760
    %v1585 = vsub.f32 %v1129, %v1584
    %1586 = vmatpush1.msra.mxu0 %v1585
    %1587 = vmatprep.subr.mxu0 0.0
    %v1588 = vand.u32 %v1130, 4294901760
    %v1589 = vsub.f32 %v1130, %v1588
    %1590 = vmatpush1.msra.mxu0 %v1589
    %1591 = vmatprep.subr.mxu0 0.0
    %v1592 = vand.u32 %v1131, 4294901760
    %v1593 = vsub.f32 %v1131, %v1592
    %1594 = vmatpush1.msra.mxu0 %v1593
    %1595 = vmatprep.subr.mxu0 0.0
    %v1596 = vand.u32 %v1132, 4294901760
    %v1597 = vsub.f32 %v1132, %v1596
    %1598 = vmatpush1.msra.mxu0 %v1597
    %1599 = vmatprep.subr.mxu0 0.0
    %v1600 = vand.u32 %v1133, 4294901760
    %v1601 = vsub.f32 %v1133, %v1600
    %1602 = vmatpush1.msra.mxu0 %v1601
    %1603 = vmatprep.subr.mxu0 0.0
    %v1604 = vand.u32 %v1134, 4294901760
    %v1605 = vsub.f32 %v1134, %v1604
    %1606 = vmatpush1.msra.mxu0 %v1605
    %v1607 = vand.u32 %v1102, 4294901760
    %v1608 = vsub.f32 %v1102, %v1607
    %1609 = vmatprep.mubr.f32.mxu0 %v1608
    %v1610 = vand.u32 %v1101, 4294901760
    %v1611 = vsub.f32 %v1101, %v1610
    %1612 = vmatmul.mubr.f32.gmra.mrb[0].mxu0 %v1611
    %v1613 = vpop.f32.mrb[0].mxu0
    %v1614 = vadd.f32 %v1476, %v1613
    %v1615 = vpop.f32.mrb[0].mxu0
    %1616 = vdwg.mxu0
    %1617 = vmatprep.subr.mxu0 0.0
    %v1618 = vand.u32 %v1103, 4294901760
    %1619 = vmatpush1.msra.mxu0 %v1618
    %1620 = vmatprep.subr.mxu0 0.0
    %v1621 = vand.u32 %v1104, 4294901760
    %1622 = vmatpush1.msra.mxu0 %v1621
    %1623 = vmatprep.subr.mxu0 0.0
    %v1624 = vand.u32 %v1105, 4294901760
    %1625 = vmatpush1.msra.mxu0 %v1624
    %1626 = vmatprep.subr.mxu0 0.0
    %v1627 = vand.u32 %v1106, 4294901760
    %1628 = vmatpush1.msra.mxu0 %v1627
    %1629 = vmatprep.subr.mxu0 0.0
    %v1630 = vand.u32 %v1107, 4294901760
    %1631 = vmatpush1.msra.mxu0 %v1630
    %1632 = vmatprep.subr.mxu0 0.0
    %v1633 = vand.u32 %v1108, 4294901760
    %1634 = vmatpush1.msra.mxu0 %v1633
    %1635 = vmatprep.subr.mxu0 0.0
    %v1636 = vand.u32 %v1109, 4294901760
    %1637 = vmatpush1.msra.mxu0 %v1636
    %1638 = vmatprep.subr.mxu0 0.0
    %v1639 = vand.u32 %v1110, 4294901760
    %1640 = vmatpush1.msra.mxu0 %v1639
    %1641 = vmatprep.subr.mxu0 0.0
    %v1642 = vand.u32 %v1111, 4294901760
    %1643 = vmatpush1.msra.mxu0 %v1642
    %1644 = vmatprep.subr.mxu0 0.0
    %v1645 = vand.u32 %v1112, 4294901760
    %1646 = vmatpush1.msra.mxu0 %v1645
    %1647 = vmatprep.subr.mxu0 0.0
    %v1648 = vand.u32 %v1113, 4294901760
    %1649 = vmatpush1.msra.mxu0 %v1648
    %1650 = vmatprep.subr.mxu0 0.0
    %v1651 = vand.u32 %v1114, 4294901760
    %1652 = vmatpush1.msra.mxu0 %v1651
    %1653 = vmatprep.subr.mxu0 0.0
    %v1654 = vand.u32 %v1115, 4294901760
    %1655 = vmatpush1.msra.mxu0 %v1654
    %1656 = vmatprep.subr.mxu0 0.0
    %v1657 = vand.u32 %v1116, 4294901760
    %1658 = vmatpush1.msra.mxu0 %v1657
    %1659 = vmatprep.subr.mxu0 0.0
    %v1660 = vand.u32 %v1117, 4294901760
    %1661 = vmatpush1.msra.mxu0 %v1660
    %1662 = vmatprep.subr.mxu0 0.0
    %v1663 = vand.u32 %v1118, 4294901760
    %1664 = vmatpush1.msra.mxu0 %v1663
    %1665 = vmatprep.subr.mxu0 0.0
    %v1666 = vand.u32 %v1119, 4294901760
    %1667 = vmatpush1.msra.mxu0 %v1666
    %1668 = vmatprep.subr.mxu0 0.0
    %v1669 = vand.u32 %v1120, 4294901760
    %1670 = vmatpush1.msra.mxu0 %v1669
    %1671 = vmatprep.subr.mxu0 0.0
    %v1672 = vand.u32 %v1121, 4294901760
    %1673 = vmatpush1.msra.mxu0 %v1672
    %1674 = vmatprep.subr.mxu0 0.0
    %v1675 = vand.u32 %v1122, 4294901760
    %1676 = vmatpush1.msra.mxu0 %v1675
    %1677 = vmatprep.subr.mxu0 0.0
    %v1678 = vand.u32 %v1123, 4294901760
    %1679 = vmatpush1.msra.mxu0 %v1678
    %1680 = vmatprep.subr.mxu0 0.0
    %v1681 = vand.u32 %v1124, 4294901760
    %1682 = vmatpush1.msra.mxu0 %v1681
    %1683 = vmatprep.subr.mxu0 0.0
    %v1684 = vand.u32 %v1125, 4294901760
    %1685 = vmatpush1.msra.mxu0 %v1684
    %1686 = vmatprep.subr.mxu0 0.0
    %v1687 = vand.u32 %v1126, 4294901760
    %1688 = vmatpush1.msra.mxu0 %v1687
    %1689 = vmatprep.subr.mxu0 0.0
    %v1690 = vand.u32 %v1127, 4294901760
    %1691 = vmatpush1.msra.mxu0 %v1690
    %1692 = vmatprep.subr.mxu0 0.0
    %v1693 = vand.u32 %v1128, 4294901760
    %1694 = vmatpush1.msra.mxu0 %v1693
    %1695 = vmatprep.subr.mxu0 0.0
    %v1696 = vand.u32 %v1129, 4294901760
    %1697 = vmatpush1.msra.mxu0 %v1696
    %1698 = vmatprep.subr.mxu0 0.0
    %v1699 = vand.u32 %v1130, 4294901760
    %1700 = vmatpush1.msra.mxu0 %v1699
    %1701 = vmatprep.subr.mxu0 0.0
    %v1702 = vand.u32 %v1131, 4294901760
    %1703 = vmatpush1.msra.mxu0 %v1702
    %1704 = vmatprep.subr.mxu0 0.0
    %v1705 = vand.u32 %v1132, 4294901760
    %1706 = vmatpush1.msra.mxu0 %v1705
    %1707 = vmatprep.subr.mxu0 0.0
    %v1708 = vand.u32 %v1133, 4294901760
    %1709 = vmatpush1.msra.mxu0 %v1708
    %1710 = vmatprep.subr.mxu0 0.0
    %v1711 = vand.u32 %v1134, 4294901760
    %1712 = vmatpush1.msra.mxu0 %v1711
    %v1713 = vand.u32 %v1102, 4294901760
    %v1714 = vsub.f32 %v1102, %v1713
    %v1715 = vand.u32 %v1714, 4294901760
    %1716 = vmatprep.mubr.f32.mxu0 %v1715
    %v1717 = vand.u32 %v1101, 4294901760
    %v1718 = vsub.f32 %v1101, %v1717
    %v1719 = vand.u32 %v1718, 4294901760
    %1720 = vmatmul.mubr.f32.gmra.mrb[0].mxu0 %v1719
    %v1721 = vpop.f32.mrb[0].mxu0
    %v1722 = vadd.f32 %v1614, %v1721
    %v1723 = vpop.f32.mrb[0].mxu0
    %1724 = vdwg.mxu0
    %1725 = vmatprep.subr.mxu0 0.0
    %v1726 = vand.u32 %v1103, 4294901760
    %v1727 = vsub.f32 %v1103, %v1726
    %v1728 = vand.u32 %v1727, 4294901760
    %1729 = vmatpush1.msra.mxu0 %v1728
    %1730 = vmatprep.subr.mxu0 0.0
    %v1731 = vand.u32 %v1104, 4294901760
    %v1732 = vsub.f32 %v1104, %v1731
    %v1733 = vand.u32 %v1732, 4294901760
    %1734 = vmatpush1.msra.mxu0 %v1733
    %1735 = vmatprep.subr.mxu0 0.0
    %v1736 = vand.u32 %v1105, 4294901760
    %v1737 = vsub.f32 %v1105, %v1736
    %v1738 = vand.u32 %v1737, 4294901760
    %1739 = vmatpush1.msra.mxu0 %v1738
    %1740 = vmatprep.subr.mxu0 0.0
    %v1741 = vand.u32 %v1106, 4294901760
    %v1742 = vsub.f32 %v1106, %v1741
    %v1743 = vand.u32 %v1742, 4294901760
    %1744 = vmatpush1.msra.mxu0 %v1743
    %1745 = vmatprep.subr.mxu0 0.0
    %v1746 = vand.u32 %v1107, 4294901760
    %v1747 = vsub.f32 %v1107, %v1746
    %v1748 = vand.u32 %v1747, 4294901760
    %1749 = vmatpush1.msra.mxu0 %v1748
    %1750 = vmatprep.subr.mxu0 0.0
    %v1751 = vand.u32 %v1108, 4294901760
    %v1752 = vsub.f32 %v1108, %v1751
    %v1753 = vand.u32 %v1752, 4294901760
    %1754 = vmatpush1.msra.mxu0 %v1753
    %1755 = vmatprep.subr.mxu0 0.0
    %v1756 = vand.u32 %v1109, 4294901760
    %v1757 = vsub.f32 %v1109, %v1756
    %v1758 = vand.u32 %v1757, 4294901760
    %1759 = vmatpush1.msra.mxu0 %v1758
    %1760 = vmatprep.subr.mxu0 0.0
    %v1761 = vand.u32 %v1110, 4294901760
    %v1762 = vsub.f32 %v1110, %v1761
    %v1763 = vand.u32 %v1762, 4294901760
    %1764 = vmatpush1.msra.mxu0 %v1763
    %1765 = vmatprep.subr.mxu0 0.0
    %v1766 = vand.u32 %v1111, 4294901760
    %v1767 = vsub.f32 %v1111, %v1766
    %v1768 = vand.u32 %v1767, 4294901760
    %1769 = vmatpush1.msra.mxu0 %v1768
    %1770 = vmatprep.subr.mxu0 0.0
    %v1771 = vand.u32 %v1112, 4294901760
    %v1772 = vsub.f32 %v1112, %v1771
    %v1773 = vand.u32 %v1772, 4294901760
    %1774 = vmatpush1.msra.mxu0 %v1773
    %1775 = vmatprep.subr.mxu0 0.0
    %v1776 = vand.u32 %v1113, 4294901760
    %v1777 = vsub.f32 %v1113, %v1776
    %v1778 = vand.u32 %v1777, 4294901760
    %1779 = vmatpush1.msra.mxu0 %v1778
    %1780 = vmatprep.subr.mxu0 0.0
    %v1781 = vand.u32 %v1114, 4294901760
    %v1782 = vsub.f32 %v1114, %v1781
    %v1783 = vand.u32 %v1782, 4294901760
    %1784 = vmatpush1.msra.mxu0 %v1783
    %1785 = vmatprep.subr.mxu0 0.0
    %v1786 = vand.u32 %v1115, 4294901760
    %v1787 = vsub.f32 %v1115, %v1786
    %v1788 = vand.u32 %v1787, 4294901760
    %1789 = vmatpush1.msra.mxu0 %v1788
    %1790 = vmatprep.subr.mxu0 0.0
    %v1791 = vand.u32 %v1116, 4294901760
    %v1792 = vsub.f32 %v1116, %v1791
    %v1793 = vand.u32 %v1792, 4294901760
    %1794 = vmatpush1.msra.mxu0 %v1793
    %1795 = vmatprep.subr.mxu0 0.0
    %v1796 = vand.u32 %v1117, 4294901760
    %v1797 = vsub.f32 %v1117, %v1796
    %v1798 = vand.u32 %v1797, 4294901760
    %1799 = vmatpush1.msra.mxu0 %v1798
    %1800 = vmatprep.subr.mxu0 0.0
    %v1801 = vand.u32 %v1118, 4294901760
    %v1802 = vsub.f32 %v1118, %v1801
    %v1803 = vand.u32 %v1802, 4294901760
    %1804 = vmatpush1.msra.mxu0 %v1803
    %1805 = vmatprep.subr.mxu0 0.0
    %v1806 = vand.u32 %v1119, 4294901760
    %v1807 = vsub.f32 %v1119, %v1806
    %v1808 = vand.u32 %v1807, 4294901760
    %1809 = vmatpush1.msra.mxu0 %v1808
    %1810 = vmatprep.subr.mxu0 0.0
    %v1811 = vand.u32 %v1120, 4294901760
    %v1812 = vsub.f32 %v1120, %v1811
    %v1813 = vand.u32 %v1812, 4294901760
    %1814 = vmatpush1.msra.mxu0 %v1813
    %1815 = vmatprep.subr.mxu0 0.0
    %v1816 = vand.u32 %v1121, 4294901760
    %v1817 = vsub.f32 %v1121, %v1816
    %v1818 = vand.u32 %v1817, 4294901760
    %1819 = vmatpush1.msra.mxu0 %v1818
    %1820 = vmatprep.subr.mxu0 0.0
    %v1821 = vand.u32 %v1122, 4294901760
    %v1822 = vsub.f32 %v1122, %v1821
    %v1823 = vand.u32 %v1822, 4294901760
    %1824 = vmatpush1.msra.mxu0 %v1823
    %1825 = vmatprep.subr.mxu0 0.0
    %v1826 = vand.u32 %v1123, 4294901760
    %v1827 = vsub.f32 %v1123, %v1826
    %v1828 = vand.u32 %v1827, 4294901760
    %1829 = vmatpush1.msra.mxu0 %v1828
    %1830 = vmatprep.subr.mxu0 0.0
    %v1831 = vand.u32 %v1124, 4294901760
    %v1832 = vsub.f32 %v1124, %v1831
    %v1833 = vand.u32 %v1832, 4294901760
    %1834 = vmatpush1.msra.mxu0 %v1833
    %1835 = vmatprep.subr.mxu0 0.0
    %v1836 = vand.u32 %v1125, 4294901760
    %v1837 = vsub.f32 %v1125, %v1836
    %v1838 = vand.u32 %v1837, 4294901760
    %1839 = vmatpush1.msra.mxu0 %v1838
    %1840 = vmatprep.subr.mxu0 0.0
    %v1841 = vand.u32 %v1126, 4294901760
    %v1842 = vsub.f32 %v1126, %v1841
    %v1843 = vand.u32 %v1842, 4294901760
    %1844 = vmatpush1.msra.mxu0 %v1843
    %1845 = vmatprep.subr.mxu0 0.0
    %v1846 = vand.u32 %v1127, 4294901760
    %v1847 = vsub.f32 %v1127, %v1846
    %v1848 = vand.u32 %v1847, 4294901760
    %1849 = vmatpush1.msra.mxu0 %v1848
    %1850 = vmatprep.subr.mxu0 0.0
    %v1851 = vand.u32 %v1128, 4294901760
    %v1852 = vsub.f32 %v1128, %v1851
    %v1853 = vand.u32 %v1852, 4294901760
    %1854 = vmatpush1.msra.mxu0 %v1853
    %1855 = vmatprep.subr.mxu0 0.0
    %v1856 = vand.u32 %v1129, 4294901760
    %v1857 = vsub.f32 %v1129, %v1856
    %v1858 = vand.u32 %v1857, 4294901760
    %1859 = vmatpush1.msra.mxu0 %v1858
    %1860 = vmatprep.subr.mxu0 0.0
    %v1861 = vand.u32 %v1130, 4294901760
    %v1862 = vsub.f32 %v1130, %v1861
    %v1863 = vand.u32 %v1862, 4294901760
    %1864 = vmatpush1.msra.mxu0 %v1863
    %1865 = vmatprep.subr.mxu0 0.0
    %v1866 = vand.u32 %v1131, 4294901760
    %v1867 = vsub.f32 %v1131, %v1866
    %v1868 = vand.u32 %v1867, 4294901760
    %1869 = vmatpush1.msra.mxu0 %v1868
    %1870 = vmatprep.subr.mxu0 0.0
    %v1871 = vand.u32 %v1132, 4294901760
    %v1872 = vsub.f32 %v1132, %v1871
    %v1873 = vand.u32 %v1872, 4294901760
    %1874 = vmatpush1.msra.mxu0 %v1873
    %1875 = vmatprep.subr.mxu0 0.0
    %v1876 = vand.u32 %v1133, 4294901760
    %v1877 = vsub.f32 %v1133, %v1876
    %v1878 = vand.u32 %v1877, 4294901760
    %1879 = vmatpush1.msra.mxu0 %v1878
    %1880 = vmatprep.subr.mxu0 0.0
    %v1881 = vand.u32 %v1134, 4294901760
    %v1882 = vsub.f32 %v1134, %v1881
    %v1883 = vand.u32 %v1882, 4294901760
    %1884 = vmatpush1.msra.mxu0 %v1883
    %v1885 = vand.u32 %v1102, 4294901760
    %1886 = vmatprep.mubr.f32.mxu0 %v1885
    %v1887 = vand.u32 %v1101, 4294901760
    %1888 = vmatmul.mubr.f32.gmra.mrb[0].mxu0 %v1887
    %v1889 = vpop.f32.mrb[0].mxu0
    %v1890 = vadd.f32 %v1722, %v1889
    %v1891 = vpop.f32.mrb[0].mxu0
    %1892 = vdwg.mxu0
    %1893 = vmatprep.subr.mxu0 0.0
    %v1894 = vand.u32 %v1103, 4294901760
    %1895 = vmatpush1.msra.mxu0 %v1894
    %1896 = vmatprep.subr.mxu0 0.0
    %v1897 = vand.u32 %v1104, 4294901760
    %1898 = vmatpush1.msra.mxu0 %v1897
    %1899 = vmatprep.subr.mxu0 0.0
    %v1900 = vand.u32 %v1105, 4294901760
    %1901 = vmatpush1.msra.mxu0 %v1900
    %1902 = vmatprep.subr.mxu0 0.0
    %v1903 = vand.u32 %v1106, 4294901760
    %1904 = vmatpush1.msra.mxu0 %v1903
    %1905 = vmatprep.subr.mxu0 0.0
    %v1906 = vand.u32 %v1107, 4294901760
    %1907 = vmatpush1.msra.mxu0 %v1906
    %1908 = vmatprep.subr.mxu0 0.0
    %v1909 = vand.u32 %v1108, 4294901760
    %1910 = vmatpush1.msra.mxu0 %v1909
    %1911 = vmatprep.subr.mxu0 0.0
    %v1912 = vand.u32 %v1109, 4294901760
    %1913 = vmatpush1.msra.mxu0 %v1912
    %1914 = vmatprep.subr.mxu0 0.0
    %v1915 = vand.u32 %v1110, 4294901760
    %1916 = vmatpush1.msra.mxu0 %v1915
    %1917 = vmatprep.subr.mxu0 0.0
    %v1918 = vand.u32 %v1111, 4294901760
    %1919 = vmatpush1.msra.mxu0 %v1918
    %1920 = vmatprep.subr.mxu0 0.0
    %v1921 = vand.u32 %v1112, 4294901760
    %1922 = vmatpush1.msra.mxu0 %v1921
    %1923 = vmatprep.subr.mxu0 0.0
    %v1924 = vand.u32 %v1113, 4294901760
    %1925 = vmatpush1.msra.mxu0 %v1924
    %1926 = vmatprep.subr.mxu0 0.0
    %v1927 = vand.u32 %v1114, 4294901760
    %1928 = vmatpush1.msra.mxu0 %v1927
    %1929 = vmatprep.subr.mxu0 0.0
    %v1930 = vand.u32 %v1115, 4294901760
    %1931 = vmatpush1.msra.mxu0 %v1930
    %1932 = vmatprep.subr.mxu0 0.0
    %v1933 = vand.u32 %v1116, 4294901760
    %1934 = vmatpush1.msra.mxu0 %v1933
    %1935 = vmatprep.subr.mxu0 0.0
    %v1936 = vand.u32 %v1117, 4294901760
    %1937 = vmatpush1.msra.mxu0 %v1936
    %1938 = vmatprep.subr.mxu0 0.0
    %v1939 = vand.u32 %v1118, 4294901760
    %1940 = vmatpush1.msra.mxu0 %v1939
    %1941 = vmatprep.subr.mxu0 0.0
    %v1942 = vand.u32 %v1119, 4294901760
    %1943 = vmatpush1.msra.mxu0 %v1942
    %1944 = vmatprep.subr.mxu0 0.0
    %v1945 = vand.u32 %v1120, 4294901760
    %1946 = vmatpush1.msra.mxu0 %v1945
    %1947 = vmatprep.subr.mxu0 0.0
    %v1948 = vand.u32 %v1121, 4294901760
    %1949 = vmatpush1.msra.mxu0 %v1948
    %1950 = vmatprep.subr.mxu0 0.0
    %v1951 = vand.u32 %v1122, 4294901760
    %1952 = vmatpush1.msra.mxu0 %v1951
    %1953 = vmatprep.subr.mxu0 0.0
    %v1954 = vand.u32 %v1123, 4294901760
    %1955 = vmatpush1.msra.mxu0 %v1954
    %1956 = vmatprep.subr.mxu0 0.0
    %v1957 = vand.u32 %v1124, 4294901760
    %1958 = vmatpush1.msra.mxu0 %v1957
    %1959 = vmatprep.subr.mxu0 0.0
    %v1960 = vand.u32 %v1125, 4294901760
    %1961 = vmatpush1.msra.mxu0 %v1960
    %1962 = vmatprep.subr.mxu0 0.0
    %v1963 = vand.u32 %v1126, 4294901760
    %1964 = vmatpush1.msra.mxu0 %v1963
    %1965 = vmatprep.subr.mxu0 0.0
    %v1966 = vand.u32 %v1127, 4294901760
    %1967 = vmatpush1.msra.mxu0 %v1966
    %1968 = vmatprep.subr.mxu0 0.0
    %v1969 = vand.u32 %v1128, 4294901760
    %1970 = vmatpush1.msra.mxu0 %v1969
    %1971 = vmatprep.subr.mxu0 0.0
    %v1972 = vand.u32 %v1129, 4294901760
    %1973 = vmatpush1.msra.mxu0 %v1972
    %1974 = vmatprep.subr.mxu0 0.0
    %v1975 = vand.u32 %v1130, 4294901760
    %1976 = vmatpush1.msra.mxu0 %v1975
    %1977 = vmatprep.subr.mxu0 0.0
    %v1978 = vand.u32 %v1131, 4294901760
    %1979 = vmatpush1.msra.mxu0 %v1978
    %1980 = vmatprep.subr.mxu0 0.0
    %v1981 = vand.u32 %v1132, 4294901760
    %1982 = vmatpush1.msra.mxu0 %v1981
    %1983 = vmatprep.subr.mxu0 0.0
    %v1984 = vand.u32 %v1133, 4294901760
    %1985 = vmatpush1.msra.mxu0 %v1984
    %1986 = vmatprep.subr.mxu0 0.0
    %v1987 = vand.u32 %v1134, 4294901760
    %1988 = vmatpush1.msra.mxu0 %v1987
    %v1989 = vand.u32 %v1102, 4294901760
    %1990 = vmatprep.mubr.f32.mxu0 %v1989
    %v1991 = vand.u32 %v1101, 4294901760
    %1992 = vmatmul.mubr.f32.gmra.mrb[0].mxu0 %v1991
    %v1993 = vpop.f32.mrb[0].mxu0
    %v1994 = vadd.f32 %v1890, %v1993
    %v1995 = vpop.f32.mrb[0].mxu0
    %1996 = vdwg.mxu0
    %vm1997 = vcmp.ne.f32.partialorder %v42, 0.0
    %1999 = vrot.lane.b32.xlu0 %v1102, 1
    %v2000 = vpop.permute.xlu0 %1999
    %v2002 = vsel %vm1997, %v1994, %v2000
    %v2003 = vlog2.pop %v2002
    %v2004 = vmul.f32 %v2003, 0.6931472
    %v2005 = vmax.f32 %v2004, -100.0
    %v2006 = vsub.f32 1.0, %v2002
    %v2007 = vlog2.pop %v2006
    %v2008 = vmul.f32 %v2007, 0.6931472
    %v2009 = vmax.f32 %v2008, -100.0
    %v2010 = vmul.f32 %v42, %v2005
    %v2011 = vsub.f32 1.0, %v42
    %v2012 = vmul.f32 %v2011, %v2009
    %v2013 = vadd.f32 %v2010, %v2012
    %v2014 = vsub.f32 0.0, %v2013
    %vm2015 = vcmask 7168
    %2016 = vst.msk [vmem:[%s3] sm:$0xff] %vm2015, %v2014
    // Predicated region
    $region22: #{tpu_custom_call.1} parent=1 // pred_check
      _
    $region23: #{tpu_custom_call.1} parent=1 // pred_check_branch
      %2018 = sbr.rel (0) target = $region25
    $region24: #{tpu_custom_call.1} parent=1 // pred_region
      _
    $region25: #{tpu_custom_call.1} parent=1 // pred_fallthru
      _
    // Predicated region
    $region26: #{tpu_custom_call.1} parent=1 // pred_check
      _
    $region27: #{tpu_custom_call.1} parent=1 // pred_check_branch
      %2020 = sbr.rel (0) target = $region29
    $region28: #{tpu_custom_call.1} parent=1 // pred_region
      _
    $region29: #{tpu_custom_call.1} parent=1 // pred_fallthru
      _
    %2021 = vsyncpa [#allocation3], 1
    %2022 = vsyncpa [#allocation5], 1

</llo_original>
